<compile_context>
chip_gen: v7x
topology: tpu7x:2x2x1
jax: 0.10.0
libtpu: 0.0.40
codegen_flags: <defaults>
</compile_context>

<pallas_src>
import functools

import jax
import jax.numpy as jnp
from jax.experimental import pallas as pl
from jax.experimental.pallas import tpu as pltpu


# ----------------------------- shared math helpers -----------------------------


def _layernorm(x, g, b, eps=1e-5):
    """nn.LayerNorm (default eps) over the last dim, float32 math."""
    mu = jnp.mean(x, axis=-1, keepdims=True)
    var = jnp.mean(jnp.square(x - mu), axis=-1, keepdims=True)
    return (x - mu) * jax.lax.rsqrt(var + eps) * g + b


# ----------------------------- fused whole-stack kernel -----------------------------


def _fused_transformer_kernel(
    x_ref,                       # (M, D) f32   -- Bblk batch samples, tokens flattened into rows
    ln1g_ref, ln1b_ref,          # (1, D) f32
    qkvw_ref,                    # (D, 3*inner) bf16  (attention scale pre-folded into Q cols)
    projw_ref, projb_ref,        # (inner, D) bf16 / (1, D) f32
    ln2g_ref, ln2b_ref,          # (1, D) f32
    w1_ref, b1_ref,              # (D, H) bf16 / (1, H) f32
    w2_ref, b2_ref,              # (H, D) bf16 / (1, D) f32
    o_ref,                       # (M, D) f32
    resid_ref,                   # (M, D) f32 VMEM scratch -- residual stream across layers
    *, num_heads, head_dim, num_tokens, batch_block,
):
    cd = qkvw_ref.dtype          # MXU operand dtype (bf16); accumulation is f32
    inner = num_heads * head_dim
    N = num_tokens
    layer = pl.program_id(1)

    # Load the input block into the resident residual stream at the first layer only.
    @pl.when(layer == 0)
    def _():
        resid_ref[...] = x_ref[...].astype(jnp.float32)

    x = resid_ref[...]                                       # (M, D) f32
    M, D = x.shape

    # ---------------- PreNorm + multi-head attention ----------------
    h = _layernorm(x, ln1g_ref[...], ln1b_ref[...])
    # Big M-row matmul (Bblk*N rows feed the MXU instead of N).
    qkv = jnp.dot(h.astype(cd), qkvw_ref[...],
                  preferred_element_type=jnp.float32)        # (M, 3*inner) f32

    # Output projection accumulated per head (no lane-axis head concat).
    proj = jnp.zeros((M, D), jnp.float32)
    for hd_i in range(num_heads):                            # static unroll
        lo = hd_i * head_dim
        rows = []
        for s in range(batch_block):                         # attention is per-sample
            r0 = s * N
            q = qkv[r0:r0 + N, lo:lo + head_dim].astype(cd)
            k = qkv[r0:r0 + N, inner + lo:inner + lo + head_dim].astype(cd)
            v = qkv[r0:r0 + N, 2 * inner + lo:2 * inner + lo + head_dim].astype(cd)

            # scores = (q*scale) @ k^T ; scale already folded into the Q weight columns.
            dots = jax.lax.dot_general(
                q, k, (((1,), (1,)), ((), ())),
                preferred_element_type=jnp.float32)           # (N, N) f32
            dots = dots - jnp.max(dots, axis=-1, keepdims=True)
            p = jnp.exp(dots)
            p = p * pl.reciprocal(jnp.sum(p, axis=-1, keepdims=True), approx=True)
            rows.append(jnp.dot(p.astype(cd), v,
                                preferred_element_type=jnp.float32))  # (N, head_dim)
        # Sublane-axis (multiple-of-8) assembly of the Bblk per-sample blocks.
        head_out = rows[0] if batch_block == 1 else jnp.concatenate(rows, axis=0)
        # Per-head projection slice: (M, head_dim) @ (head_dim, D), f32 accumulate.
        proj = proj + jnp.dot(head_out.astype(cd), projw_ref[lo:lo + head_dim, :],
                              preferred_element_type=jnp.float32)
    x = x + proj + projb_ref[...]                             # residual add 1

    # ---------------- PreNorm + MLP ----------------
    h2 = _layernorm(x, ln2g_ref[...], ln2b_ref[...])
    hid = jnp.dot(h2.astype(cd), w1_ref[...],
                  preferred_element_type=jnp.float32) + b1_ref[...]
    # TODO(synk): nn.GELU default is exact erf; tanh form used here so the nonlinearity
    # rides the EUP slot (deviation ~1e-3, well inside the test tolerance).
    hid = jax.nn.gelu(hid, approximate=True)
    mlp = jnp.dot(hid.astype(cd), w2_ref[...],
                  preferred_element_type=jnp.float32) + b2_ref[...]
    x = x + mlp                                               # residual add 2

    resid_ref[...] = x                                        # carry to next layer

    @pl.when(layer == pl.num_programs(1) - 1)
    def _():
        o_ref[...] = x.astype(o_ref.dtype)


# ----------------------------- wrapper -----------------------------


def _weight_spec(arr):
    """Per-layer weight block: squeeze the leading layer dim, index by the layer axis."""
    rest = arr.shape[1:]
    nrest = len(rest)
    return pl.BlockSpec((None,) + rest, lambda b, l, _n=nrest: (l,) + (0,) * _n)


def _choose_batch_block(B, N, target_rows=256):
    """Fold enough samples per grid step for ~target_rows MXU rows, but keep >=2
    parallel grid steps when B allows (v7x has 2 TensorCores)."""
    bblk = max(1, min(B, target_rows // max(N, 1)))
    while B % bblk:
        bblk -= 1
    if B // bblk < 2 <= B:
        bblk = max(1, B // 2)
        while B % bblk:
            bblk -= 1
    return bblk


def transformer_forward(kparams, x, *, num_heads, head_dim, batch_block=None):
    B, N, D = x.shape
    depth = kparams["qkv_w"].shape[0]

    bblk = batch_block if batch_block is not None else _choose_batch_block(B, N)
    assert B % bblk == 0, (B, bblk)
    M = bblk * N                         # matmul M-dimension per grid step

    # Flatten (B, N, D) -> (B*N, D) once in the wrapper so every in-kernel matmul is a
    # lane-dense 2-D op; no in-kernel reshapes needed.
    x2d = x.reshape(B * N, D)

    names = ("ln1_g", "ln1_b", "qkv_w", "proj_w", "proj_b",
             "ln2_g", "ln2_b", "mlp_w1", "mlp_b1", "mlp_w2", "mlp_b2")
    weights = [kparams[n] for n in names]

    grid_spec = pltpu.PrefetchScalarGridSpec(
        num_scalar_prefetch=0,
        # (batch blocks, layers): layer axis innermost/"arbitrary" so the residual
        # scratch is carried layer-to-layer; batch axis "parallel" for megacore.
        grid=(B // bblk, depth),
        in_specs=[pl.BlockSpec((M, D), lambda b, l: (b, 0))]
                 + [_weight_spec(w) for w in weights],
        out_specs=pl.BlockSpec((M, D), lambda b, l: (b, 0)),
        scratch_shapes=[pltpu.VMEM((M, D), jnp.float32)],
    )

    kernel = functools.partial(
        _fused_transformer_kernel,
        num_heads=num_heads, head_dim=head_dim,
        num_tokens=N, batch_block=bblk,
    )

    out2d = pl.pallas_call(
        kernel,
        out_shape=jax.ShapeDtypeStruct((B * N, D), x.dtype),
        grid_spec=grid_spec,
        compiler_params=pltpu.CompilerParams(
            dimension_semantics=("parallel", "arbitrary"),
            # Tiny footprint at these sizes; re-derive before scaling N/D/hidden
            # (v7x has only 64 MiB physical VMEM).
            vmem_limit_bytes=32 * 1024 * 1024,
        ),
    )(x2d, *weights)
    return out2d.reshape(B, N, D)


# ----------------------------- param prep -----------------------------


def prepare_kernel_params(params, *, num_heads, head_dim):
    """Stack per-layer weights along a leading layer axis and fold the attention scale
    into the Q columns of qkv_w (zero runtime cost)."""
    inner = num_heads * head_dim
    scale = head_dim ** (-0.5)

    def stack(name):
        return jnp.stack([lp[name] for lp in params["layers"]], axis=0)

    qkv_w = stack("qkv_w").astype(jnp.float32)
    qkv_w = qkv_w.at[:, :, :inner].multiply(scale)
    return {
        "ln1_g": stack("ln1_g"), "ln1_b": stack("ln1_b"),
        "qkv_w": qkv_w.astype(jnp.bfloat16),
        "proj_w": stack("proj_w"), "proj_b": stack("proj_b"),
        "ln2_g": stack("ln2_g"), "ln2_b": stack("ln2_b"),
        "mlp_w1": stack("mlp_w1"), "mlp_b1": stack("mlp_b1"),
        "mlp_w2": stack("mlp_w2"), "mlp_b2": stack("mlp_b2"),
    }


def init_params(key, *, dim, depth, num_heads, head_dim, mlp_ratio,
                matmul_dtype=jnp.bfloat16):
    inner = num_heads * head_dim
    hidden = dim * mlp_ratio
    layers = []
    for lk in jax.random.split(key, depth):
        k0, k1, k2, k3 = jax.random.split(lk, 4)
        layers.append({
            "ln1_g": jnp.ones((1, dim), jnp.float32),
            "ln1_b": jnp.zeros((1, dim), jnp.float32),
            # matmul weights stored in bf16: MXU operands + half the weight DMA bytes
            "qkv_w": (jax.random.normal(k0, (dim, 3 * inner), jnp.float32) * 0.02
                      ).astype(matmul_dtype),
            "proj_w": (jax.random.normal(k1, (inner, dim), jnp.float32) * 0.02
                       ).astype(matmul_dtype),
            "proj_b": jnp.zeros((1, dim), jnp.float32),
            "ln2_g": jnp.ones((1, dim), jnp.float32),
            "ln2_b": jnp.zeros((1, dim), jnp.float32),
            "mlp_w1": (jax.random.normal(k2, (dim, hidden), jnp.float32) * 0.02
                       ).astype(matmul_dtype),
            "mlp_b1": jnp.zeros((1, hidden), jnp.float32),
            "mlp_w2": (jax.random.normal(k3, (hidden, dim), jnp.float32) * 0.02
                       ).astype(matmul_dtype),
            "mlp_b2": jnp.zeros((1, dim), jnp.float32),
        })
    return {"layers": layers}


# ----------------------------- pure-JAX reference (sanity check) -----------------------------


def transformer_reference(params, x, *, num_heads, head_dim):
    scale = head_dim ** (-0.5)
    inner = num_heads * head_dim
    B, N, _ = x.shape
    for lp in params["layers"]:
        h = _layernorm(x, lp["ln1_g"], lp["ln1_b"])
        qkv = h @ lp["qkv_w"].astype(jnp.float32)
        q, k, v = jnp.split(qkv, 3, axis=-1)
        sh = lambda t: t.reshape(B, N, num_heads, head_dim).transpose(0, 2, 1, 3)
        q, k, v = sh(q), sh(k), sh(v)
        dots = jnp.einsum("bhid,bhjd->bhij", q, k) * scale
        attn = jax.nn.softmax(dots, axis=-1)
        out = jnp.einsum("bhij,bhjd->bhid", attn, v).transpose(0, 2, 1, 3).reshape(B, N, inner)
        x = x + (out @ lp["proj_w"].astype(jnp.float32) + lp["proj_b"])
        h2 = _layernorm(x, lp["ln2_g"], lp["ln2_b"])
        hid = jax.nn.gelu(h2 @ lp["mlp_w1"].astype(jnp.float32) + lp["mlp_b1"],
                          approximate=False)   # nn.GELU default (exact erf)
        x = x + (hid @ lp["mlp_w2"].astype(jnp.float32) + lp["mlp_b2"])
    return x


# ----------------------------- main -----------------------------

if __name__ == "__main__":
    # Lane-dense config: dim / inner are multiples of 128, hidden = 256, N multiple of 8.
    # B=8 so batch folding gives Bblk=4 -> 128-row matmuls and 2 parallel grid steps.
    B, N, depth = 8, 32, 2
    dim, num_heads, head_dim, mlp_ratio = 128, 2, 64, 2

    key = jax.random.PRNGKey(0)
    pkey, xkey = jax.random.split(key)
    params = init_params(pkey, dim=dim, depth=depth, num_heads=num_heads,
                         head_dim=head_dim, mlp_ratio=mlp_ratio)
    x = jax.random.normal(xkey, (B, N, dim), jnp.float32)

    kparams = prepare_kernel_params(params, num_heads=num_heads, head_dim=head_dim)

    fwd = jax.jit(functools.partial(transformer_forward,
                                    num_heads=num_heads, head_dim=head_dim))
    out = fwd(kparams, x)
    jax.block_until_ready(out)

    assert out.shape == (B, N, dim)
    assert bool(jnp.all(jnp.isfinite(out)))

    # Loose sanity check against the pure-JAX reference (bf16 operands, approx
    # reciprocal and tanh-GELU introduce small, bounded drift; accumulation is f32).
    ref = transformer_reference(params, x, num_heads=num_heads, head_dim=head_dim)
    max_err = float(jnp.max(jnp.abs(out - ref)))
    assert max_err < 5e-2, f"max abs error vs reference too large: {max_err}"

    print("KERNEL_OK")
</pallas_src>

<mosaic_0001>
module attributes {stable_mosaic.version = 11 : i64} {
  func.func @_fused_transformer_kernel(%arg0: i32, %arg1: i32, %arg2: memref<128x128xf32, #tpu.memory_space<vmem>>, %arg3: memref<1x1x128xf32, #tpu.memory_space<vmem>>, %arg4: memref<1x1x128xf32, #tpu.memory_space<vmem>>, %arg5: memref<1x128x384xbf16, #tpu.memory_space<vmem>>, %arg6: memref<1x128x128xbf16, #tpu.memory_space<vmem>>, %arg7: memref<1x1x128xf32, #tpu.memory_space<vmem>>, %arg8: memref<1x1x128xf32, #tpu.memory_space<vmem>>, %arg9: memref<1x1x128xf32, #tpu.memory_space<vmem>>, %arg10: memref<1x128x256xbf16, #tpu.memory_space<vmem>>, %arg11: memref<1x1x256xf32, #tpu.memory_space<vmem>>, %arg12: memref<1x256x128xbf16, #tpu.memory_space<vmem>>, %arg13: memref<1x1x128xf32, #tpu.memory_space<vmem>>, %arg14: memref<128x128xf32, #tpu.memory_space<vmem>>, %arg15: memref<128x128xf32, #tpu.memory_space<vmem>>) attributes {dimension_semantics = [#tpu.dimension_semantics<parallel>, #tpu.dimension_semantics<arbitrary>], iteration_bounds = array<i64: 2, 2>, scalar_prefetch = 0 : i64, scratch_operands = 1 : i64, tpu.core_type = #tpu.core_type<tc>, window_params = [{transform_indices = @transform_0, window_bounds = array<i64: 128, 128>}, {transform_indices = @transform_1, window_bounds = array<i64: 1, 1, 128>}, {transform_indices = @transform_2, window_bounds = array<i64: 1, 1, 128>}, {transform_indices = @transform_3, window_bounds = array<i64: 1, 128, 384>}, {transform_indices = @transform_4, window_bounds = array<i64: 1, 128, 128>}, {transform_indices = @transform_5, window_bounds = array<i64: 1, 1, 128>}, {transform_indices = @transform_6, window_bounds = array<i64: 1, 1, 128>}, {transform_indices = @transform_7, window_bounds = array<i64: 1, 1, 128>}, {transform_indices = @transform_8, window_bounds = array<i64: 1, 128, 256>}, {transform_indices = @transform_9, window_bounds = array<i64: 1, 1, 256>}, {transform_indices = @transform_10, window_bounds = array<i64: 1, 256, 128>}, {transform_indices = @transform_11, window_bounds = array<i64: 1, 1, 128>}, {transform_indices = @transform_12, window_bounds = array<i64: 128, 128>}]} {
    %c0_i32 = arith.constant 0 : i32
    %0 = arith.cmpi eq, %arg1, %c0_i32 : i32
    %1 = arith.extui %0 : i1 to i32
    %c0_i32_0 = arith.constant 0 : i32
    %2 = arith.cmpi ne, %1, %c0_i32_0 : i32
    scf.if %2 {
      %c0_91 = arith.constant 0 : index
      %c0_92 = arith.constant 0 : index
      %264 = vector.load %arg2[%c0_91, %c0_92] : memref<128x128xf32, #tpu.memory_space<vmem>>, vector<128x128xf32>
      %c0_93 = arith.constant 0 : index
      %c0_94 = arith.constant 0 : index
      %265 = vector.load %arg15[%c0_93, %c0_94] : memref<128x128xf32, #tpu.memory_space<vmem>>, vector<128x128xf32>
      tpu.vector_store %arg15[%c0_93, %c0_94], %264 {strides = array<i32>} : memref<128x128xf32, #tpu.memory_space<vmem>>, vector<128x128xf32>,
    } else {
    }
    %c0 = arith.constant 0 : index
    %c0_1 = arith.constant 0 : index
    %3 = vector.load %arg15[%c0, %c0_1] : memref<128x128xf32, #tpu.memory_space<vmem>>, vector<128x128xf32>
    %c0_2 = arith.constant 0 : index
    %c0_3 = arith.constant 0 : index
    %c0_4 = arith.constant 0 : index
    %4 = vector.load %arg3[%c0_2, %c0_3, %c0_4] : memref<1x1x128xf32, #tpu.memory_space<vmem>>, vector<1x1x128xf32>
    %5 = vector.shape_cast %4 : vector<1x1x128xf32> to vector<1x128xf32>
    %c0_5 = arith.constant 0 : index
    %c0_6 = arith.constant 0 : index
    %c0_7 = arith.constant 0 : index
    %6 = vector.load %arg4[%c0_5, %c0_6, %c0_7] : memref<1x1x128xf32, #tpu.memory_space<vmem>>, vector<1x1x128xf32>
    %7 = vector.shape_cast %6 : vector<1x1x128xf32> to vector<1x128xf32>
    %cst = arith.constant dense<0.000000e+00> : vector<128xf32>
    %8 = vector.multi_reduction <add>, %3, %cst [1] : vector<128x128xf32> to vector<128xf32>
    %9 = vector.shape_cast %8 : vector<128xf32> to vector<128x1xf32>
    %cst_8 = arith.constant 1.280000e+02 : f32
    %10 = vector.broadcast %cst_8 : f32 to vector<128x1xf32>
    %11 = arith.divf %9, %10 : vector<128x1xf32>
    %12 = vector.broadcast %11 : vector<128x1xf32> to vector<128x128xf32>
    %13 = arith.subf %3, %12 : vector<128x128xf32>
    %14 = arith.mulf %13, %13 : vector<128x128xf32>
    %cst_9 = arith.constant dense<0.000000e+00> : vector<128xf32>
    %15 = vector.multi_reduction <add>, %14, %cst_9 [1] : vector<128x128xf32> to vector<128xf32>
    %16 = vector.shape_cast %15 : vector<128xf32> to vector<128x1xf32>
    %cst_10 = arith.constant 1.280000e+02 : f32
    %17 = vector.broadcast %cst_10 : f32 to vector<128x1xf32>
    %18 = arith.divf %16, %17 : vector<128x1xf32>
    %19 = vector.broadcast %11 : vector<128x1xf32> to vector<128x128xf32>
    %20 = arith.subf %3, %19 : vector<128x128xf32>
    %cst_11 = arith.constant 9.99999974E-6 : f32
    %21 = vector.broadcast %cst_11 : f32 to vector<128x1xf32>
    %22 = arith.addf %18, %21 : vector<128x1xf32>
    %23 = math.rsqrt %22 : vector<128x1xf32>
    %24 = vector.broadcast %23 : vector<128x1xf32> to vector<128x128xf32>
    %25 = arith.mulf %20, %24 : vector<128x128xf32>
    %26 = vector.broadcast %5 : vector<1x128xf32> to vector<128x128xf32>
    %27 = arith.mulf %25, %26 : vector<128x128xf32>
    %28 = vector.broadcast %7 : vector<1x128xf32> to vector<128x128xf32>
    %29 = arith.addf %27, %28 : vector<128x128xf32>
    %30 = arith.truncf %29 : vector<128x128xf32> to vector<128x128xbf16>
    %c0_12 = arith.constant 0 : index
    %c0_13 = arith.constant 0 : index
    %c0_14 = arith.constant 0 : index
    %31 = vector.load %arg5[%c0_12, %c0_13, %c0_14] : memref<1x128x384xbf16, #tpu.memory_space<vmem>>, vector<1x128x384xbf16>
    %32 = vector.shape_cast %31 : vector<1x128x384xbf16> to vector<128x384xbf16>
    %cst_15 = arith.constant dense<0.000000e+00> : vector<128x384xf32>
    %33 = tpu.matmul %30, %32, %cst_15 {dimension_numbers = #tpu.dot_dimension_numbers<[1], [0], [0], [1], [0, 0, 1, 1], [], []>} : vector<128x128xbf16>, vector<128x384xbf16>, vector<128x384xf32> -> vector<128x384xf32>
    %cst_16 = arith.constant 0.000000e+00 : f32
    %34 = vector.broadcast %cst_16 : f32 to vector<128x128xf32>
    %35 = vector.extract_strided_slice %33 {offsets = [0, 0], sizes = [32, 64], strides = [1, 1]} : vector<128x384xf32> to vector<32x64xf32>
    %36 = arith.truncf %35 : vector<32x64xf32> to vector<32x64xbf16>
    %37 = vector.extract_strided_slice %33 {offsets = [0, 128], sizes = [32, 64], strides = [1, 1]} : vector<128x384xf32> to vector<32x64xf32>
    %38 = arith.truncf %37 : vector<32x64xf32> to vector<32x64xbf16>
    %39 = vector.extract_strided_slice %33 {offsets = [0, 256], sizes = [32, 64], strides = [1, 1]} : vector<128x384xf32> to vector<32x64xf32>
    %40 = arith.truncf %39 : vector<32x64xf32> to vector<32x64xbf16>
    %cst_17 = arith.constant dense<0.000000e+00> : vector<32x32xf32>
    %41 = tpu.matmul %36, %38, %cst_17 {dimension_numbers = #tpu.dot_dimension_numbers<[1], [1], [0], [0], [0, 0, 1, 0], [], []>} : vector<32x64xbf16>, vector<32x64xbf16>, vector<32x32xf32> -> vector<32x32xf32>
    %cst_18 = arith.constant dense<0xFF800000> : vector<32xf32>
    %42 = vector.multi_reduction <maximumf>, %41, %cst_18 [1] : vector<32x32xf32> to vector<32xf32>
    %43 = vector.shape_cast %42 : vector<32xf32> to vector<32x1xf32>
    %44 = vector.broadcast %43 : vector<32x1xf32> to vector<32x32xf32>
    %45 = arith.subf %41, %44 : vector<32x32xf32>
    %46 = math.exp %45 : vector<32x32xf32>
    %cst_19 = arith.constant dense<0.000000e+00> : vector<32xf32>
    %47 = vector.multi_reduction <add>, %46, %cst_19 [1] : vector<32x32xf32> to vector<32xf32>
    %48 = vector.shape_cast %47 : vector<32xf32> to vector<32x1xf32>
    %49 = tpu.reciprocal %48 {approx = true} : vector<32x1xf32> -> vector<32x1xf32>
    %50 = vector.broadcast %49 : vector<32x1xf32> to vector<32x32xf32>
    %51 = arith.mulf %46, %50 : vector<32x32xf32>
    %52 = arith.truncf %51 : vector<32x32xf32> to vector<32x32xbf16>
    %cst_20 = arith.constant dense<0.000000e+00> : vector<32x64xf32>
    %53 = tpu.matmul %52, %40, %cst_20 {dimension_numbers = #tpu.dot_dimension_numbers<[1], [0], [0], [1], [0, 0, 1, 1], [], []>} : vector<32x32xbf16>, vector<32x64xbf16>, vector<32x64xf32> -> vector<32x64xf32>
    %54 = vector.extract_strided_slice %33 {offsets = [32, 0], sizes = [32, 64], strides = [1, 1]} : vector<128x384xf32> to vector<32x64xf32>
    %55 = arith.truncf %54 : vector<32x64xf32> to vector<32x64xbf16>
    %56 = vector.extract_strided_slice %33 {offsets = [32, 128], sizes = [32, 64], strides = [1, 1]} : vector<128x384xf32> to vector<32x64xf32>
    %57 = arith.truncf %56 : vector<32x64xf32> to vector<32x64xbf16>
    %58 = vector.extract_strided_slice %33 {offsets = [32, 256], sizes = [32, 64], strides = [1, 1]} : vector<128x384xf32> to vector<32x64xf32>
    %59 = arith.truncf %58 : vector<32x64xf32> to vector<32x64xbf16>
    %cst_21 = arith.constant dense<0.000000e+00> : vector<32x32xf32>
    %60 = tpu.matmul %55, %57, %cst_21 {dimension_numbers = #tpu.dot_dimension_numbers<[1], [1], [0], [0], [0, 0, 1, 0], [], []>} : vector<32x64xbf16>, vector<32x64xbf16>, vector<32x32xf32> -> vector<32x32xf32>
    %cst_22 = arith.constant dense<0xFF800000> : vector<32xf32>
    %61 = vector.multi_reduction <maximumf>, %60, %cst_22 [1] : vector<32x32xf32> to vector<32xf32>
    %62 = vector.shape_cast %61 : vector<32xf32> to vector<32x1xf32>
    %63 = vector.broadcast %62 : vector<32x1xf32> to vector<32x32xf32>
    %64 = arith.subf %60, %63 : vector<32x32xf32>
    %65 = math.exp %64 : vector<32x32xf32>
    %cst_23 = arith.constant dense<0.000000e+00> : vector<32xf32>
    %66 = vector.multi_reduction <add>, %65, %cst_23 [1] : vector<32x32xf32> to vector<32xf32>
    %67 = vector.shape_cast %66 : vector<32xf32> to vector<32x1xf32>
    %68 = tpu.reciprocal %67 {approx = true} : vector<32x1xf32> -> vector<32x1xf32>
    %69 = vector.broadcast %68 : vector<32x1xf32> to vector<32x32xf32>
    %70 = arith.mulf %65, %69 : vector<32x32xf32>
    %71 = arith.truncf %70 : vector<32x32xf32> to vector<32x32xbf16>
    %cst_24 = arith.constant dense<0.000000e+00> : vector<32x64xf32>
    %72 = tpu.matmul %71, %59, %cst_24 {dimension_numbers = #tpu.dot_dimension_numbers<[1], [0], [0], [1], [0, 0, 1, 1], [], []>} : vector<32x32xbf16>, vector<32x64xbf16>, vector<32x64xf32> -> vector<32x64xf32>
    %73 = vector.extract_strided_slice %33 {offsets = [64, 0], sizes = [32, 64], strides = [1, 1]} : vector<128x384xf32> to vector<32x64xf32>
    %74 = arith.truncf %73 : vector<32x64xf32> to vector<32x64xbf16>
    %75 = vector.extract_strided_slice %33 {offsets = [64, 128], sizes = [32, 64], strides = [1, 1]} : vector<128x384xf32> to vector<32x64xf32>
    %76 = arith.truncf %75 : vector<32x64xf32> to vector<32x64xbf16>
    %77 = vector.extract_strided_slice %33 {offsets = [64, 256], sizes = [32, 64], strides = [1, 1]} : vector<128x384xf32> to vector<32x64xf32>
    %78 = arith.truncf %77 : vector<32x64xf32> to vector<32x64xbf16>
    %cst_25 = arith.constant dense<0.000000e+00> : vector<32x32xf32>
    %79 = tpu.matmul %74, %76, %cst_25 {dimension_numbers = #tpu.dot_dimension_numbers<[1], [1], [0], [0], [0, 0, 1, 0], [], []>} : vector<32x64xbf16>, vector<32x64xbf16>, vector<32x32xf32> -> vector<32x32xf32>
    %cst_26 = arith.constant dense<0xFF800000> : vector<32xf32>
    %80 = vector.multi_reduction <maximumf>, %79, %cst_26 [1] : vector<32x32xf32> to vector<32xf32>
    %81 = vector.shape_cast %80 : vector<32xf32> to vector<32x1xf32>
    %82 = vector.broadcast %81 : vector<32x1xf32> to vector<32x32xf32>
    %83 = arith.subf %79, %82 : vector<32x32xf32>
    %84 = math.exp %83 : vector<32x32xf32>
    %cst_27 = arith.constant dense<0.000000e+00> : vector<32xf32>
    %85 = vector.multi_reduction <add>, %84, %cst_27 [1] : vector<32x32xf32> to vector<32xf32>
    %86 = vector.shape_cast %85 : vector<32xf32> to vector<32x1xf32>
    %87 = tpu.reciprocal %86 {approx = true} : vector<32x1xf32> -> vector<32x1xf32>
    %88 = vector.broadcast %87 : vector<32x1xf32> to vector<32x32xf32>
    %89 = arith.mulf %84, %88 : vector<32x32xf32>
    %90 = arith.truncf %89 : vector<32x32xf32> to vector<32x32xbf16>
    %cst_28 = arith.constant dense<0.000000e+00> : vector<32x64xf32>
    %91 = tpu.matmul %90, %78, %cst_28 {dimension_numbers = #tpu.dot_dimension_numbers<[1], [0], [0], [1], [0, 0, 1, 1], [], []>} : vector<32x32xbf16>, vector<32x64xbf16>, vector<32x64xf32> -> vector<32x64xf32>
    %92 = vector.extract_strided_slice %33 {offsets = [96, 0], sizes = [32, 64], strides = [1, 1]} : vector<128x384xf32> to vector<32x64xf32>
    %93 = arith.truncf %92 : vector<32x64xf32> to vector<32x64xbf16>
    %94 = vector.extract_strided_slice %33 {offsets = [96, 128], sizes = [32, 64], strides = [1, 1]} : vector<128x384xf32> to vector<32x64xf32>
    %95 = arith.truncf %94 : vector<32x64xf32> to vector<32x64xbf16>
    %96 = vector.extract_strided_slice %33 {offsets = [96, 256], sizes = [32, 64], strides = [1, 1]} : vector<128x384xf32> to vector<32x64xf32>
    %97 = arith.truncf %96 : vector<32x64xf32> to vector<32x64xbf16>
    %cst_29 = arith.constant dense<0.000000e+00> : vector<32x32xf32>
    %98 = tpu.matmul %93, %95, %cst_29 {dimension_numbers = #tpu.dot_dimension_numbers<[1], [1], [0], [0], [0, 0, 1, 0], [], []>} : vector<32x64xbf16>, vector<32x64xbf16>, vector<32x32xf32> -> vector<32x32xf32>
    %cst_30 = arith.constant dense<0xFF800000> : vector<32xf32>
    %99 = vector.multi_reduction <maximumf>, %98, %cst_30 [1] : vector<32x32xf32> to vector<32xf32>
    %100 = vector.shape_cast %99 : vector<32xf32> to vector<32x1xf32>
    %101 = vector.broadcast %100 : vector<32x1xf32> to vector<32x32xf32>
    %102 = arith.subf %98, %101 : vector<32x32xf32>
    %103 = math.exp %102 : vector<32x32xf32>
    %cst_31 = arith.constant dense<0.000000e+00> : vector<32xf32>
    %104 = vector.multi_reduction <add>, %103, %cst_31 [1] : vector<32x32xf32> to vector<32xf32>
    %105 = vector.shape_cast %104 : vector<32xf32> to vector<32x1xf32>
    %106 = tpu.reciprocal %105 {approx = true} : vector<32x1xf32> -> vector<32x1xf32>
    %107 = vector.broadcast %106 : vector<32x1xf32> to vector<32x32xf32>
    %108 = arith.mulf %103, %107 : vector<32x32xf32>
    %109 = arith.truncf %108 : vector<32x32xf32> to vector<32x32xbf16>
    %cst_32 = arith.constant dense<0.000000e+00> : vector<32x64xf32>
    %110 = tpu.matmul %109, %97, %cst_32 {dimension_numbers = #tpu.dot_dimension_numbers<[1], [0], [0], [1], [0, 0, 1, 1], [], []>} : vector<32x32xbf16>, vector<32x64xbf16>, vector<32x64xf32> -> vector<32x64xf32>
    %111 = tpu.concatenate %53, %72, %91, %110 in 0 : vector<32x64xf32>, vector<32x64xf32>, vector<32x64xf32>, vector<32x64xf32> -> vector<128x64xf32>
    %112 = arith.truncf %111 : vector<128x64xf32> to vector<128x64xbf16>
    %c0_33 = arith.constant 0 : index
    %c0_34 = arith.constant 0 : index
    %c0_35 = arith.constant 0 : index
    %113 = vector.load %arg6[%c0_33, %c0_34, %c0_35] : memref<1x128x128xbf16, #tpu.memory_space<vmem>>, vector<1x64x128xbf16>
    %114 = vector.shape_cast %113 : vector<1x64x128xbf16> to vector<64x128xbf16>
    %cst_36 = arith.constant dense<0.000000e+00> : vector<128x128xf32>
    %115 = tpu.matmul %112, %114, %cst_36 {dimension_numbers = #tpu.dot_dimension_numbers<[1], [0], [0], [1], [0, 0, 1, 1], [], []>} : vector<128x64xbf16>, vector<64x128xbf16>, vector<128x128xf32> -> vector<128x128xf32>
    %116 = arith.addf %34, %115 : vector<128x128xf32>
    %117 = vector.extract_strided_slice %33 {offsets = [0, 64], sizes = [32, 64], strides = [1, 1]} : vector<128x384xf32> to vector<32x64xf32>
    %118 = arith.truncf %117 : vector<32x64xf32> to vector<32x64xbf16>
    %119 = vector.extract_strided_slice %33 {offsets = [0, 192], sizes = [32, 64], strides = [1, 1]} : vector<128x384xf32> to vector<32x64xf32>
    %120 = arith.truncf %119 : vector<32x64xf32> to vector<32x64xbf16>
    %121 = vector.extract_strided_slice %33 {offsets = [0, 320], sizes = [32, 64], strides = [1, 1]} : vector<128x384xf32> to vector<32x64xf32>
    %122 = arith.truncf %121 : vector<32x64xf32> to vector<32x64xbf16>
    %cst_37 = arith.constant dense<0.000000e+00> : vector<32x32xf32>
    %123 = tpu.matmul %118, %120, %cst_37 {dimension_numbers = #tpu.dot_dimension_numbers<[1], [1], [0], [0], [0, 0, 1, 0], [], []>} : vector<32x64xbf16>, vector<32x64xbf16>, vector<32x32xf32> -> vector<32x32xf32>
    %cst_38 = arith.constant dense<0xFF800000> : vector<32xf32>
    %124 = vector.multi_reduction <maximumf>, %123, %cst_38 [1] : vector<32x32xf32> to vector<32xf32>
    %125 = vector.shape_cast %124 : vector<32xf32> to vector<32x1xf32>
    %126 = vector.broadcast %125 : vector<32x1xf32> to vector<32x32xf32>
    %127 = arith.subf %123, %126 : vector<32x32xf32>
    %128 = math.exp %127 : vector<32x32xf32>
    %cst_39 = arith.constant dense<0.000000e+00> : vector<32xf32>
    %129 = vector.multi_reduction <add>, %128, %cst_39 [1] : vector<32x32xf32> to vector<32xf32>
    %130 = vector.shape_cast %129 : vector<32xf32> to vector<32x1xf32>
    %131 = tpu.reciprocal %130 {approx = true} : vector<32x1xf32> -> vector<32x1xf32>
    %132 = vector.broadcast %131 : vector<32x1xf32> to vector<32x32xf32>
    %133 = arith.mulf %128, %132 : vector<32x32xf32>
    %134 = arith.truncf %133 : vector<32x32xf32> to vector<32x32xbf16>
    %cst_40 = arith.constant dense<0.000000e+00> : vector<32x64xf32>
    %135 = tpu.matmul %134, %122, %cst_40 {dimension_numbers = #tpu.dot_dimension_numbers<[1], [0], [0], [1], [0, 0, 1, 1], [], []>} : vector<32x32xbf16>, vector<32x64xbf16>, vector<32x64xf32> -> vector<32x64xf32>
    %136 = vector.extract_strided_slice %33 {offsets = [32, 64], sizes = [32, 64], strides = [1, 1]} : vector<128x384xf32> to vector<32x64xf32>
    %137 = arith.truncf %136 : vector<32x64xf32> to vector<32x64xbf16>
    %138 = vector.extract_strided_slice %33 {offsets = [32, 192], sizes = [32, 64], strides = [1, 1]} : vector<128x384xf32> to vector<32x64xf32>
    %139 = arith.truncf %138 : vector<32x64xf32> to vector<32x64xbf16>
    %140 = vector.extract_strided_slice %33 {offsets = [32, 320], sizes = [32, 64], strides = [1, 1]} : vector<128x384xf32> to vector<32x64xf32>
    %141 = arith.truncf %140 : vector<32x64xf32> to vector<32x64xbf16>
    %cst_41 = arith.constant dense<0.000000e+00> : vector<32x32xf32>
    %142 = tpu.matmul %137, %139, %cst_41 {dimension_numbers = #tpu.dot_dimension_numbers<[1], [1], [0], [0], [0, 0, 1, 0], [], []>} : vector<32x64xbf16>, vector<32x64xbf16>, vector<32x32xf32> -> vector<32x32xf32>
    %cst_42 = arith.constant dense<0xFF800000> : vector<32xf32>
    %143 = vector.multi_reduction <maximumf>, %142, %cst_42 [1] : vector<32x32xf32> to vector<32xf32>
    %144 = vector.shape_cast %143 : vector<32xf32> to vector<32x1xf32>
    %145 = vector.broadcast %144 : vector<32x1xf32> to vector<32x32xf32>
    %146 = arith.subf %142, %145 : vector<32x32xf32>
    %147 = math.exp %146 : vector<32x32xf32>
    %cst_43 = arith.constant dense<0.000000e+00> : vector<32xf32>
    %148 = vector.multi_reduction <add>, %147, %cst_43 [1] : vector<32x32xf32> to vector<32xf32>
    %149 = vector.shape_cast %148 : vector<32xf32> to vector<32x1xf32>
    %150 = tpu.reciprocal %149 {approx = true} : vector<32x1xf32> -> vector<32x1xf32>
    %151 = vector.broadcast %150 : vector<32x1xf32> to vector<32x32xf32>
    %152 = arith.mulf %147, %151 : vector<32x32xf32>
    %153 = arith.truncf %152 : vector<32x32xf32> to vector<32x32xbf16>
    %cst_44 = arith.constant dense<0.000000e+00> : vector<32x64xf32>
    %154 = tpu.matmul %153, %141, %cst_44 {dimension_numbers = #tpu.dot_dimension_numbers<[1], [0], [0], [1], [0, 0, 1, 1], [], []>} : vector<32x32xbf16>, vector<32x64xbf16>, vector<32x64xf32> -> vector<32x64xf32>
    %155 = vector.extract_strided_slice %33 {offsets = [64, 64], sizes = [32, 64], strides = [1, 1]} : vector<128x384xf32> to vector<32x64xf32>
    %156 = arith.truncf %155 : vector<32x64xf32> to vector<32x64xbf16>
    %157 = vector.extract_strided_slice %33 {offsets = [64, 192], sizes = [32, 64], strides = [1, 1]} : vector<128x384xf32> to vector<32x64xf32>
    %158 = arith.truncf %157 : vector<32x64xf32> to vector<32x64xbf16>
    %159 = vector.extract_strided_slice %33 {offsets = [64, 320], sizes = [32, 64], strides = [1, 1]} : vector<128x384xf32> to vector<32x64xf32>
    %160 = arith.truncf %159 : vector<32x64xf32> to vector<32x64xbf16>
    %cst_45 = arith.constant dense<0.000000e+00> : vector<32x32xf32>
    %161 = tpu.matmul %156, %158, %cst_45 {dimension_numbers = #tpu.dot_dimension_numbers<[1], [1], [0], [0], [0, 0, 1, 0], [], []>} : vector<32x64xbf16>, vector<32x64xbf16>, vector<32x32xf32> -> vector<32x32xf32>
    %cst_46 = arith.constant dense<0xFF800000> : vector<32xf32>
    %162 = vector.multi_reduction <maximumf>, %161, %cst_46 [1] : vector<32x32xf32> to vector<32xf32>
    %163 = vector.shape_cast %162 : vector<32xf32> to vector<32x1xf32>
    %164 = vector.broadcast %163 : vector<32x1xf32> to vector<32x32xf32>
    %165 = arith.subf %161, %164 : vector<32x32xf32>
    %166 = math.exp %165 : vector<32x32xf32>
    %cst_47 = arith.constant dense<0.000000e+00> : vector<32xf32>
    %167 = vector.multi_reduction <add>, %166, %cst_47 [1] : vector<32x32xf32> to vector<32xf32>
    %168 = vector.shape_cast %167 : vector<32xf32> to vector<32x1xf32>
    %169 = tpu.reciprocal %168 {approx = true} : vector<32x1xf32> -> vector<32x1xf32>
    %170 = vector.broadcast %169 : vector<32x1xf32> to vector<32x32xf32>
    %171 = arith.mulf %166, %170 : vector<32x32xf32>
    %172 = arith.truncf %171 : vector<32x32xf32> to vector<32x32xbf16>
    %cst_48 = arith.constant dense<0.000000e+00> : vector<32x64xf32>
    %173 = tpu.matmul %172, %160, %cst_48 {dimension_numbers = #tpu.dot_dimension_numbers<[1], [0], [0], [1], [0, 0, 1, 1], [], []>} : vector<32x32xbf16>, vector<32x64xbf16>, vector<32x64xf32> -> vector<32x64xf32>
    %174 = vector.extract_strided_slice %33 {offsets = [96, 64], sizes = [32, 64], strides = [1, 1]} : vector<128x384xf32> to vector<32x64xf32>
    %175 = arith.truncf %174 : vector<32x64xf32> to vector<32x64xbf16>
    %176 = vector.extract_strided_slice %33 {offsets = [96, 192], sizes = [32, 64], strides = [1, 1]} : vector<128x384xf32> to vector<32x64xf32>
    %177 = arith.truncf %176 : vector<32x64xf32> to vector<32x64xbf16>
    %178 = vector.extract_strided_slice %33 {offsets = [96, 320], sizes = [32, 64], strides = [1, 1]} : vector<128x384xf32> to vector<32x64xf32>
    %179 = arith.truncf %178 : vector<32x64xf32> to vector<32x64xbf16>
    %cst_49 = arith.constant dense<0.000000e+00> : vector<32x32xf32>
    %180 = tpu.matmul %175, %177, %cst_49 {dimension_numbers = #tpu.dot_dimension_numbers<[1], [1], [0], [0], [0, 0, 1, 0], [], []>} : vector<32x64xbf16>, vector<32x64xbf16>, vector<32x32xf32> -> vector<32x32xf32>
    %cst_50 = arith.constant dense<0xFF800000> : vector<32xf32>
    %181 = vector.multi_reduction <maximumf>, %180, %cst_50 [1] : vector<32x32xf32> to vector<32xf32>
    %182 = vector.shape_cast %181 : vector<32xf32> to vector<32x1xf32>
    %183 = vector.broadcast %182 : vector<32x1xf32> to vector<32x32xf32>
    %184 = arith.subf %180, %183 : vector<32x32xf32>
    %185 = math.exp %184 : vector<32x32xf32>
    %cst_51 = arith.constant dense<0.000000e+00> : vector<32xf32>
    %186 = vector.multi_reduction <add>, %185, %cst_51 [1] : vector<32x32xf32> to vector<32xf32>
    %187 = vector.shape_cast %186 : vector<32xf32> to vector<32x1xf32>
    %188 = tpu.reciprocal %187 {approx = true} : vector<32x1xf32> -> vector<32x1xf32>
    %189 = vector.broadcast %188 : vector<32x1xf32> to vector<32x32xf32>
    %190 = arith.mulf %185, %189 : vector<32x32xf32>
    %191 = arith.truncf %190 : vector<32x32xf32> to vector<32x32xbf16>
    %cst_52 = arith.constant dense<0.000000e+00> : vector<32x64xf32>
    %192 = tpu.matmul %191, %179, %cst_52 {dimension_numbers = #tpu.dot_dimension_numbers<[1], [0], [0], [1], [0, 0, 1, 1], [], []>} : vector<32x32xbf16>, vector<32x64xbf16>, vector<32x64xf32> -> vector<32x64xf32>
    %193 = tpu.concatenate %135, %154, %173, %192 in 0 : vector<32x64xf32>, vector<32x64xf32>, vector<32x64xf32>, vector<32x64xf32> -> vector<128x64xf32>
    %194 = arith.truncf %193 : vector<128x64xf32> to vector<128x64xbf16>
    %c0_53 = arith.constant 0 : index
    %c64 = arith.constant 64 : index
    %c0_54 = arith.constant 0 : index
    %195 = vector.load %arg6[%c0_53, %c64, %c0_54] : memref<1x128x128xbf16, #tpu.memory_space<vmem>>, vector<1x64x128xbf16>
    %196 = vector.shape_cast %195 : vector<1x64x128xbf16> to vector<64x128xbf16>
    %cst_55 = arith.constant dense<0.000000e+00> : vector<128x128xf32>
    %197 = tpu.matmul %194, %196, %cst_55 {dimension_numbers = #tpu.dot_dimension_numbers<[1], [0], [0], [1], [0, 0, 1, 1], [], []>} : vector<128x64xbf16>, vector<64x128xbf16>, vector<128x128xf32> -> vector<128x128xf32>
    %198 = arith.addf %116, %197 : vector<128x128xf32>
    %199 = arith.addf %3, %198 : vector<128x128xf32>
    %c0_56 = arith.constant 0 : index
    %c0_57 = arith.constant 0 : index
    %c0_58 = arith.constant 0 : index
    %200 = vector.load %arg7[%c0_56, %c0_57, %c0_58] : memref<1x1x128xf32, #tpu.memory_space<vmem>>, vector<1x1x128xf32>
    %201 = vector.shape_cast %200 : vector<1x1x128xf32> to vector<1x128xf32>
    %202 = vector.broadcast %201 : vector<1x128xf32> to vector<128x128xf32>
    %203 = arith.addf %199, %202 : vector<128x128xf32>
    %c0_59 = arith.constant 0 : index
    %c0_60 = arith.constant 0 : index
    %c0_61 = arith.constant 0 : index
    %204 = vector.load %arg8[%c0_59, %c0_60, %c0_61] : memref<1x1x128xf32, #tpu.memory_space<vmem>>, vector<1x1x128xf32>
    %205 = vector.shape_cast %204 : vector<1x1x128xf32> to vector<1x128xf32>
    %c0_62 = arith.constant 0 : index
    %c0_63 = arith.constant 0 : index
    %c0_64 = arith.constant 0 : index
    %206 = vector.load %arg9[%c0_62, %c0_63, %c0_64] : memref<1x1x128xf32, #tpu.memory_space<vmem>>, vector<1x1x128xf32>
    %207 = vector.shape_cast %206 : vector<1x1x128xf32> to vector<1x128xf32>
    %cst_65 = arith.constant dense<0.000000e+00> : vector<128xf32>
    %208 = vector.multi_reduction <add>, %203, %cst_65 [1] : vector<128x128xf32> to vector<128xf32>
    %209 = vector.shape_cast %208 : vector<128xf32> to vector<128x1xf32>
    %cst_66 = arith.constant 1.280000e+02 : f32
    %210 = vector.broadcast %cst_66 : f32 to vector<128x1xf32>
    %211 = arith.divf %209, %210 : vector<128x1xf32>
    %212 = vector.broadcast %211 : vector<128x1xf32> to vector<128x128xf32>
    %213 = arith.subf %203, %212 : vector<128x128xf32>
    %214 = arith.mulf %213, %213 : vector<128x128xf32>
    %cst_67 = arith.constant dense<0.000000e+00> : vector<128xf32>
    %215 = vector.multi_reduction <add>, %214, %cst_67 [1] : vector<128x128xf32> to vector<128xf32>
    %216 = vector.shape_cast %215 : vector<128xf32> to vector<128x1xf32>
    %cst_68 = arith.constant 1.280000e+02 : f32
    %217 = vector.broadcast %cst_68 : f32 to vector<128x1xf32>
    %218 = arith.divf %216, %217 : vector<128x1xf32>
    %219 = vector.broadcast %211 : vector<128x1xf32> to vector<128x128xf32>
    %220 = arith.subf %203, %219 : vector<128x128xf32>
    %cst_69 = arith.constant 9.99999974E-6 : f32
    %221 = vector.broadcast %cst_69 : f32 to vector<128x1xf32>
    %222 = arith.addf %218, %221 : vector<128x1xf32>
    %223 = math.rsqrt %222 : vector<128x1xf32>
    %224 = vector.broadcast %223 : vector<128x1xf32> to vector<128x128xf32>
    %225 = arith.mulf %220, %224 : vector<128x128xf32>
    %226 = vector.broadcast %205 : vector<1x128xf32> to vector<128x128xf32>
    %227 = arith.mulf %225, %226 : vector<128x128xf32>
    %228 = vector.broadcast %207 : vector<1x128xf32> to vector<128x128xf32>
    %229 = arith.addf %227, %228 : vector<128x128xf32>
    %230 = arith.truncf %229 : vector<128x128xf32> to vector<128x128xbf16>
    %c0_70 = arith.constant 0 : index
    %c0_71 = arith.constant 0 : index
    %c0_72 = arith.constant 0 : index
    %231 = vector.load %arg10[%c0_70, %c0_71, %c0_72] : memref<1x128x256xbf16, #tpu.memory_space<vmem>>, vector<1x128x256xbf16>
    %232 = vector.shape_cast %231 : vector<1x128x256xbf16> to vector<128x256xbf16>
    %cst_73 = arith.constant dense<0.000000e+00> : vector<128x256xf32>
    %233 = tpu.matmul %230, %232, %cst_73 {dimension_numbers = #tpu.dot_dimension_numbers<[1], [0], [0], [1], [0, 0, 1, 1], [], []>} : vector<128x128xbf16>, vector<128x256xbf16>, vector<128x256xf32> -> vector<128x256xf32>
    %c0_74 = arith.constant 0 : index
    %c0_75 = arith.constant 0 : index
    %c0_76 = arith.constant 0 : index
    %234 = vector.load %arg11[%c0_74, %c0_75, %c0_76] : memref<1x1x256xf32, #tpu.memory_space<vmem>>, vector<1x1x256xf32>
    %235 = vector.shape_cast %234 : vector<1x1x256xf32> to vector<1x256xf32>
    %236 = vector.broadcast %235 : vector<1x256xf32> to vector<128x256xf32>
    %237 = arith.addf %233, %236 : vector<128x256xf32>
    %238 = arith.mulf %237, %237 : vector<128x256xf32>
    %239 = arith.mulf %237, %238 : vector<128x256xf32>
    %cst_77 = arith.constant 4.471500e-02 : f32
    %240 = vector.broadcast %cst_77 : f32 to vector<128x256xf32>
    %241 = arith.mulf %240, %239 : vector<128x256xf32>
    %242 = arith.addf %237, %241 : vector<128x256xf32>
    %cst_78 = arith.constant 0.797884583 : f32
    %243 = vector.broadcast %cst_78 : f32 to vector<128x256xf32>
    %244 = arith.mulf %243, %242 : vector<128x256xf32>
    %245 = math.tanh %244 : vector<128x256xf32>
    %cst_79 = arith.constant 1.000000e+00 : f32
    %246 = vector.broadcast %cst_79 : f32 to vector<128x256xf32>
    %247 = arith.addf %246, %245 : vector<128x256xf32>
    %cst_80 = arith.constant 5.000000e-01 : f32
    %248 = vector.broadcast %cst_80 : f32 to vector<128x256xf32>
    %249 = arith.mulf %248, %247 : vector<128x256xf32>
    %250 = arith.mulf %237, %249 : vector<128x256xf32>
    %251 = arith.truncf %250 : vector<128x256xf32> to vector<128x256xbf16>
    %c0_81 = arith.constant 0 : index
    %c0_82 = arith.constant 0 : index
    %c0_83 = arith.constant 0 : index
    %252 = vector.load %arg12[%c0_81, %c0_82, %c0_83] : memref<1x256x128xbf16, #tpu.memory_space<vmem>>, vector<1x256x128xbf16>
    %253 = vector.shape_cast %252 : vector<1x256x128xbf16> to vector<256x128xbf16>
    %cst_84 = arith.constant dense<0.000000e+00> : vector<128x128xf32>
    %254 = tpu.matmul %251, %253, %cst_84 {dimension_numbers = #tpu.dot_dimension_numbers<[1], [0], [0], [1], [0, 0, 1, 1], [], []>} : vector<128x256xbf16>, vector<256x128xbf16>, vector<128x128xf32> -> vector<128x128xf32>
    %c0_85 = arith.constant 0 : index
    %c0_86 = arith.constant 0 : index
    %c0_87 = arith.constant 0 : index
    %255 = vector.load %arg13[%c0_85, %c0_86, %c0_87] : memref<1x1x128xf32, #tpu.memory_space<vmem>>, vector<1x1x128xf32>
    %256 = vector.shape_cast %255 : vector<1x1x128xf32> to vector<1x128xf32>
    %257 = vector.broadcast %256 : vector<1x128xf32> to vector<128x128xf32>
    %258 = arith.addf %254, %257 : vector<128x128xf32>
    %259 = arith.addf %203, %258 : vector<128x128xf32>
    %c0_88 = arith.constant 0 : index
    %c0_89 = arith.constant 0 : index
    %260 = vector.load %arg15[%c0_88, %c0_89] : memref<128x128xf32, #tpu.memory_space<vmem>>, vector<128x128xf32>
    tpu.vector_store %arg15[%c0_88, %c0_89], %259 {strides = array<i32>} : memref<128x128xf32, #tpu.memory_space<vmem>>, vector<128x128xf32>,
    %c1_i32 = arith.constant 1 : i32
    %261 = arith.cmpi eq, %arg1, %c1_i32 : i32
    %262 = arith.extui %261 : i1 to i32
    %c0_i32_90 = arith.constant 0 : i32
    %263 = arith.cmpi ne, %262, %c0_i32_90 : i32
    scf.if %263 {
      %c0_91 = arith.constant 0 : index
      %c0_92 = arith.constant 0 : index
      %264 = vector.load %arg14[%c0_91, %c0_92] : memref<128x128xf32, #tpu.memory_space<vmem>>, vector<128x128xf32>
      tpu.vector_store %arg14[%c0_91, %c0_92], %259 {strides = array<i32>} : memref<128x128xf32, #tpu.memory_space<vmem>>, vector<128x128xf32>,
    } else {
    }
    return
  }
  func.func @transform_0(%arg0: i32, %arg1: i32) -> (i32, i32) {
    %c0_i32 = arith.constant 0 : i32
    %c0_i32_0 = arith.constant 0 : i32
    return %arg0, %c0_i32 : i32, i32
  }
  func.func @transform_1(%arg0: i32, %arg1: i32) -> (i32, i32, i32) {
    %c0_i32 = arith.constant 0 : i32
    %c0_i32_0 = arith.constant 0 : i32
    %c0_i32_1 = arith.constant 0 : i32
    return %arg1, %c0_i32, %c0_i32_0 : i32, i32, i32
  }
  func.func @transform_2(%arg0: i32, %arg1: i32) -> (i32, i32, i32) {
    %c0_i32 = arith.constant 0 : i32
    %c0_i32_0 = arith.constant 0 : i32
    %c0_i32_1 = arith.constant 0 : i32
    return %arg1, %c0_i32, %c0_i32_0 : i32, i32, i32
  }
  func.func @transform_3(%arg0: i32, %arg1: i32) -> (i32, i32, i32) {
    %c0_i32 = arith.constant 0 : i32
    %c0_i32_0 = arith.constant 0 : i32
    %c0_i32_1 = arith.constant 0 : i32
    return %arg1, %c0_i32, %c0_i32_0 : i32, i32, i32
  }
  func.func @transform_4(%arg0: i32, %arg1: i32) -> (i32, i32, i32) {
    %c0_i32 = arith.constant 0 : i32
    %c0_i32_0 = arith.constant 0 : i32
    %c0_i32_1 = arith.constant 0 : i32
    return %arg1, %c0_i32, %c0_i32_0 : i32, i32, i32
  }
  func.func @transform_5(%arg0: i32, %arg1: i32) -> (i32, i32, i32) {
    %c0_i32 = arith.constant 0 : i32
    %c0_i32_0 = arith.constant 0 : i32
    %c0_i32_1 = arith.constant 0 : i32
    return %arg1, %c0_i32, %c0_i32_0 : i32, i32, i32
  }
  func.func @transform_6(%arg0: i32, %arg1: i32) -> (i32, i32, i32) {
    %c0_i32 = arith.constant 0 : i32
    %c0_i32_0 = arith.constant 0 : i32
    %c0_i32_1 = arith.constant 0 : i32
    return %arg1, %c0_i32, %c0_i32_0 : i32, i32, i32
  }
  func.func @transform_7(%arg0: i32, %arg1: i32) -> (i32, i32, i32) {
    %c0_i32 = arith.constant 0 : i32
    %c0_i32_0 = arith.constant 0 : i32
    %c0_i32_1 = arith.constant 0 : i32
    return %arg1, %c0_i32, %c0_i32_0 : i32, i32, i32
  }
  func.func @transform_8(%arg0: i32, %arg1: i32) -> (i32, i32, i32) {
    %c0_i32 = arith.constant 0 : i32
    %c0_i32_0 = arith.constant 0 : i32
    %c0_i32_1 = arith.constant 0 : i32
    return %arg1, %c0_i32, %c0_i32_0 : i32, i32, i32
  }
  func.func @transform_9(%arg0: i32, %arg1: i32) -> (i32, i32, i32) {
    %c0_i32 = arith.constant 0 : i32
    %c0_i32_0 = arith.constant 0 : i32
    %c0_i32_1 = arith.constant 0 : i32
    return %arg1, %c0_i32, %c0_i32_0 : i32, i32, i32
  }
  func.func @transform_10(%arg0: i32, %arg1: i32) -> (i32, i32, i32) {
    %c0_i32 = arith.constant 0 : i32
    %c0_i32_0 = arith.constant 0 : i32
    %c0_i32_1 = arith.constant 0 : i32
    return %arg1, %c0_i32, %c0_i32_0 : i32, i32, i32
  }
  func.func @transform_11(%arg0: i32, %arg1: i32) -> (i32, i32, i32) {
    %c0_i32 = arith.constant 0 : i32
    %c0_i32_0 = arith.constant 0 : i32
    %c0_i32_1 = arith.constant 0 : i32
    return %arg1, %c0_i32, %c0_i32_0 : i32, i32, i32
  }
  func.func @transform_12(%arg0: i32, %arg1: i32) -> (i32, i32) {
    %c0_i32 = arith.constant 0 : i32
    %c0_i32_0 = arith.constant 0 : i32
    return %arg0, %c0_i32 : i32, i32
  }
}

</mosaic_0001>

<llo_original>
// kernel: transformer_forward.1
$region0: #{transformer_forward.1}
  #allocation0 [shape = 'u32[]', space=smem, size = 0x4, offset = 0x4, fixed_abs, tag = 'smem constant byte address 0x4 - core index']
  #allocation1 [shape = 'u32[144,128]{1,0:T(1,128)}', space=vmem, size = 0x12000, scoped, tag = 'internal scratch']
  #allocation2 [shape = 'f32[128,128]{1,0:T(8,128)}', space=vmem, size = 0x10000, scoped, tag = 'scratch operand']
  %s0 = inlined_call_operand.hbm [shape: f32[256,128], index: 0, kind: input, shape index: {}]
  %s1 = inlined_call_operand.vmem [shape: f32[2,1,128], index: 1, kind: input, shape index: {}]
  %s2 = inlined_call_operand.hbm [shape: f32[2,1,128], index: 2, kind: input, shape index: {}]
  %s3 = inlined_call_operand.hbm [shape: bf16[2,128,384], index: 3, kind: input, shape index: {}]
  %s4 = inlined_call_operand.hbm [shape: bf16[2,128,128], index: 4, kind: input, shape index: {}]
  %s5 = inlined_call_operand.vmem [shape: f32[2,1,128], index: 5, kind: input, shape index: {}]
  %s6 = inlined_call_operand.vmem [shape: f32[2,1,128], index: 6, kind: input, shape index: {}]
  %s7 = inlined_call_operand.hbm [shape: f32[2,1,128], index: 7, kind: input, shape index: {}]
  %s8 = inlined_call_operand.hbm [shape: bf16[2,128,256], index: 8, kind: input, shape index: {}]
  %s9 = inlined_call_operand.vmem [shape: f32[2,1,256], index: 9, kind: input, shape index: {}]
  %s10 = inlined_call_operand.hbm [shape: bf16[2,256,128], index: 10, kind: input, shape index: {}]
  %s11 = inlined_call_operand.vmem [shape: f32[2,1,128], index: 11, kind: input, shape index: {}]
  %s12 = inlined_call_operand.hbm [shape: f32[256,128], index: 12, kind: output, shape index: {}]
  %s13 = sld [smem:[#allocation0]]
  $region117: #{transformer_forward.1} parent=0
    _
  %s15 = ssub.s32 1, %s13
  %s16 = scalar_select 0, %s15, %s13
  $region1: #{transformer_forward.1} parent=0
    #allocation3 [shape = 'u8[131072]{0}', space=vmem, size = 0x20000, scoped, tag = 'input window, operand 0']
    #allocation4 [shape = 's32[2]{0}', space=sflag, size = 0x8, scoped, tag = 'scoped memory for transformer_forward.1']
    #allocation5 [shape = 's32[2]{0}', space=sflag, size = 0x8, scoped, tag = 'scoped memory for transformer_forward.1']
    #allocation6 [shape = 'u8[1024]{0}', space=vmem, size = 0x400, scoped, tag = 'input window, operand 2']
    #allocation7 [shape = 's32[2]{0}', space=sflag, size = 0x8, scoped, tag = 'scoped memory for transformer_forward.1']
    #allocation8 [shape = 'u8[196608]{0}', space=vmem, size = 0x30000, scoped, tag = 'input window, operand 3']
    #allocation9 [shape = 'u8[65536]{0}', space=vmem, size = 0x10000, scoped, tag = 'input window, operand 4']
    #allocation10 [shape = 's32[2]{0}', space=sflag, size = 0x8, scoped, tag = 'scoped memory for transformer_forward.1']
    #allocation11 [shape = 'u8[1024]{0}', space=vmem, size = 0x400, scoped, tag = 'input window, operand 7']
    #allocation12 [shape = 'u8[131072]{0}', space=vmem, size = 0x20000, scoped, tag = 'input window, operand 8']
    #allocation13 [shape = 's32[2]{0}', space=sflag, size = 0x8, scoped, tag = 'scoped memory for transformer_forward.1']
    #allocation14 [shape = 'u8[131072]{0}', space=vmem, size = 0x20000, scoped, tag = 'input window, operand 10']
    #allocation15 [shape = 'u8[131072]{0}', space=vmem, size = 0x20000, scoped, tag = 'output window, operand 0']
    %17 = vsyncpa [#allocation4], 0
    %s18 = scalar_lea.sflag [#allocation4], 1
    %19 = vsyncpa %s18, 0
    %20 = vsyncpa [#allocation7], 0
    %s21 = scalar_lea.sflag [#allocation7], 1
    %22 = vsyncpa %s21, 0
    %23 = vsyncpa [#allocation10], 0
    %s24 = scalar_lea.sflag [#allocation10], 1
    %25 = vsyncpa %s24, 0
    %26 = vsyncpa [#allocation13], 0
    %s27 = scalar_lea.sflag [#allocation13], 1
    %28 = vsyncpa %s27, 0
    %29 = vsyncpa [#allocation5], 0
    %s30 = scalar_lea.sflag [#allocation5], 1
    %31 = vsyncpa %s30, 0
    loop: start=0, step=1, limit=6
    $region2: #{transformer_forward.1} parent=1 // loop_pre_header
      _
    $region3: #{transformer_forward.1} parent=1 // loop_header
      %s33 = sphi 0, %s37
      %p34 = scmp.ge.s32.totalorder %s33, 6
      %s40 = sphi 0, %s52
      %s41 = sphi 0, %s48
      %s42 = sphi 0, %s40
      %s43 = sphi 0, %s41
      %s44 = sphi 0, %s42
      %s45 = sphi 0, %s43
      %s55 = sphi 0, %s57
      %s58 = sphi 0, %s55
      %s59 = sphi 0, %s58
      %s75 = sphi 0, %s59
      %s81 = sphi 0, %s83
      %s84 = sphi 0, %s81
      %s85 = sphi 0, %s84
      %s101 = sphi 0, %s85
      %s107 = sphi 0, %s109
      %s110 = sphi 0, %s107
      %s111 = sphi 0, %s110
      %s127 = sphi 0, %s111
      %s133 = sphi 0, %s135
      %s136 = sphi 0, %s133
      %s137 = sphi 0, %s136
      %s153 = sphi 0, %s137
      %s159 = sphi 0, %s161
      %s162 = sphi 0, %s159
      %s163 = sphi 0, %s162
      %s179 = sphi 0, %s163
      %s185 = sphi 0, %s187
      %s188 = sphi 0, %s185
      %s189 = sphi 0, %s188
      %s205 = sphi 0, %s189
      %s211 = sphi 0, %s213
      %s214 = sphi 0, %s211
      %s215 = sphi 0, %s214
      %s231 = sphi 0, %s215
      %s237 = sphi 0, %s239
      %s240 = sphi 0, %s237
      %s241 = sphi 0, %s240
      %s257 = sphi 0, %s241
      %s263 = sphi 0, %s265
      %s266 = sphi 0, %s263
      %s267 = sphi 0, %s266
      %s283 = sphi 0, %s267
      %s289 = sphi 0, %s291
      %s292 = sphi 0, %s289
      %s293 = sphi 0, %s292
      %s309 = sphi 0, %s293
      %s315 = sphi 0, %s317
      %s318 = sphi 0, %s315
      %s319 = sphi 0, %s318
      %s335 = sphi 0, %s319
      %s341 = sphi 0, %s343
      %s344 = sphi 0, %s341
      %s345 = sphi 0, %s344
      %s361 = sphi 0, %s345
      %s367 = sphi 0, %s369
      %s370 = sphi 0, %s367
      %s371 = sphi 0, %s370
      %s387 = sphi 0, %s371
    $region4: #{transformer_forward.1} parent=1 // loop_header_branch
      %36 = sbr.rel (%p34) target = $region8
    $region5: #{transformer_forward.1} parent=1 // loop_body
      %s38 = ssub.s32 %s33, 1
      %s39 = ssub.s32 %s33, 2
      %s46 = sadd.s32 1, %s41
      %p47 = scmp.ge.s32.totalorder %s46, 2
      %s48 = scalar_select %p47, 0, %s46
      %s49 = sadd.s32 1, %s40
      %s50 = scalar_select %p47, %s49, %s40
      %p51 = scmp.ge.s32.totalorder %s50, 2
      %s52 = scalar_select %p51, 0, %s50
      %s53 = ssub.s32 %s40, %s52
      %p54 = scmp.eq.s32.totalorder %s53, 0
      %s56 = sadd.s32 %s55, 1
      %s57 = scalar_select %p54, %s55, %s56
      %p60 = pneg %p54
      %p61 = scmp.eq.s32.totalorder %s33, 3
      %p62 = por %p60, %p61
      %p63 = scmp.ne.s32.totalorder %s55, %s58
      %p64 = scmp.eq.s32.totalorder %s33, 0
      %p65 = por %p63, %p64
      %p66 = scmp.ne.s32.totalorder %s55, %s58
      %p67 = scmp.eq.s32.totalorder %s38, 3
      %p68 = por %p66, %p67
      %p69 = scmp.ne.s32.totalorder %s58, %s59
      %p70 = scmp.eq.s32.totalorder %s38, 0
      %p71 = por %p69, %p70
      %p72 = scmp.ne.s32.totalorder %s58, %s59
      %p73 = scmp.eq.s32.totalorder %s39, 3
      %p74 = por %p72, %p73
      %p76 = scmp.ne.s32.totalorder %s59, %s75
      %p77 = scmp.eq.s32.totalorder %s39, 0
      %p78 = por %p76, %p77
      %s79 = ssub.s32 %s41, %s48
      %p80 = scmp.eq.s32.totalorder %s79, 0
      %s82 = sadd.s32 %s81, 1
      %s83 = scalar_select %p80, %s81, %s82
      %p86 = pneg %p80
      %p87 = scmp.eq.s32.totalorder %s33, 3
      %p88 = por %p86, %p87
      %p89 = scmp.ne.s32.totalorder %s81, %s84
      %p90 = scmp.eq.s32.totalorder %s33, 0
      %p91 = por %p89, %p90
      %p92 = scmp.ne.s32.totalorder %s81, %s84
      %p93 = scmp.eq.s32.totalorder %s38, 3
      %p94 = por %p92, %p93
      %p95 = scmp.ne.s32.totalorder %s84, %s85
      %p96 = scmp.eq.s32.totalorder %s38, 0
      %p97 = por %p95, %p96
      %p98 = scmp.ne.s32.totalorder %s84, %s85
      %p99 = scmp.eq.s32.totalorder %s39, 3
      %p100 = por %p98, %p99
      %p102 = scmp.ne.s32.totalorder %s85, %s101
      %p103 = scmp.eq.s32.totalorder %s39, 0
      %p104 = por %p102, %p103
      %s105 = ssub.s32 %s41, %s48
      %p106 = scmp.eq.s32.totalorder %s105, 0
      %s108 = sadd.s32 %s107, 1
      %s109 = scalar_select %p106, %s107, %s108
      %p112 = pneg %p106
      %p113 = scmp.eq.s32.totalorder %s33, 3
      %p114 = por %p112, %p113
      %p115 = scmp.ne.s32.totalorder %s107, %s110
      %p116 = scmp.eq.s32.totalorder %s33, 0
      %p117 = por %p115, %p116
      %p118 = scmp.ne.s32.totalorder %s107, %s110
      %p119 = scmp.eq.s32.totalorder %s38, 3
      %p120 = por %p118, %p119
      %p121 = scmp.ne.s32.totalorder %s110, %s111
      %p122 = scmp.eq.s32.totalorder %s38, 0
      %p123 = por %p121, %p122
      %p124 = scmp.ne.s32.totalorder %s110, %s111
      %p125 = scmp.eq.s32.totalorder %s39, 3
      %p126 = por %p124, %p125
      %p128 = scmp.ne.s32.totalorder %s111, %s127
      %p129 = scmp.eq.s32.totalorder %s39, 0
      %p130 = por %p128, %p129
      %s131 = ssub.s32 %s41, %s48
      %p132 = scmp.eq.s32.totalorder %s131, 0
      %s134 = sadd.s32 %s133, 1
      %s135 = scalar_select %p132, %s133, %s134
      %p138 = pneg %p132
      %p139 = scmp.eq.s32.totalorder %s33, 3
      %p140 = por %p138, %p139
      %p141 = scmp.ne.s32.totalorder %s133, %s136
      %p142 = scmp.eq.s32.totalorder %s33, 0
      %p143 = por %p141, %p142
      %p144 = scmp.ne.s32.totalorder %s133, %s136
      %p145 = scmp.eq.s32.totalorder %s38, 3
      %p146 = por %p144, %p145
      %p147 = scmp.ne.s32.totalorder %s136, %s137
      %p148 = scmp.eq.s32.totalorder %s38, 0
      %p149 = por %p147, %p148
      %p150 = scmp.ne.s32.totalorder %s136, %s137
      %p151 = scmp.eq.s32.totalorder %s39, 3
      %p152 = por %p150, %p151
      %p154 = scmp.ne.s32.totalorder %s137, %s153
      %p155 = scmp.eq.s32.totalorder %s39, 0
      %p156 = por %p154, %p155
      %s157 = ssub.s32 %s41, %s48
      %p158 = scmp.eq.s32.totalorder %s157, 0
      %s160 = sadd.s32 %s159, 1
      %s161 = scalar_select %p158, %s159, %s160
      %p164 = pneg %p158
      %p165 = scmp.eq.s32.totalorder %s33, 3
      %p166 = por %p164, %p165
      %p167 = scmp.ne.s32.totalorder %s159, %s162
      %p168 = scmp.eq.s32.totalorder %s33, 0
      %p169 = por %p167, %p168
      %p170 = scmp.ne.s32.totalorder %s159, %s162
      %p171 = scmp.eq.s32.totalorder %s38, 3
      %p172 = por %p170, %p171
      %p173 = scmp.ne.s32.totalorder %s162, %s163
      %p174 = scmp.eq.s32.totalorder %s38, 0
      %p175 = por %p173, %p174
      %p176 = scmp.ne.s32.totalorder %s162, %s163
      %p177 = scmp.eq.s32.totalorder %s39, 3
      %p178 = por %p176, %p177
      %p180 = scmp.ne.s32.totalorder %s163, %s179
      %p181 = scmp.eq.s32.totalorder %s39, 0
      %p182 = por %p180, %p181
      %s183 = ssub.s32 %s41, %s48
      %p184 = scmp.eq.s32.totalorder %s183, 0
      %s186 = sadd.s32 %s185, 1
      %s187 = scalar_select %p184, %s185, %s186
      %p190 = pneg %p184
      %p191 = scmp.eq.s32.totalorder %s33, 3
      %p192 = por %p190, %p191
      %p193 = scmp.ne.s32.totalorder %s185, %s188
      %p194 = scmp.eq.s32.totalorder %s33, 0
      %p195 = por %p193, %p194
      %p196 = scmp.ne.s32.totalorder %s185, %s188
      %p197 = scmp.eq.s32.totalorder %s38, 3
      %p198 = por %p196, %p197
      %p199 = scmp.ne.s32.totalorder %s188, %s189
      %p200 = scmp.eq.s32.totalorder %s38, 0
      %p201 = por %p199, %p200
      %p202 = scmp.ne.s32.totalorder %s188, %s189
      %p203 = scmp.eq.s32.totalorder %s39, 3
      %p204 = por %p202, %p203
      %p206 = scmp.ne.s32.totalorder %s189, %s205
      %p207 = scmp.eq.s32.totalorder %s39, 0
      %p208 = por %p206, %p207
      %s209 = ssub.s32 %s41, %s48
      %p210 = scmp.eq.s32.totalorder %s209, 0
      %s212 = sadd.s32 %s211, 1
      %s213 = scalar_select %p210, %s211, %s212
      %p216 = pneg %p210
      %p217 = scmp.eq.s32.totalorder %s33, 3
      %p218 = por %p216, %p217
      %p219 = scmp.ne.s32.totalorder %s211, %s214
      %p220 = scmp.eq.s32.totalorder %s33, 0
      %p221 = por %p219, %p220
      %p222 = scmp.ne.s32.totalorder %s211, %s214
      %p223 = scmp.eq.s32.totalorder %s38, 3
      %p224 = por %p222, %p223
      %p225 = scmp.ne.s32.totalorder %s214, %s215
      %p226 = scmp.eq.s32.totalorder %s38, 0
      %p227 = por %p225, %p226
      %p228 = scmp.ne.s32.totalorder %s214, %s215
      %p229 = scmp.eq.s32.totalorder %s39, 3
      %p230 = por %p228, %p229
      %p232 = scmp.ne.s32.totalorder %s215, %s231
      %p233 = scmp.eq.s32.totalorder %s39, 0
      %p234 = por %p232, %p233
      %s235 = ssub.s32 %s41, %s48
      %p236 = scmp.eq.s32.totalorder %s235, 0
      %s238 = sadd.s32 %s237, 1
      %s239 = scalar_select %p236, %s237, %s238
      %p242 = pneg %p236
      %p243 = scmp.eq.s32.totalorder %s33, 3
      %p244 = por %p242, %p243
      %p245 = scmp.ne.s32.totalorder %s237, %s240
      %p246 = scmp.eq.s32.totalorder %s33, 0
      %p247 = por %p245, %p246
      %p248 = scmp.ne.s32.totalorder %s237, %s240
      %p249 = scmp.eq.s32.totalorder %s38, 3
      %p250 = por %p248, %p249
      %p251 = scmp.ne.s32.totalorder %s240, %s241
      %p252 = scmp.eq.s32.totalorder %s38, 0
      %p253 = por %p251, %p252
      %p254 = scmp.ne.s32.totalorder %s240, %s241
      %p255 = scmp.eq.s32.totalorder %s39, 3
      %p256 = por %p254, %p255
      %p258 = scmp.ne.s32.totalorder %s241, %s257
      %p259 = scmp.eq.s32.totalorder %s39, 0
      %p260 = por %p258, %p259
      %s261 = ssub.s32 %s41, %s48
      %p262 = scmp.eq.s32.totalorder %s261, 0
      %s264 = sadd.s32 %s263, 1
      %s265 = scalar_select %p262, %s263, %s264
      %p268 = pneg %p262
      %p269 = scmp.eq.s32.totalorder %s33, 3
      %p270 = por %p268, %p269
      %p271 = scmp.ne.s32.totalorder %s263, %s266
      %p272 = scmp.eq.s32.totalorder %s33, 0
      %p273 = por %p271, %p272
      %p274 = scmp.ne.s32.totalorder %s263, %s266
      %p275 = scmp.eq.s32.totalorder %s38, 3
      %p276 = por %p274, %p275
      %p277 = scmp.ne.s32.totalorder %s266, %s267
      %p278 = scmp.eq.s32.totalorder %s38, 0
      %p279 = por %p277, %p278
      %p280 = scmp.ne.s32.totalorder %s266, %s267
      %p281 = scmp.eq.s32.totalorder %s39, 3
      %p282 = por %p280, %p281
      %p284 = scmp.ne.s32.totalorder %s267, %s283
      %p285 = scmp.eq.s32.totalorder %s39, 0
      %p286 = por %p284, %p285
      %s287 = ssub.s32 %s41, %s48
      %p288 = scmp.eq.s32.totalorder %s287, 0
      %s290 = sadd.s32 %s289, 1
      %s291 = scalar_select %p288, %s289, %s290
      %p294 = pneg %p288
      %p295 = scmp.eq.s32.totalorder %s33, 3
      %p296 = por %p294, %p295
      %p297 = scmp.ne.s32.totalorder %s289, %s292
      %p298 = scmp.eq.s32.totalorder %s33, 0
      %p299 = por %p297, %p298
      %p300 = scmp.ne.s32.totalorder %s289, %s292
      %p301 = scmp.eq.s32.totalorder %s38, 3
      %p302 = por %p300, %p301
      %p303 = scmp.ne.s32.totalorder %s292, %s293
      %p304 = scmp.eq.s32.totalorder %s38, 0
      %p305 = por %p303, %p304
      %p306 = scmp.ne.s32.totalorder %s292, %s293
      %p307 = scmp.eq.s32.totalorder %s39, 3
      %p308 = por %p306, %p307
      %p310 = scmp.ne.s32.totalorder %s293, %s309
      %p311 = scmp.eq.s32.totalorder %s39, 0
      %p312 = por %p310, %p311
      %s313 = ssub.s32 %s41, %s48
      %p314 = scmp.eq.s32.totalorder %s313, 0
      %s316 = sadd.s32 %s315, 1
      %s317 = scalar_select %p314, %s315, %s316
      %p320 = pneg %p314
      %p321 = scmp.eq.s32.totalorder %s33, 3
      %p322 = por %p320, %p321
      %p323 = scmp.ne.s32.totalorder %s315, %s318
      %p324 = scmp.eq.s32.totalorder %s33, 0
      %p325 = por %p323, %p324
      %p326 = scmp.ne.s32.totalorder %s315, %s318
      %p327 = scmp.eq.s32.totalorder %s38, 3
      %p328 = por %p326, %p327
      %p329 = scmp.ne.s32.totalorder %s318, %s319
      %p330 = scmp.eq.s32.totalorder %s38, 0
      %p331 = por %p329, %p330
      %p332 = scmp.ne.s32.totalorder %s318, %s319
      %p333 = scmp.eq.s32.totalorder %s39, 3
      %p334 = por %p332, %p333
      %p336 = scmp.ne.s32.totalorder %s319, %s335
      %p337 = scmp.eq.s32.totalorder %s39, 0
      %p338 = por %p336, %p337
      %s339 = ssub.s32 %s41, %s48
      %p340 = scmp.eq.s32.totalorder %s339, 0
      %s342 = sadd.s32 %s341, 1
      %s343 = scalar_select %p340, %s341, %s342
      %p346 = pneg %p340
      %p347 = scmp.eq.s32.totalorder %s33, 3
      %p348 = por %p346, %p347
      %p349 = scmp.ne.s32.totalorder %s341, %s344
      %p350 = scmp.eq.s32.totalorder %s33, 0
      %p351 = por %p349, %p350
      %p352 = scmp.ne.s32.totalorder %s341, %s344
      %p353 = scmp.eq.s32.totalorder %s38, 3
      %p354 = por %p352, %p353
      %p355 = scmp.ne.s32.totalorder %s344, %s345
      %p356 = scmp.eq.s32.totalorder %s38, 0
      %p357 = por %p355, %p356
      %p358 = scmp.ne.s32.totalorder %s344, %s345
      %p359 = scmp.eq.s32.totalorder %s39, 3
      %p360 = por %p358, %p359
      %p362 = scmp.ne.s32.totalorder %s345, %s361
      %p363 = scmp.eq.s32.totalorder %s39, 0
      %p364 = por %p362, %p363
      %s365 = ssub.s32 %s40, %s52
      %p366 = scmp.eq.s32.totalorder %s365, 0
      %s368 = sadd.s32 %s367, 1
      %s369 = scalar_select %p366, %s367, %s368
      %p372 = pneg %p366
      %p373 = scmp.eq.s32.totalorder %s33, 3
      %p374 = por %p372, %p373
      %p375 = scmp.ne.s32.totalorder %s367, %s370
      %p376 = scmp.eq.s32.totalorder %s33, 0
      %p377 = por %p375, %p376
      %p378 = scmp.ne.s32.totalorder %s367, %s370
      %p379 = scmp.eq.s32.totalorder %s38, 3
      %p380 = por %p378, %p379
      %p381 = scmp.ne.s32.totalorder %s370, %s371
      %p382 = scmp.eq.s32.totalorder %s38, 0
      %p383 = por %p381, %p382
      %p384 = scmp.ne.s32.totalorder %s370, %s371
      %p385 = scmp.eq.s32.totalorder %s39, 3
      %p386 = por %p384, %p385
      %p388 = scmp.ne.s32.totalorder %s371, %s387
      %p389 = scmp.eq.s32.totalorder %s39, 0
      %p390 = por %p388, %p389
      %p391 = scmp.le.s32.totalorder 1, %s33
      %p392 = scmp.lt.s32.totalorder %s33, 5
      %p393 = pnand %p391, %p392
      %p394 = pneg %p393
      // Predicated region
      $region9: #{transformer_forward.1} parent=5 // pred_check
        _
      $region10: #{transformer_forward.1} parent=5 // pred_check_branch
        %396 = sbr.rel (%p393) target = $region12
      $region11: #{transformer_forward.1} parent=5 // pred_region
        %s397 = ssub.s32 %s33, 1
      $region12: #{transformer_forward.1} parent=5 // pred_fallthru
        _
      %p398 = scmp.lt.s32.totalorder %s33, 4
      // Predicated region
      $region13: #{transformer_forward.1} parent=5 // pred_check
        %p399 = pneg %p398
      $region14: #{transformer_forward.1} parent=5 // pred_check_branch
        %401 = sbr.rel (%p399) target = $region16
      $region15: #{transformer_forward.1} parent=5 // pred_region
        // Predicated region
        $region17: #{transformer_forward.1} parent=15 // pred_check
          %p402 = pneg %p65
        $region18: #{transformer_forward.1} parent=15 // pred_check_branch
          %404 = sbr.rel (%p402) target = $region20
        $region19: #{transformer_forward.1} parent=15 // pred_region
          %s405 = sand.u32 %s55, 1
          %s406 = scalar_lea.sflag [#allocation4], %s405
          %s407 = sand.u32 %s55, 1
          %s408 = smul.addr %s407, 128
          %s409 = scalar_lea.vmem [#allocation3], %s408
          %s410 = smul.u32 16, %s40
          %s412 = ssub.s32 2048, 2048
          %413 = vsyncadd %s406, %s412
          %s414 = smul.addr %s410, 128
          %s415 = scalar_lea.hbm %s0, %s414
          %s416 = sshll.u32 %s409, 4
          %s417 = int_to_ptr.vmem [resolvable:$true] %s416
          %422 = dma.hbm_to_vmem [thread:$0]  %s415, 2048, %s417, %s406, 128, 128, 8
        $region20: #{transformer_forward.1} parent=15 // pred_fallthru
          _
        // Predicated region
        $region21: #{transformer_forward.1} parent=15 // pred_check
          %p423 = pneg %p91
        $region22: #{transformer_forward.1} parent=15 // pred_check_branch
          %425 = sbr.rel (%p423) target = $region24
        $region23: #{transformer_forward.1} parent=15 // pred_region
          %p426 = scmp.lt.s32.totalorder %s41, 1
          %s427 = scalar_select %p426, %s41, 1
          %s428 = scalar_lea.vmem %s1, %s427
        $region24: #{transformer_forward.1} parent=15 // pred_fallthru
          _
        // Predicated region
        $region25: #{transformer_forward.1} parent=15 // pred_check
          %p429 = pneg %p117
        $region26: #{transformer_forward.1} parent=15 // pred_check_branch
          %431 = sbr.rel (%p429) target = $region28
        $region27: #{transformer_forward.1} parent=15 // pred_region
          %s432 = sand.u32 %s33, 1
          %s433 = scalar_lea.sflag [#allocation7], %s432
          %s434 = sand.u32 %s107, 1
          %s435 = scalar_lea.vmem [#allocation6], %s434
          %s437 = ssub.s32 16, 16
          %438 = vsyncadd %s433, %s437
          %s439 = smul.addr %s41, 16
          %s440 = scalar_lea.hbm %s2, %s439
          %s442 = sshll.u32 %s435, 4
          %s443 = int_to_ptr.vmem [resolvable:$true] %s442
          %445 = dma.hbm_to_vmem [thread:$0]  %s440, 16, %s443, %s433
        $region28: #{transformer_forward.1} parent=15 // pred_fallthru
          _
        // Predicated region
        $region29: #{transformer_forward.1} parent=15 // pred_check
          %p446 = pneg %p143
        $region30: #{transformer_forward.1} parent=15 // pred_check_branch
          %448 = sbr.rel (%p446) target = $region32
        $region31: #{transformer_forward.1} parent=15 // pred_region
          %s449 = sand.u32 %s33, 1
          %s450 = scalar_lea.sflag [#allocation7], %s449
          %s451 = sand.u32 %s133, 1
          %s452 = smul.addr %s451, 192
          %s453 = scalar_lea.vmem [#allocation8], %s452
          %s455 = ssub.s32 3072, 3072
          %456 = vsyncadd %s450, %s455
          %s457 = smul.addr %s41, 48
          %s458 = smul.addr %s457, 64
          %s459 = scalar_lea.hbm %s3, %s458
          %s460 = sshll.u32 %s453, 4
          %s461 = int_to_ptr.vmem [resolvable:$true] %s460
          %466 = dma.hbm_to_vmem [thread:$0]  %s459, 3072, %s461, %s450, 192, 192, 12
        $region32: #{transformer_forward.1} parent=15 // pred_fallthru
          _
        // Predicated region
        $region33: #{transformer_forward.1} parent=15 // pred_check
          %p467 = pneg %p169
        $region34: #{transformer_forward.1} parent=15 // pred_check_branch
          %469 = sbr.rel (%p467) target = $region36
        $region35: #{transformer_forward.1} parent=15 // pred_region
          %s470 = sand.u32 %s33, 1
          %s471 = scalar_lea.sflag [#allocation10], %s470
          %s472 = sand.u32 %s159, 1
          %s473 = smul.addr %s472, 64
          %s474 = scalar_lea.vmem [#allocation9], %s473
          %s476 = ssub.s32 1024, 1024
          %477 = vsyncadd %s471, %s476
          %s478 = smul.addr %s41, 16
          %s479 = smul.addr %s478, 64
          %s480 = scalar_lea.hbm %s4, %s479
          %s481 = sshll.u32 %s474, 4
          %s482 = int_to_ptr.vmem [resolvable:$true] %s481
          %487 = dma.hbm_to_vmem [thread:$0]  %s480, 1024, %s482, %s471, 64, 64, 4
        $region36: #{transformer_forward.1} parent=15 // pred_fallthru
          _
        // Predicated region
        $region37: #{transformer_forward.1} parent=15 // pred_check
          %p488 = pneg %p195
        $region38: #{transformer_forward.1} parent=15 // pred_check_branch
          %490 = sbr.rel (%p488) target = $region40
        $region39: #{transformer_forward.1} parent=15 // pred_region
          %p491 = scmp.lt.s32.totalorder %s41, 1
          %s492 = scalar_select %p491, %s41, 1
          %s493 = scalar_lea.vmem %s5, %s492
        $region40: #{transformer_forward.1} parent=15 // pred_fallthru
          _
        // Predicated region
        $region41: #{transformer_forward.1} parent=15 // pred_check
          %p494 = pneg %p221
        $region42: #{transformer_forward.1} parent=15 // pred_check_branch
          %496 = sbr.rel (%p494) target = $region44
        $region43: #{transformer_forward.1} parent=15 // pred_region
          %p497 = scmp.lt.s32.totalorder %s41, 1
          %s498 = scalar_select %p497, %s41, 1
          %s499 = scalar_lea.vmem %s6, %s498
        $region44: #{transformer_forward.1} parent=15 // pred_fallthru
          _
        // Predicated region
        $region45: #{transformer_forward.1} parent=15 // pred_check
          %p500 = pneg %p247
        $region46: #{transformer_forward.1} parent=15 // pred_check_branch
          %502 = sbr.rel (%p500) target = $region48
        $region47: #{transformer_forward.1} parent=15 // pred_region
          %s503 = sand.u32 %s33, 1
          %s504 = scalar_lea.sflag [#allocation10], %s503
          %s505 = sand.u32 %s237, 1
          %s506 = scalar_lea.vmem [#allocation11], %s505
          %s508 = ssub.s32 16, 16
          %509 = vsyncadd %s504, %s508
          %s510 = smul.addr %s41, 16
          %s511 = scalar_lea.hbm %s7, %s510
          %s513 = sshll.u32 %s506, 4
          %s514 = int_to_ptr.vmem [resolvable:$true] %s513
          %516 = dma.hbm_to_vmem [thread:$0]  %s511, 16, %s514, %s504
        $region48: #{transformer_forward.1} parent=15 // pred_fallthru
          _
        // Predicated region
        $region49: #{transformer_forward.1} parent=15 // pred_check
          %p517 = pneg %p273
        $region50: #{transformer_forward.1} parent=15 // pred_check_branch
          %519 = sbr.rel (%p517) target = $region52
        $region51: #{transformer_forward.1} parent=15 // pred_region
          %s520 = sand.u32 %s33, 1
          %s521 = scalar_lea.sflag [#allocation13], %s520
          %s522 = sand.u32 %s263, 1
          %s523 = smul.addr %s522, 128
          %s524 = scalar_lea.vmem [#allocation12], %s523
          %s526 = ssub.s32 2048, 2048
          %527 = vsyncadd %s521, %s526
          %s528 = smul.addr %s41, 32
          %s529 = smul.addr %s528, 64
          %s530 = scalar_lea.hbm %s8, %s529
          %s531 = sshll.u32 %s524, 4
          %s532 = int_to_ptr.vmem [resolvable:$true] %s531
          %537 = dma.hbm_to_vmem [thread:$0]  %s530, 2048, %s532, %s521, 128, 128, 8
        $region52: #{transformer_forward.1} parent=15 // pred_fallthru
          _
        // Predicated region
        $region53: #{transformer_forward.1} parent=15 // pred_check
          %p538 = pneg %p299
        $region54: #{transformer_forward.1} parent=15 // pred_check_branch
          %540 = sbr.rel (%p538) target = $region56
        $region55: #{transformer_forward.1} parent=15 // pred_region
          %p541 = scmp.lt.s32.totalorder %s41, 1
          %s542 = scalar_select %p541, %s41, 1
          %s543 = smul.addr %s542, 2
          %s544 = scalar_lea.vmem %s9, %s543
        $region56: #{transformer_forward.1} parent=15 // pred_fallthru
          _
        // Predicated region
        $region57: #{transformer_forward.1} parent=15 // pred_check
          %p545 = pneg %p325
        $region58: #{transformer_forward.1} parent=15 // pred_check_branch
          %547 = sbr.rel (%p545) target = $region60
        $region59: #{transformer_forward.1} parent=15 // pred_region
          %s548 = sand.u32 %s33, 1
          %s549 = scalar_lea.sflag [#allocation13], %s548
          %s550 = sand.u32 %s315, 1
          %s551 = smul.addr %s550, 128
          %s552 = scalar_lea.vmem [#allocation14], %s551
          %s554 = ssub.s32 2048, 2048
          %555 = vsyncadd %s549, %s554
          %s556 = smul.addr %s41, 32
          %s557 = smul.addr %s556, 64
          %s558 = scalar_lea.hbm %s10, %s557
          %s559 = sshll.u32 %s552, 4
          %s560 = int_to_ptr.vmem [resolvable:$true] %s559
          %565 = dma.hbm_to_vmem [thread:$0]  %s558, 2048, %s560, %s549, 64, 64, 4
        $region60: #{transformer_forward.1} parent=15 // pred_fallthru
          _
        // Predicated region
        $region61: #{transformer_forward.1} parent=15 // pred_check
          %p566 = pneg %p351
        $region62: #{transformer_forward.1} parent=15 // pred_check_branch
          %568 = sbr.rel (%p566) target = $region64
        $region63: #{transformer_forward.1} parent=15 // pred_region
          %p569 = scmp.lt.s32.totalorder %s41, 1
          %s570 = scalar_select %p569, %s41, 1
          %s571 = scalar_lea.vmem %s11, %s570
        $region64: #{transformer_forward.1} parent=15 // pred_fallthru
          _
      $region16: #{transformer_forward.1} parent=5 // pred_fallthru
        _
      %p572 = scmp.le.s32.totalorder 1, %s33
      %p573 = scmp.lt.s32.totalorder %s33, 5
      %p574 = pnand %p572, %p573
      %p575 = pneg %p574
      // Predicated region
      $region65: #{transformer_forward.1} parent=5 // pred_check
        _
      $region66: #{transformer_forward.1} parent=5 // pred_check_branch
        %577 = sbr.rel (%p574) target = $region68
      $region67: #{transformer_forward.1} parent=5 // pred_region
        %s578 = ssub.s32 %s33, 1
        %s579 = sand.u32 %s58, 1
        %s580 = scalar_lea.sflag [#allocation4], %s579
        %s581 = sand.u32 %s58, 1
        %s582 = smul.addr %s581, 128
        %s583 = scalar_lea.vmem [#allocation3], %s582
        // Predicated region
        $region69: #{transformer_forward.1} parent=67 // pred_check
          %p584 = pneg %p71
        $region70: #{transformer_forward.1} parent=67 // pred_check_branch
          %586 = sbr.rel (%p584) target = $region72
        $region71: #{transformer_forward.1} parent=67 // pred_region
          %587 = dma.done %s580, 2048
        $region72: #{transformer_forward.1} parent=67 // pred_fallthru
          _
        %s588 = sand.u32 %s38, 1
        %s589 = scalar_lea.sflag [#allocation7], %s588
        %s590 = sand.u32 %s110, 1
        %s591 = scalar_lea.vmem [#allocation6], %s590
        // Predicated region
        $region73: #{transformer_forward.1} parent=67 // pred_check
          %p592 = pneg %p123
        $region74: #{transformer_forward.1} parent=67 // pred_check_branch
          %594 = sbr.rel (%p592) target = $region76
        $region75: #{transformer_forward.1} parent=67 // pred_region
          %595 = dma.done %s589, 16
        $region76: #{transformer_forward.1} parent=67 // pred_fallthru
          _
        %s596 = sand.u32 %s38, 1
        %s597 = scalar_lea.sflag [#allocation7], %s596
        %s598 = sand.u32 %s136, 1
        %s599 = smul.addr %s598, 192
        %s600 = scalar_lea.vmem [#allocation8], %s599
        // Predicated region
        $region77: #{transformer_forward.1} parent=67 // pred_check
          %p601 = pneg %p149
        $region78: #{transformer_forward.1} parent=67 // pred_check_branch
          %603 = sbr.rel (%p601) target = $region80
        $region79: #{transformer_forward.1} parent=67 // pred_region
          %604 = dma.done %s597, 3072
        $region80: #{transformer_forward.1} parent=67 // pred_fallthru
          _
        %s605 = sand.u32 %s38, 1
        %s606 = scalar_lea.sflag [#allocation10], %s605
        %s607 = sand.u32 %s162, 1
        %s608 = smul.addr %s607, 64
        %s609 = scalar_lea.vmem [#allocation9], %s608
        // Predicated region
        $region81: #{transformer_forward.1} parent=67 // pred_check
          %p610 = pneg %p175
        $region82: #{transformer_forward.1} parent=67 // pred_check_branch
          %612 = sbr.rel (%p610) target = $region84
        $region83: #{transformer_forward.1} parent=67 // pred_region
          %613 = dma.done %s606, 1024
        $region84: #{transformer_forward.1} parent=67 // pred_fallthru
          _
        %s614 = sand.u32 %s38, 1
        %s615 = scalar_lea.sflag [#allocation10], %s614
        %s616 = sand.u32 %s240, 1
        %s617 = scalar_lea.vmem [#allocation11], %s616
        // Predicated region
        $region85: #{transformer_forward.1} parent=67 // pred_check
          %p618 = pneg %p253
        $region86: #{transformer_forward.1} parent=67 // pred_check_branch
          %620 = sbr.rel (%p618) target = $region88
        $region87: #{transformer_forward.1} parent=67 // pred_region
          %621 = dma.done %s615, 16
        $region88: #{transformer_forward.1} parent=67 // pred_fallthru
          _
        %s622 = sand.u32 %s38, 1
        %s623 = scalar_lea.sflag [#allocation13], %s622
        %s624 = sand.u32 %s266, 1
        %s625 = smul.addr %s624, 128
        %s626 = scalar_lea.vmem [#allocation12], %s625
        // Predicated region
        $region89: #{transformer_forward.1} parent=67 // pred_check
          %p627 = pneg %p279
        $region90: #{transformer_forward.1} parent=67 // pred_check_branch
          %629 = sbr.rel (%p627) target = $region92
        $region91: #{transformer_forward.1} parent=67 // pred_region
          %630 = dma.done %s623, 2048
        $region92: #{transformer_forward.1} parent=67 // pred_fallthru
          _
        %s631 = sand.u32 %s38, 1
        %s632 = scalar_lea.sflag [#allocation13], %s631
        %s633 = sand.u32 %s318, 1
        %s634 = smul.addr %s633, 128
        %s635 = scalar_lea.vmem [#allocation14], %s634
        // Predicated region
        $region93: #{transformer_forward.1} parent=67 // pred_check
          %p636 = pneg %p331
        $region94: #{transformer_forward.1} parent=67 // pred_check_branch
          %638 = sbr.rel (%p636) target = $region96
        $region95: #{transformer_forward.1} parent=67 // pred_region
          %639 = dma.done %s632, 2048
        $region96: #{transformer_forward.1} parent=67 // pred_fallthru
          _
        %s640 = sand.u32 %s58, 1
        %s641 = scalar_lea.sflag [#allocation4], %s640
        %s642 = sand.u32 %s58, 1
        %s643 = smul.addr %s642, 128
        %s644 = scalar_lea.vmem [#allocation3], %s643
        %p645 = pneg %p71
        %p646 = pneg %p68
        %p647 = scmp.lt.s32.totalorder %s43, 1
        %s648 = scalar_select %p647, %s43, 1
        %s649 = scalar_lea.vmem %s1, %s648
        %p650 = pneg %p97
        %p651 = pneg %p94
        %s652 = sand.u32 %s38, 1
        %s653 = scalar_lea.sflag [#allocation7], %s652
        %s654 = sand.u32 %s110, 1
        %s655 = scalar_lea.vmem [#allocation6], %s654
        %p656 = pneg %p123
        %p657 = pneg %p120
        %s658 = sand.u32 %s38, 1
        %s659 = scalar_lea.sflag [#allocation7], %s658
        %s660 = sand.u32 %s136, 1
        %s661 = smul.addr %s660, 192
        %s662 = scalar_lea.vmem [#allocation8], %s661
        %p663 = pneg %p149
        %p664 = pneg %p146
        %s665 = sand.u32 %s38, 1
        %s666 = scalar_lea.sflag [#allocation10], %s665
        %s667 = sand.u32 %s162, 1
        %s668 = smul.addr %s667, 64
        %s669 = scalar_lea.vmem [#allocation9], %s668
        %p670 = pneg %p175
        %p671 = pneg %p172
        %p672 = scmp.lt.s32.totalorder %s43, 1
        %s673 = scalar_select %p672, %s43, 1
        %s674 = scalar_lea.vmem %s5, %s673
        %p675 = pneg %p201
        %p676 = pneg %p198
        %p677 = scmp.lt.s32.totalorder %s43, 1
        %s678 = scalar_select %p677, %s43, 1
        %s679 = scalar_lea.vmem %s6, %s678
        %p680 = pneg %p227
        %p681 = pneg %p224
        %s682 = sand.u32 %s38, 1
        %s683 = scalar_lea.sflag [#allocation10], %s682
        %s684 = sand.u32 %s240, 1
        %s685 = scalar_lea.vmem [#allocation11], %s684
        %p686 = pneg %p253
        %p687 = pneg %p250
        %s688 = sand.u32 %s38, 1
        %s689 = scalar_lea.sflag [#allocation13], %s688
        %s690 = sand.u32 %s266, 1
        %s691 = smul.addr %s690, 128
        %s692 = scalar_lea.vmem [#allocation12], %s691
        %p693 = pneg %p279
        %p694 = pneg %p276
        %p695 = scmp.lt.s32.totalorder %s43, 1
        %s696 = scalar_select %p695, %s43, 1
        %s697 = smul.addr %s696, 2
        %s698 = scalar_lea.vmem %s9, %s697
        %p699 = pneg %p305
        %p700 = pneg %p302
        %s701 = sand.u32 %s38, 1
        %s702 = scalar_lea.sflag [#allocation13], %s701
        %s703 = sand.u32 %s318, 1
        %s704 = smul.addr %s703, 128
        %s705 = scalar_lea.vmem [#allocation14], %s704
        %p706 = pneg %p331
        %p707 = pneg %p328
        %p708 = scmp.lt.s32.totalorder %s43, 1
        %s709 = scalar_select %p708, %s43, 1
        %s710 = scalar_lea.vmem %s11, %s709
        %p711 = pneg %p357
        %p712 = pneg %p354
        %p713 = pneg %p383
        %p714 = pneg %p380
        %s715 = sand.u32 %s370, 1
        %s716 = scalar_lea.sflag [#allocation5], %s715
        %s717 = sand.u32 %s370, 1
        %s718 = smul.addr %s717, 128
        %s719 = scalar_lea.vmem [#allocation15], %s718
        %s720 = smul.u32 16, %s42
        %p721 = scmp.lt.s32.totalorder %s43, 1
        %s722 = scalar_select %p721, %s43, 1
        %s723 = scalar_lea.vmem %s1, %s722
        %p724 = scmp.lt.s32.totalorder %s43, 1
        %s725 = scalar_select %p724, %s43, 1
        %s726 = scalar_lea.vmem %s5, %s725
        %p727 = scmp.lt.s32.totalorder %s43, 1
        %s728 = scalar_select %p727, %s43, 1
        %s729 = scalar_lea.vmem %s6, %s728
        %p730 = scmp.lt.s32.totalorder %s43, 1
        %s731 = scalar_select %p730, %s43, 1
        %s732 = smul.addr %s731, 2
        %s733 = scalar_lea.vmem %s9, %s732
        %p734 = scmp.lt.s32.totalorder %s43, 1
        %s735 = scalar_select %p734, %s43, 1
        %s736 = scalar_lea.vmem %s11, %s735
        %s737 = smul.u32 16, %s42
        %p739 = scmp.eq.s32.totalorder %s43, 0
        // Predicated region
        $region97: #{transformer_forward.1} parent=67 // pred_check
          %p740 = pneg %p739
        $region98: #{transformer_forward.1} parent=67 // pred_check_branch
          %742 = sbr.rel (%p740) target = $region100
        $region99: #{transformer_forward.1} parent=67 // pred_region
          %v743 = vld [vmem:[%s583] sm:$0xff]
          %v744 = vld [vmem:[%s583 + $0x8] sm:$0xff]
          %v745 = vld [vmem:[%s583 + $0x10] sm:$0xff]
          %v746 = vld [vmem:[%s583 + $0x18] sm:$0xff]
          %v747 = vld [vmem:[%s583 + $0x20] sm:$0xff]
          %v748 = vld [vmem:[%s583 + $0x28] sm:$0xff]
          %v749 = vld [vmem:[%s583 + $0x30] sm:$0xff]
          %v750 = vld [vmem:[%s583 + $0x38] sm:$0xff]
          %v751 = vld [vmem:[%s583 + $0x40] sm:$0xff]
          %v752 = vld [vmem:[%s583 + $0x48] sm:$0xff]
          %v753 = vld [vmem:[%s583 + $0x50] sm:$0xff]
          %v754 = vld [vmem:[%s583 + $0x58] sm:$0xff]
          %v755 = vld [vmem:[%s583 + $0x60] sm:$0xff]
          %v756 = vld [vmem:[%s583 + $0x68] sm:$0xff]
          %v757 = vld [vmem:[%s583 + $0x70] sm:$0xff]
          %v758 = vld [vmem:[%s583 + $0x78] sm:$0xff]
          %759 = vst [vmem:[#allocation2] sm:$0xff] %v743
          %760 = vst [vmem:[#allocation2 + $0x8] sm:$0xff] %v744
          %761 = vst [vmem:[#allocation2 + $0x10] sm:$0xff] %v745
          %762 = vst [vmem:[#allocation2 + $0x18] sm:$0xff] %v746
          %763 = vst [vmem:[#allocation2 + $0x20] sm:$0xff] %v747
          %764 = vst [vmem:[#allocation2 + $0x28] sm:$0xff] %v748
          %765 = vst [vmem:[#allocation2 + $0x30] sm:$0xff] %v749
          %766 = vst [vmem:[#allocation2 + $0x38] sm:$0xff] %v750
          %767 = vst [vmem:[#allocation2 + $0x40] sm:$0xff] %v751
          %768 = vst [vmem:[#allocation2 + $0x48] sm:$0xff] %v752
          %769 = vst [vmem:[#allocation2 + $0x50] sm:$0xff] %v753
          %770 = vst [vmem:[#allocation2 + $0x58] sm:$0xff] %v754
          %771 = vst [vmem:[#allocation2 + $0x60] sm:$0xff] %v755
          %772 = vst [vmem:[#allocation2 + $0x68] sm:$0xff] %v756
          %773 = vst [vmem:[#allocation2 + $0x70] sm:$0xff] %v757
          %774 = vst [vmem:[#allocation2 + $0x78] sm:$0xff] %v758
        $region100: #{transformer_forward.1} parent=67 // pred_fallthru
          _
        %v775 = vld [vmem:[#allocation2] sm:$0xff]
        %v776 = vld [vmem:[#allocation2 + $0x8] sm:$0xff]
        %v777 = vld [vmem:[#allocation2 + $0x10] sm:$0xff]
        %v778 = vld [vmem:[#allocation2 + $0x18] sm:$0xff]
        %v779 = vld [vmem:[#allocation2 + $0x20] sm:$0xff]
        %v780 = vld [vmem:[#allocation2 + $0x28] sm:$0xff]
        %v781 = vld [vmem:[#allocation2 + $0x30] sm:$0xff]
        %v782 = vld [vmem:[#allocation2 + $0x38] sm:$0xff]
        %v783 = vld [vmem:[#allocation2 + $0x40] sm:$0xff]
        %v784 = vld [vmem:[#allocation2 + $0x48] sm:$0xff]
        %v785 = vld [vmem:[#allocation2 + $0x50] sm:$0xff]
        %v786 = vld [vmem:[#allocation2 + $0x58] sm:$0xff]
        %v787 = vld [vmem:[#allocation2 + $0x60] sm:$0xff]
        %v788 = vld [vmem:[#allocation2 + $0x68] sm:$0xff]
        %v789 = vld [vmem:[#allocation2 + $0x70] sm:$0xff]
        %v790 = vld [vmem:[#allocation2 + $0x78] sm:$0xff]
        %v791 = vld [vmem:[%s723] sm:$0x1]
        %v792 = vld [vmem:[%s591] sm:$0x1]
        %793 = vadd.xlane.f32.xlu0 %v775
        %v794 = vpop.xlane.xlu0 %793
        %795 = vadd.xlane.f32.xlu0 %v776
        %v796 = vpop.xlane.xlu0 %795
        %797 = vadd.xlane.f32.xlu0 %v777
        %v798 = vpop.xlane.xlu0 %797
        %799 = vadd.xlane.f32.xlu0 %v778
        %v800 = vpop.xlane.xlu0 %799
        %801 = vadd.xlane.f32.xlu0 %v779
        %v802 = vpop.xlane.xlu0 %801
        %803 = vadd.xlane.f32.xlu0 %v780
        %v804 = vpop.xlane.xlu0 %803
        %805 = vadd.xlane.f32.xlu0 %v781
        %v806 = vpop.xlane.xlu0 %805
        %807 = vadd.xlane.f32.xlu0 %v782
        %v808 = vpop.xlane.xlu0 %807
        %809 = vadd.xlane.f32.xlu0 %v783
        %v810 = vpop.xlane.xlu0 %809
        %811 = vadd.xlane.f32.xlu0 %v784
        %v812 = vpop.xlane.xlu0 %811
        %813 = vadd.xlane.f32.xlu0 %v785
        %v814 = vpop.xlane.xlu0 %813
        %815 = vadd.xlane.f32.xlu0 %v786
        %v816 = vpop.xlane.xlu0 %815
        %817 = vadd.xlane.f32.xlu0 %v787
        %v818 = vpop.xlane.xlu0 %817
        %819 = vadd.xlane.f32.xlu0 %v788
        %v820 = vpop.xlane.xlu0 %819
        %821 = vadd.xlane.f32.xlu0 %v789
        %v822 = vpop.xlane.xlu0 %821
        %823 = vadd.xlane.f32.xlu0 %v790
        %v824 = vpop.xlane.xlu0 %823
        %v825 = vrcp.pop 128.0
        %v826 = vmul.f32 %v794, %v825
        %v827 = vmul.f32 %v796, %v825
        %v828 = vmul.f32 %v798, %v825
        %v829 = vmul.f32 %v800, %v825
        %v830 = vmul.f32 %v802, %v825
        %v831 = vmul.f32 %v804, %v825
        %v832 = vmul.f32 %v806, %v825
        %v833 = vmul.f32 %v808, %v825
        %v834 = vmul.f32 %v810, %v825
        %v835 = vmul.f32 %v812, %v825
        %v836 = vmul.f32 %v814, %v825
        %v837 = vmul.f32 %v816, %v825
        %v838 = vmul.f32 %v818, %v825
        %v839 = vmul.f32 %v820, %v825
        %v840 = vmul.f32 %v822, %v825
        %v841 = vmul.f32 %v824, %v825
        %v842 = vsub.f32 %v775, %v826
        %v843 = vsub.f32 %v776, %v827
        %v844 = vsub.f32 %v777, %v828
        %v845 = vsub.f32 %v778, %v829
        %v846 = vsub.f32 %v779, %v830
        %v847 = vsub.f32 %v780, %v831
        %v848 = vsub.f32 %v781, %v832
        %v849 = vsub.f32 %v782, %v833
        %v850 = vsub.f32 %v783, %v834
        %v851 = vsub.f32 %v784, %v835
        %v852 = vsub.f32 %v785, %v836
        %v853 = vsub.f32 %v786, %v837
        %v854 = vsub.f32 %v787, %v838
        %v855 = vsub.f32 %v788, %v839
        %v856 = vsub.f32 %v789, %v840
        %v857 = vsub.f32 %v790, %v841
        %v858 = vmul.f32 %v842, %v842
        %v859 = vmul.f32 %v843, %v843
        %v860 = vmul.f32 %v844, %v844
        %v861 = vmul.f32 %v845, %v845
        %v862 = vmul.f32 %v846, %v846
        %v863 = vmul.f32 %v847, %v847
        %v864 = vmul.f32 %v848, %v848
        %v865 = vmul.f32 %v849, %v849
        %v866 = vmul.f32 %v850, %v850
        %v867 = vmul.f32 %v851, %v851
        %v868 = vmul.f32 %v852, %v852
        %v869 = vmul.f32 %v853, %v853
        %v870 = vmul.f32 %v854, %v854
        %v871 = vmul.f32 %v855, %v855
        %v872 = vmul.f32 %v856, %v856
        %v873 = vmul.f32 %v857, %v857
        %874 = vadd.xlane.f32.xlu0 %v858
        %v875 = vpop.xlane.xlu0 %874
        %876 = vadd.xlane.f32.xlu0 %v859
        %v877 = vpop.xlane.xlu0 %876
        %878 = vadd.xlane.f32.xlu0 %v860
        %v879 = vpop.xlane.xlu0 %878
        %880 = vadd.xlane.f32.xlu0 %v861
        %v881 = vpop.xlane.xlu0 %880
        %882 = vadd.xlane.f32.xlu0 %v862
        %v883 = vpop.xlane.xlu0 %882
        %884 = vadd.xlane.f32.xlu0 %v863
        %v885 = vpop.xlane.xlu0 %884
        %886 = vadd.xlane.f32.xlu0 %v864
        %v887 = vpop.xlane.xlu0 %886
        %888 = vadd.xlane.f32.xlu0 %v865
        %v889 = vpop.xlane.xlu0 %888
        %890 = vadd.xlane.f32.xlu0 %v866
        %v891 = vpop.xlane.xlu0 %890
        %892 = vadd.xlane.f32.xlu0 %v867
        %v893 = vpop.xlane.xlu0 %892
        %894 = vadd.xlane.f32.xlu0 %v868
        %v895 = vpop.xlane.xlu0 %894
        %896 = vadd.xlane.f32.xlu0 %v869
        %v897 = vpop.xlane.xlu0 %896
        %898 = vadd.xlane.f32.xlu0 %v870
        %v899 = vpop.xlane.xlu0 %898
        %900 = vadd.xlane.f32.xlu0 %v871
        %v901 = vpop.xlane.xlu0 %900
        %902 = vadd.xlane.f32.xlu0 %v872
        %v903 = vpop.xlane.xlu0 %902
        %904 = vadd.xlane.f32.xlu0 %v873
        %v905 = vpop.xlane.xlu0 %904
        %v906 = vmul.f32 %v875, %v825
        %v907 = vmul.f32 %v877, %v825
        %v908 = vmul.f32 %v879, %v825
        %v909 = vmul.f32 %v881, %v825
        %v910 = vmul.f32 %v883, %v825
        %v911 = vmul.f32 %v885, %v825
        %v912 = vmul.f32 %v887, %v825
        %v913 = vmul.f32 %v889, %v825
        %v914 = vmul.f32 %v891, %v825
        %v915 = vmul.f32 %v893, %v825
        %v916 = vmul.f32 %v895, %v825
        %v917 = vmul.f32 %v897, %v825
        %v918 = vmul.f32 %v899, %v825
        %v919 = vmul.f32 %v901, %v825
        %v920 = vmul.f32 %v903, %v825
        %v921 = vmul.f32 %v905, %v825
        %v922 = vadd.f32 %v906, 1e-05
        %v923 = vadd.f32 %v907, 1e-05
        %v924 = vadd.f32 %v908, 1e-05
        %v925 = vadd.f32 %v909, 1e-05
        %v926 = vadd.f32 %v910, 1e-05
        %v927 = vadd.f32 %v911, 1e-05
        %v928 = vadd.f32 %v912, 1e-05
        %v929 = vadd.f32 %v913, 1e-05
        %v930 = vadd.f32 %v914, 1e-05
        %v931 = vadd.f32 %v915, 1e-05
        %v932 = vadd.f32 %v916, 1e-05
        %v933 = vadd.f32 %v917, 1e-05
        %v934 = vadd.f32 %v918, 1e-05
        %v935 = vadd.f32 %v919, 1e-05
        %v936 = vadd.f32 %v920, 1e-05
        %v937 = vadd.f32 %v921, 1e-05
        %v938 = vrsqrt.pop %v922
        %v939 = vrsqrt.pop %v923
        %v940 = vrsqrt.pop %v924
        %v941 = vrsqrt.pop %v925
        %v942 = vrsqrt.pop %v926
        %v943 = vrsqrt.pop %v927
        %v944 = vrsqrt.pop %v928
        %v945 = vrsqrt.pop %v929
        %v946 = vrsqrt.pop %v930
        %v947 = vrsqrt.pop %v931
        %v948 = vrsqrt.pop %v932
        %v949 = vrsqrt.pop %v933
        %v950 = vrsqrt.pop %v934
        %v951 = vrsqrt.pop %v935
        %v952 = vrsqrt.pop %v936
        %v953 = vrsqrt.pop %v937
        %v954 = vmul.f32 %v842, %v938
        %v955 = vmul.f32 %v843, %v939
        %v956 = vmul.f32 %v844, %v940
        %v957 = vmul.f32 %v845, %v941
        %v958 = vmul.f32 %v846, %v942
        %v959 = vmul.f32 %v847, %v943
        %v960 = vmul.f32 %v848, %v944
        %v961 = vmul.f32 %v849, %v945
        %v962 = vmul.f32 %v850, %v946
        %v963 = vmul.f32 %v851, %v947
        %v964 = vmul.f32 %v852, %v948
        %v965 = vmul.f32 %v853, %v949
        %v966 = vmul.f32 %v854, %v950
        %v967 = vmul.f32 %v855, %v951
        %v968 = vmul.f32 %v856, %v952
        %v969 = vmul.f32 %v857, %v953
        %v971 = vlaneseq
        %v972 = vshrl.u32 %v971, 7
        %v973 = vsub.s32 0, %v972
        %v974 = vrot.slane %v791, %v973
        %v976 = vmul.f32 %v954, %v974
        %v977 = vmul.f32 %v955, %v974
        %v978 = vmul.f32 %v956, %v974
        %v979 = vmul.f32 %v957, %v974
        %v980 = vmul.f32 %v958, %v974
        %v981 = vmul.f32 %v959, %v974
        %v982 = vmul.f32 %v960, %v974
        %v983 = vmul.f32 %v961, %v974
        %v984 = vmul.f32 %v962, %v974
        %v985 = vmul.f32 %v963, %v974
        %v986 = vmul.f32 %v964, %v974
        %v987 = vmul.f32 %v965, %v974
        %v988 = vmul.f32 %v966, %v974
        %v989 = vmul.f32 %v967, %v974
        %v990 = vmul.f32 %v968, %v974
        %v991 = vmul.f32 %v969, %v974
        %v993 = vlaneseq
        %v994 = vshrl.u32 %v993, 7
        %v995 = vsub.s32 0, %v994
        %v996 = vrot.slane %v792, %v995
        %v998 = vadd.f32 %v976, %v996
        %v999 = vadd.f32 %v977, %v996
        %v1000 = vadd.f32 %v978, %v996
        %v1001 = vadd.f32 %v979, %v996
        %v1002 = vadd.f32 %v980, %v996
        %v1003 = vadd.f32 %v981, %v996
        %v1004 = vadd.f32 %v982, %v996
        %v1005 = vadd.f32 %v983, %v996
        %v1006 = vadd.f32 %v984, %v996
        %v1007 = vadd.f32 %v985, %v996
        %v1008 = vadd.f32 %v986, %v996
        %v1009 = vadd.f32 %v987, %v996
        %v1010 = vadd.f32 %v988, %v996
        %v1011 = vadd.f32 %v989, %v996
        %v1012 = vadd.f32 %v990, %v996
        %v1013 = vadd.f32 %v991, %v996
        %v1014 = vpack.c.bf16 %v999, %v998
        %v1015 = vpack.c.bf16 %v1001, %v1000
        %v1016 = vpack.c.bf16 %v1003, %v1002
        %v1017 = vpack.c.bf16 %v1005, %v1004
        %v1018 = vpack.c.bf16 %v1007, %v1006
        %v1019 = vpack.c.bf16 %v1009, %v1008
        %v1020 = vpack.c.bf16 %v1011, %v1010
        %v1021 = vpack.c.bf16 %v1013, %v1012
        %v1022 = vld [vmem:[%s600] sm:$0xff]
        %v1023 = vld [vmem:[%s600 + $0x8] sm:$0xf]
        %v1024 = vld [vmem:[%s600 + $0xc] sm:$0xff]
        %v1025 = vld [vmem:[%s600 + $0x14] sm:$0xf]
        %v1026 = vld [vmem:[%s600 + $0x18] sm:$0xff]
        %v1027 = vld [vmem:[%s600 + $0x20] sm:$0xf]
        %v1028 = vld [vmem:[%s600 + $0x24] sm:$0xff]
        %v1029 = vld [vmem:[%s600 + $0x2c] sm:$0xf]
        %v1030 = vld [vmem:[%s600 + $0x30] sm:$0xff]
        %v1031 = vld [vmem:[%s600 + $0x38] sm:$0xf]
        %v1032 = vld [vmem:[%s600 + $0x3c] sm:$0xff]
        %v1033 = vld [vmem:[%s600 + $0x44] sm:$0xf]
        %v1034 = vld [vmem:[%s600 + $0x48] sm:$0xff]
        %v1035 = vld [vmem:[%s600 + $0x50] sm:$0xf]
        %v1036 = vld [vmem:[%s600 + $0x54] sm:$0xff]
        %v1037 = vld [vmem:[%s600 + $0x5c] sm:$0xf]
        %v1038 = vld [vmem:[%s600 + $0x60] sm:$0xff]
        %v1039 = vld [vmem:[%s600 + $0x68] sm:$0xf]
        %v1040 = vld [vmem:[%s600 + $0x6c] sm:$0xff]
        %v1041 = vld [vmem:[%s600 + $0x74] sm:$0xf]
        %v1042 = vld [vmem:[%s600 + $0x78] sm:$0xff]
        %v1043 = vld [vmem:[%s600 + $0x80] sm:$0xf]
        %v1044 = vld [vmem:[%s600 + $0x84] sm:$0xff]
        %v1045 = vld [vmem:[%s600 + $0x8c] sm:$0xf]
        %v1046 = vld [vmem:[%s600 + $0x90] sm:$0xff]
        %v1047 = vld [vmem:[%s600 + $0x98] sm:$0xf]
        %v1048 = vld [vmem:[%s600 + $0x9c] sm:$0xff]
        %v1049 = vld [vmem:[%s600 + $0xa4] sm:$0xf]
        %v1050 = vld [vmem:[%s600 + $0xa8] sm:$0xff]
        %v1051 = vld [vmem:[%s600 + $0xb0] sm:$0xf]
        %v1052 = vld [vmem:[%s600 + $0xb4] sm:$0xff]
        %v1053 = vld [vmem:[%s600 + $0xbc] sm:$0xf]
        %v1086 = vunpack.c.l.b16 %v1022
        %v1087 = vunpack.c.h.b16 %v1022
        %v1088 = vunpack.c.l.b16 %v1023
        %v1089 = vunpack.c.l.b16 %v1024
        %v1090 = vunpack.c.h.b16 %v1024
        %v1091 = vunpack.c.l.b16 %v1025
        %v1092 = vunpack.c.l.b16 %v1026
        %v1093 = vunpack.c.h.b16 %v1026
        %v1094 = vunpack.c.l.b16 %v1027
        %v1095 = vunpack.c.l.b16 %v1028
        %v1096 = vunpack.c.h.b16 %v1028
        %v1097 = vunpack.c.l.b16 %v1029
        %v1098 = vunpack.c.l.b16 %v1030
        %v1099 = vunpack.c.h.b16 %v1030
        %v1100 = vunpack.c.l.b16 %v1031
        %v1101 = vunpack.c.l.b16 %v1032
        %v1102 = vunpack.c.h.b16 %v1032
        %v1103 = vunpack.c.l.b16 %v1033
        %v1104 = vunpack.c.l.b16 %v1034
        %v1105 = vunpack.c.h.b16 %v1034
        %v1106 = vunpack.c.l.b16 %v1035
        %v1107 = vunpack.c.l.b16 %v1036
        %v1108 = vunpack.c.h.b16 %v1036
        %v1109 = vunpack.c.l.b16 %v1037
        %v1110 = vunpack.c.l.b16 %v1038
        %v1111 = vunpack.c.h.b16 %v1038
        %v1112 = vunpack.c.l.b16 %v1039
        %v1113 = vunpack.c.l.b16 %v1040
        %v1114 = vunpack.c.h.b16 %v1040
        %v1115 = vunpack.c.l.b16 %v1041
        %v1116 = vunpack.c.l.b16 %v1042
        %v1117 = vunpack.c.h.b16 %v1042
        %v1118 = vunpack.c.l.b16 %v1043
        %v1119 = vunpack.c.l.b16 %v1044
        %v1120 = vunpack.c.h.b16 %v1044
        %v1121 = vunpack.c.l.b16 %v1045
        %v1122 = vunpack.c.l.b16 %v1046
        %v1123 = vunpack.c.h.b16 %v1046
        %v1124 = vunpack.c.l.b16 %v1047
        %v1125 = vunpack.c.l.b16 %v1048
        %v1126 = vunpack.c.h.b16 %v1048
        %v1127 = vunpack.c.l.b16 %v1049
        %v1128 = vunpack.c.l.b16 %v1050
        %v1129 = vunpack.c.h.b16 %v1050
        %v1130 = vunpack.c.l.b16 %v1051
        %v1131 = vunpack.c.l.b16 %v1052
        %v1132 = vunpack.c.h.b16 %v1052
        %v1133 = vunpack.c.l.b16 %v1053
        %v1134 = vpack.c.b16 %v1089, %v1086
        %v1135 = vpack.c.b16 %v1090, %v1087
        %v1136 = vpack.c.b16 %v1091, %v1088
        %v1137 = vpack.c.b16 %v1095, %v1092
        %v1138 = vpack.c.b16 %v1096, %v1093
        %v1139 = vpack.c.b16 %v1097, %v1094
        %v1140 = vpack.c.b16 %v1101, %v1098
        %v1141 = vpack.c.b16 %v1102, %v1099
        %v1142 = vpack.c.b16 %v1103, %v1100
        %v1143 = vpack.c.b16 %v1107, %v1104
        %v1144 = vpack.c.b16 %v1108, %v1105
        %v1145 = vpack.c.b16 %v1109, %v1106
        %v1146 = vpack.c.b16 %v1113, %v1110
        %v1147 = vpack.c.b16 %v1114, %v1111
        %v1148 = vpack.c.b16 %v1115, %v1112
        %v1149 = vpack.c.b16 %v1119, %v1116
        %v1150 = vpack.c.b16 %v1120, %v1117
        %v1151 = vpack.c.b16 %v1121, %v1118
        %v1152 = vpack.c.b16 %v1125, %v1122
        %v1153 = vpack.c.b16 %v1126, %v1123
        %v1154 = vpack.c.b16 %v1127, %v1124
        %v1155 = vpack.c.b16 %v1131, %v1128
        %v1156 = vpack.c.b16 %v1132, %v1129
        %v1157 = vpack.c.b16 %v1133, %v1130
        %1182 = vmatprep.subr.bf16.mxu0 %v1135
        %1183 = vmatpush1.bf16.msra.mxu0 %v1134
        %1184 = vmatprep.subr.bf16.mxu0 %v1138
        %1185 = vmatpush1.bf16.msra.mxu0 %v1137
        %1186 = vmatprep.subr.bf16.mxu0 %v1141
        %1187 = vmatpush1.bf16.msra.mxu0 %v1140
        %1188 = vmatprep.subr.bf16.mxu0 %v1144
        %1189 = vmatpush1.bf16.msra.mxu0 %v1143
        %1190 = vmatprep.subr.bf16.mxu0 %v1147
        %1191 = vmatpush1.bf16.msra.mxu0 %v1146
        %1192 = vmatprep.subr.bf16.mxu0 %v1150
        %1193 = vmatpush1.bf16.msra.mxu0 %v1149
        %1194 = vmatprep.subr.bf16.mxu0 %v1153
        %1195 = vmatpush1.bf16.msra.mxu0 %v1152
        %1196 = vmatprep.subr.bf16.mxu0 %v1156
        %1197 = vmatpush1.bf16.msra.mxu0 %v1155
        %1198 = vmatprep.subr.bf16.mxu0 0
        %1199 = vmatpush1.bf16.msra.mxu0 0
        %1200 = vmatprep.subr.bf16.mxu0 0
        %1201 = vmatpush1.bf16.msra.mxu0 0
        %1202 = vmatprep.subr.bf16.mxu0 0
        %1203 = vmatpush1.bf16.msra.mxu0 0
        %1204 = vmatprep.subr.bf16.mxu0 0
        %1205 = vmatpush1.bf16.msra.mxu0 0
        %1206 = vmatprep.subr.bf16.mxu0 0
        %1207 = vmatpush1.bf16.msra.mxu0 0
        %1208 = vmatprep.subr.bf16.mxu0 0
        %1209 = vmatpush1.bf16.msra.mxu0 0
        %1210 = vmatprep.subr.bf16.mxu0 0
        %1211 = vmatpush1.bf16.msra.mxu0 0
        %1212 = vmatprep.subr.bf16.mxu0 0
        %1213 = vmatpush1.bf16.msra.mxu0 0
        %1214 = vmatprep.mubr.bf16.mxu0 0
        %1215 = vmatmul.mubr.bf16.gmra.mrb[0].mxu0 %v1014
        %v1216 = vpop.f32.mrb[0].mxu0
        %v1217 = vadd.f32 0.0, %v1216
        %v1218 = vpop.f32.mrb[0].mxu0
        %v1219 = vadd.f32 0.0, %v1218
        %v1220 = vpop.f32.mrb[0].mxu0
        %v1221 = vadd.f32 0.0, %v1220
        %v1222 = vpop.f32.mrb[0].mxu0
        %v1223 = vadd.f32 0.0, %v1222
        %1224 = vmatprep.mubr.bf16.mxu0 0
        %1225 = vmatmul.mubr.bf16.gmra.mrb[0].mxu0 %v1015
        %v1226 = vpop.f32.mrb[0].mxu0
        %v1227 = vadd.f32 0.0, %v1226
        %v1228 = vpop.f32.mrb[0].mxu0
        %v1229 = vadd.f32 0.0, %v1228
        %v1230 = vpop.f32.mrb[0].mxu0
        %v1231 = vadd.f32 0.0, %v1230
        %v1232 = vpop.f32.mrb[0].mxu0
        %v1233 = vadd.f32 0.0, %v1232
        %1234 = vmatprep.mubr.bf16.mxu0 0
        %1235 = vmatmul.mubr.bf16.gmra.mrb[0].mxu0 %v1016
        %v1236 = vpop.f32.mrb[0].mxu0
        %v1237 = vadd.f32 0.0, %v1236
        %v1238 = vpop.f32.mrb[0].mxu0
        %v1239 = vadd.f32 0.0, %v1238
        %v1240 = vpop.f32.mrb[0].mxu0
        %v1241 = vadd.f32 0.0, %v1240
        %v1242 = vpop.f32.mrb[0].mxu0
        %v1243 = vadd.f32 0.0, %v1242
        %1244 = vmatprep.mubr.bf16.mxu0 0
        %1245 = vmatmul.mubr.bf16.gmra.mrb[0].mxu0 %v1017
        %v1246 = vpop.f32.mrb[0].mxu0
        %v1247 = vadd.f32 0.0, %v1246
        %v1248 = vpop.f32.mrb[0].mxu0
        %v1249 = vadd.f32 0.0, %v1248
        %v1250 = vpop.f32.mrb[0].mxu0
        %v1251 = vadd.f32 0.0, %v1250
        %v1252 = vpop.f32.mrb[0].mxu0
        %v1253 = vadd.f32 0.0, %v1252
        %1254 = vmatprep.mubr.bf16.mxu0 0
        %1255 = vmatmul.mubr.bf16.gmra.mrb[0].mxu0 %v1018
        %v1256 = vpop.f32.mrb[0].mxu0
        %v1257 = vadd.f32 0.0, %v1256
        %v1258 = vpop.f32.mrb[0].mxu0
        %v1259 = vadd.f32 0.0, %v1258
        %v1260 = vpop.f32.mrb[0].mxu0
        %v1261 = vadd.f32 0.0, %v1260
        %v1262 = vpop.f32.mrb[0].mxu0
        %v1263 = vadd.f32 0.0, %v1262
        %1264 = vmatprep.mubr.bf16.mxu0 0
        %1265 = vmatmul.mubr.bf16.gmra.mrb[0].mxu0 %v1019
        %v1266 = vpop.f32.mrb[0].mxu0
        %v1267 = vadd.f32 0.0, %v1266
        %v1268 = vpop.f32.mrb[0].mxu0
        %v1269 = vadd.f32 0.0, %v1268
        %v1270 = vpop.f32.mrb[0].mxu0
        %v1271 = vadd.f32 0.0, %v1270
        %v1272 = vpop.f32.mrb[0].mxu0
        %v1273 = vadd.f32 0.0, %v1272
        %1274 = vmatprep.mubr.bf16.mxu0 0
        %1275 = vmatmul.mubr.bf16.gmra.mrb[0].mxu0 %v1020
        %v1276 = vpop.f32.mrb[0].mxu0
        %v1277 = vadd.f32 0.0, %v1276
        %v1278 = vpop.f32.mrb[0].mxu0
        %v1279 = vadd.f32 0.0, %v1278
        %v1280 = vpop.f32.mrb[0].mxu0
        %v1281 = vadd.f32 0.0, %v1280
        %v1282 = vpop.f32.mrb[0].mxu0
        %v1283 = vadd.f32 0.0, %v1282
        %1284 = vmatprep.mubr.bf16.mxu0 0
        %1285 = vmatmul.mubr.bf16.gmra.mrb[0].mxu0 %v1021
        %v1286 = vpop.f32.mrb[0].mxu0
        %v1287 = vadd.f32 0.0, %v1286
        %v1288 = vpop.f32.mrb[0].mxu0
        %v1289 = vadd.f32 0.0, %v1288
        %v1290 = vpop.f32.mrb[0].mxu0
        %v1291 = vadd.f32 0.0, %v1290
        %v1292 = vpop.f32.mrb[0].mxu0
        %v1293 = vadd.f32 0.0, %v1292
        %1294 = vdwg.mxu0
        %1295 = vmatprep.subr.bf16.mxu0 0
        %1296 = vmatpush1.bf16.msra.mxu0 %v1136
        %1297 = vmatprep.subr.bf16.mxu0 0
        %1298 = vmatpush1.bf16.msra.mxu0 %v1139
        %1299 = vmatprep.subr.bf16.mxu0 0
        %1300 = vmatpush1.bf16.msra.mxu0 %v1142
        %1301 = vmatprep.subr.bf16.mxu0 0
        %1302 = vmatpush1.bf16.msra.mxu0 %v1145
        %1303 = vmatprep.subr.bf16.mxu0 0
        %1304 = vmatpush1.bf16.msra.mxu0 %v1148
        %1305 = vmatprep.subr.bf16.mxu0 0
        %1306 = vmatpush1.bf16.msra.mxu0 %v1151
        %1307 = vmatprep.subr.bf16.mxu0 0
        %1308 = vmatpush1.bf16.msra.mxu0 %v1154
        %1309 = vmatprep.subr.bf16.mxu0 0
        %1310 = vmatpush1.bf16.msra.mxu0 %v1157
        %1311 = vmatprep.subr.bf16.mxu0 0
        %1312 = vmatpush1.bf16.msra.mxu0 0
        %1313 = vmatprep.subr.bf16.mxu0 0
        %1314 = vmatpush1.bf16.msra.mxu0 0
        %1315 = vmatprep.subr.bf16.mxu0 0
        %1316 = vmatpush1.bf16.msra.mxu0 0
        %1317 = vmatprep.subr.bf16.mxu0 0
        %1318 = vmatpush1.bf16.msra.mxu0 0
        %1319 = vmatprep.subr.bf16.mxu0 0
        %1320 = vmatpush1.bf16.msra.mxu0 0
        %1321 = vmatprep.subr.bf16.mxu0 0
        %1322 = vmatpush1.bf16.msra.mxu0 0
        %1323 = vmatprep.subr.bf16.mxu0 0
        %1324 = vmatpush1.bf16.msra.mxu0 0
        %1325 = vmatprep.subr.bf16.mxu0 0
        %1326 = vmatpush1.bf16.msra.mxu0 0
        %1327 = vmatprep.mubr.bf16.mxu0 0
        %1328 = vmatmul.mubr.bf16.gmra.mrb[0].mxu0 %v1014
        %v1329 = vpop.f32.mrb[0].mxu0
        %v1330 = vadd.f32 0.0, %v1329
        %v1331 = vpop.f32.mrb[0].mxu0
        %v1332 = vpop.f32.mrb[0].mxu0
        %v1333 = vadd.f32 0.0, %v1332
        %v1334 = vpop.f32.mrb[0].mxu0
        %1335 = vmatprep.mubr.bf16.mxu0 0
        %1336 = vmatmul.mubr.bf16.gmra.mrb[0].mxu0 %v1015
        %v1337 = vpop.f32.mrb[0].mxu0
        %v1338 = vadd.f32 0.0, %v1337
        %v1339 = vpop.f32.mrb[0].mxu0
        %v1340 = vpop.f32.mrb[0].mxu0
        %v1341 = vadd.f32 0.0, %v1340
        %v1342 = vpop.f32.mrb[0].mxu0
        %1343 = vmatprep.mubr.bf16.mxu0 0
        %1344 = vmatmul.mubr.bf16.gmra.mrb[0].mxu0 %v1016
        %v1345 = vpop.f32.mrb[0].mxu0
        %v1346 = vadd.f32 0.0, %v1345
        %v1347 = vpop.f32.mrb[0].mxu0
        %v1348 = vpop.f32.mrb[0].mxu0
        %v1349 = vadd.f32 0.0, %v1348
        %v1350 = vpop.f32.mrb[0].mxu0
        %1351 = vmatprep.mubr.bf16.mxu0 0
        %1352 = vmatmul.mubr.bf16.gmra.mrb[0].mxu0 %v1017
        %v1353 = vpop.f32.mrb[0].mxu0
        %v1354 = vadd.f32 0.0, %v1353
        %v1355 = vpop.f32.mrb[0].mxu0
        %v1356 = vpop.f32.mrb[0].mxu0
        %v1357 = vadd.f32 0.0, %v1356
        %v1358 = vpop.f32.mrb[0].mxu0
        %1359 = vmatprep.mubr.bf16.mxu0 0
        %1360 = vmatmul.mubr.bf16.gmra.mrb[0].mxu0 %v1018
        %v1361 = vpop.f32.mrb[0].mxu0
        %v1362 = vadd.f32 0.0, %v1361
        %v1363 = vpop.f32.mrb[0].mxu0
        %v1364 = vpop.f32.mrb[0].mxu0
        %v1365 = vadd.f32 0.0, %v1364
        %v1366 = vpop.f32.mrb[0].mxu0
        %1367 = vmatprep.mubr.bf16.mxu0 0
        %1368 = vmatmul.mubr.bf16.gmra.mrb[0].mxu0 %v1019
        %v1369 = vpop.f32.mrb[0].mxu0
        %v1370 = vadd.f32 0.0, %v1369
        %v1371 = vpop.f32.mrb[0].mxu0
        %v1372 = vpop.f32.mrb[0].mxu0
        %v1373 = vadd.f32 0.0, %v1372
        %v1374 = vpop.f32.mrb[0].mxu0
        %1375 = vmatprep.mubr.bf16.mxu0 0
        %1376 = vmatmul.mubr.bf16.gmra.mrb[0].mxu0 %v1020
        %v1377 = vpop.f32.mrb[0].mxu0
        %v1378 = vadd.f32 0.0, %v1377
        %v1379 = vpop.f32.mrb[0].mxu0
        %v1380 = vpop.f32.mrb[0].mxu0
        %v1381 = vadd.f32 0.0, %v1380
        %v1382 = vpop.f32.mrb[0].mxu0
        %1383 = vmatprep.mubr.bf16.mxu0 0
        %1384 = vmatmul.mubr.bf16.gmra.mrb[0].mxu0 %v1021
        %v1385 = vpop.f32.mrb[0].mxu0
        %v1386 = vadd.f32 0.0, %v1385
        %v1387 = vpop.f32.mrb[0].mxu0
        %v1388 = vpop.f32.mrb[0].mxu0
        %v1389 = vadd.f32 0.0, %v1388
        %v1390 = vpop.f32.mrb[0].mxu0
        %1391 = vdwg.mxu0
        %v1392 = vpack.c.bf16 %v1221, %v1217
        %v1393 = vpack.c.bf16 %v1231, %v1227
        %v1394 = vpack.c.bf16 %v1223, %v1219
        %v1395 = vpack.c.bf16 %v1233, %v1229
        %v1396 = vpack.c.bf16 %v1333, %v1330
        %v1397 = vpack.c.bf16 %v1341, %v1338
        %vm1398 = vcmask 523264
        %v1400 = vsel %vm1398, %v1392, 0
        %v1403 = vsel %vm1398, %v1393, 0
        %v1406 = vsel %vm1398, %v1394, 0
        %v1409 = vsel %vm1398, %v1395, 0
        %1411 = vmatprep.subr.bf16.mxu0 0
        %1412 = vmatpush1.bf16.xpose.msra.mxu0 %v1406
        %1413 = vmatprep.subr.bf16.mxu0 0
        %1414 = vmatpush1.bf16.xpose.msra.mxu0 %v1409
        %1415 = vmatprep.subr.bf16.mxu0 0
        %1416 = vmatpush1.bf16.xpose.msra.mxu0 0
        %1417 = vmatprep.subr.bf16.mxu0 0
        %1418 = vmatpush1.bf16.xpose.msra.mxu0 0
        %1419 = vmatprep.subr.bf16.mxu0 0
        %1420 = vmatpush1.bf16.xpose.msra.mxu0 0
        %1421 = vmatprep.subr.bf16.mxu0 0
        %1422 = vmatpush1.bf16.xpose.msra.mxu0 0
        %1423 = vmatprep.subr.bf16.mxu0 0
        %1424 = vmatpush1.bf16.xpose.msra.mxu0 0
        %1425 = vmatprep.subr.bf16.mxu0 0
        %1426 = vmatpush1.bf16.xpose.msra.mxu0 0
        %1427 = vmatprep.subr.bf16.mxu0 0
        %1428 = vmatpush1.bf16.xpose.msra.mxu0 0
        %1429 = vmatprep.subr.bf16.mxu0 0
        %1430 = vmatpush1.bf16.xpose.msra.mxu0 0
        %1431 = vmatprep.subr.bf16.mxu0 0
        %1432 = vmatpush1.bf16.xpose.msra.mxu0 0
        %1433 = vmatprep.subr.bf16.mxu0 0
        %1434 = vmatpush1.bf16.xpose.msra.mxu0 0
        %1435 = vmatprep.subr.bf16.mxu0 0
        %1436 = vmatpush1.bf16.xpose.msra.mxu0 0
        %1437 = vmatprep.subr.bf16.mxu0 0
        %1438 = vmatpush1.bf16.xpose.msra.mxu0 0
        %1439 = vmatprep.subr.bf16.mxu0 0
        %1440 = vmatpush1.bf16.xpose.msra.mxu0 0
        %1441 = vmatprep.subr.bf16.mxu0 0
        %1442 = vmatpush1.bf16.xpose.msra.mxu0 0
        %1443 = vmatprep.mubr.bf16.mxu0 0
        %1444 = vmatmul.mubr.bf16.gmra.mrb[0].mxu0 %v1400
        %v1445 = vpop.f32.mrb[0].mxu0
        %v1446 = vadd.f32 0.0, %v1445
        %v1447 = vpop.f32.mrb[0].mxu0
        %v1448 = vpop.f32.mrb[0].mxu0
        %v1449 = vadd.f32 0.0, %v1448
        %v1450 = vpop.f32.mrb[0].mxu0
        %1451 = vmatprep.mubr.bf16.mxu0 0
        %1452 = vmatmul.mubr.bf16.gmra.mrb[0].mxu0 %v1403
        %v1453 = vpop.f32.mrb[0].mxu0
        %v1454 = vadd.f32 0.0, %v1453
        %v1455 = vpop.f32.mrb[0].mxu0
        %v1456 = vpop.f32.mrb[0].mxu0
        %v1457 = vadd.f32 0.0, %v1456
        %v1458 = vpop.f32.mrb[0].mxu0
        %1459 = vdwg.mxu0
        %vm1460 = vcmask 261120
        %v1461 = vsel %vm1460, %v1446, -inf
        %1462 = vmax.xlane.f32.xlu0 %v1461
        %v1463 = vpop.xlane.xlu0 %1462
        %v1464 = vsel %vm1460, %v1449, -inf
        %1465 = vmax.xlane.f32.xlu0 %v1464
        %v1466 = vpop.xlane.xlu0 %1465
        %v1467 = vsel %vm1460, %v1454, -inf
        %1468 = vmax.xlane.f32.xlu0 %v1467
        %v1469 = vpop.xlane.xlu0 %1468
        %v1470 = vsel %vm1460, %v1457, -inf
        %1471 = vmax.xlane.f32.xlu0 %v1470
        %v1472 = vpop.xlane.xlu0 %1471
        %v1473 = vsub.f32 %v1446, %v1463
        %v1474 = vsub.f32 %v1449, %v1466
        %v1475 = vsub.f32 %v1454, %v1469
        %v1476 = vsub.f32 %v1457, %v1472
        %v1477 = vmul.f32 %v1473, 1.442695
        %v1478 = vpow.pop %v1477
        %v1479 = vmul.f32 %v1474, 1.442695
        %v1480 = vpow.pop %v1479
        %v1481 = vmul.f32 %v1475, 1.442695
        %v1482 = vpow.pop %v1481
        %v1483 = vmul.f32 %v1476, 1.442695
        %v1484 = vpow.pop %v1483
        %v1485 = vsel %vm1460, %v1478, 0.0
        %1486 = vadd.xlane.f32.xlu0 %v1485
        %v1487 = vpop.xlane.xlu0 %1486
        %v1488 = vsel %vm1460, %v1480, 0.0
        %1489 = vadd.xlane.f32.xlu0 %v1488
        %v1490 = vpop.xlane.xlu0 %1489
        %v1491 = vsel %vm1460, %v1482, 0.0
        %1492 = vadd.xlane.f32.xlu0 %v1491
        %v1493 = vpop.xlane.xlu0 %1492
        %v1494 = vsel %vm1460, %v1484, 0.0
        %1495 = vadd.xlane.f32.xlu0 %v1494
        %v1496 = vpop.xlane.xlu0 %1495
        %v1497 = vrcp.pop %v1487
        %v1498 = vrcp.pop %v1490
        %v1499 = vrcp.pop %v1493
        %v1500 = vrcp.pop %v1496
        %v1501 = vmul.f32 %v1478, %v1497
        %v1502 = vmul.f32 %v1480, %v1498
        %v1503 = vmul.f32 %v1482, %v1499
        %v1504 = vmul.f32 %v1484, %v1500
        %v1505 = vpack.c.bf16 %v1502, %v1501
        %v1506 = vpack.c.bf16 %v1504, %v1503
        %v1508 = vsel %vm1460, %v1505, 0
        %v1511 = vsel %vm1460, %v1506, 0
        %1513 = vmatprep.subr.bf16.mxu0 0
        %1514 = vmatpush1.bf16.msra.mxu0 %v1396
        %1515 = vmatprep.subr.bf16.mxu0 0
        %1516 = vmatpush1.bf16.msra.mxu0 %v1397
        %1517 = vmatprep.subr.bf16.mxu0 0
        %1518 = vmatpush1.bf16.msra.mxu0 0
        %1519 = vmatprep.subr.bf16.mxu0 0
        %1520 = vmatpush1.bf16.msra.mxu0 0
        %1521 = vmatprep.subr.bf16.mxu0 0
        %1522 = vmatpush1.bf16.msra.mxu0 0
        %1523 = vmatprep.subr.bf16.mxu0 0
        %1524 = vmatpush1.bf16.msra.mxu0 0
        %1525 = vmatprep.subr.bf16.mxu0 0
        %1526 = vmatpush1.bf16.msra.mxu0 0
        %1527 = vmatprep.subr.bf16.mxu0 0
        %1528 = vmatpush1.bf16.msra.mxu0 0
        %1529 = vmatprep.subr.bf16.mxu0 0
        %1530 = vmatpush1.bf16.msra.mxu0 0
        %1531 = vmatprep.subr.bf16.mxu0 0
        %1532 = vmatpush1.bf16.msra.mxu0 0
        %1533 = vmatprep.subr.bf16.mxu0 0
        %1534 = vmatpush1.bf16.msra.mxu0 0
        %1535 = vmatprep.subr.bf16.mxu0 0
        %1536 = vmatpush1.bf16.msra.mxu0 0
        %1537 = vmatprep.subr.bf16.mxu0 0
        %1538 = vmatpush1.bf16.msra.mxu0 0
        %1539 = vmatprep.subr.bf16.mxu0 0
        %1540 = vmatpush1.bf16.msra.mxu0 0
        %1541 = vmatprep.subr.bf16.mxu0 0
        %1542 = vmatpush1.bf16.msra.mxu0 0
        %1543 = vmatprep.subr.bf16.mxu0 0
        %1544 = vmatpush1.bf16.msra.mxu0 0
        %1545 = vmatprep.mubr.bf16.mxu0 0
        %1546 = vmatmul.mubr.bf16.gmra.mrb[0].mxu0 %v1508
        %v1547 = vpop.f32.mrb[0].mxu0
        %v1548 = vadd.f32 0.0, %v1547
        %v1549 = vpop.f32.mrb[0].mxu0
        %v1550 = vpop.f32.mrb[0].mxu0
        %v1551 = vadd.f32 0.0, %v1550
        %v1552 = vpop.f32.mrb[0].mxu0
        %1553 = vmatprep.mubr.bf16.mxu0 0
        %1554 = vmatmul.mubr.bf16.gmra.mrb[0].mxu0 %v1511
        %v1555 = vpop.f32.mrb[0].mxu0
        %v1556 = vadd.f32 0.0, %v1555
        %v1557 = vpop.f32.mrb[0].mxu0
        %v1558 = vpop.f32.mrb[0].mxu0
        %v1559 = vadd.f32 0.0, %v1558
        %v1560 = vpop.f32.mrb[0].mxu0
        %1561 = vdwg.mxu0
        %v1562 = vpack.c.bf16 %v1241, %v1237
        %v1563 = vpack.c.bf16 %v1251, %v1247
        %v1564 = vpack.c.bf16 %v1243, %v1239
        %v1565 = vpack.c.bf16 %v1253, %v1249
        %v1566 = vpack.c.bf16 %v1349, %v1346
        %v1567 = vpack.c.bf16 %v1357, %v1354
        %v1569 = vsel %vm1398, %v1562, 0
        %v1572 = vsel %vm1398, %v1563, 0
        %v1575 = vsel %vm1398, %v1564, 0
        %v1578 = vsel %vm1398, %v1565, 0
        %1580 = vmatprep.subr.bf16.mxu0 0
        %1581 = vmatpush1.bf16.xpose.msra.mxu0 %v1575
        %1582 = vmatprep.subr.bf16.mxu0 0
        %1583 = vmatpush1.bf16.xpose.msra.mxu0 %v1578
        %1584 = vmatprep.subr.bf16.mxu0 0
        %1585 = vmatpush1.bf16.xpose.msra.mxu0 0
        %1586 = vmatprep.subr.bf16.mxu0 0
        %1587 = vmatpush1.bf16.xpose.msra.mxu0 0
        %1588 = vmatprep.subr.bf16.mxu0 0
        %1589 = vmatpush1.bf16.xpose.msra.mxu0 0
        %1590 = vmatprep.subr.bf16.mxu0 0
        %1591 = vmatpush1.bf16.xpose.msra.mxu0 0
        %1592 = vmatprep.subr.bf16.mxu0 0
        %1593 = vmatpush1.bf16.xpose.msra.mxu0 0
        %1594 = vmatprep.subr.bf16.mxu0 0
        %1595 = vmatpush1.bf16.xpose.msra.mxu0 0
        %1596 = vmatprep.subr.bf16.mxu0 0
        %1597 = vmatpush1.bf16.xpose.msra.mxu0 0
        %1598 = vmatprep.subr.bf16.mxu0 0
        %1599 = vmatpush1.bf16.xpose.msra.mxu0 0
        %1600 = vmatprep.subr.bf16.mxu0 0
        %1601 = vmatpush1.bf16.xpose.msra.mxu0 0
        %1602 = vmatprep.subr.bf16.mxu0 0
        %1603 = vmatpush1.bf16.xpose.msra.mxu0 0
        %1604 = vmatprep.subr.bf16.mxu0 0
        %1605 = vmatpush1.bf16.xpose.msra.mxu0 0
        %1606 = vmatprep.subr.bf16.mxu0 0
        %1607 = vmatpush1.bf16.xpose.msra.mxu0 0
        %1608 = vmatprep.subr.bf16.mxu0 0
        %1609 = vmatpush1.bf16.xpose.msra.mxu0 0
        %1610 = vmatprep.subr.bf16.mxu0 0
        %1611 = vmatpush1.bf16.xpose.msra.mxu0 0
        %1612 = vmatprep.mubr.bf16.mxu0 0
        %1613 = vmatmul.mubr.bf16.gmra.mrb[0].mxu0 %v1569
        %v1614 = vpop.f32.mrb[0].mxu0
        %v1615 = vadd.f32 0.0, %v1614
        %v1616 = vpop.f32.mrb[0].mxu0
        %v1617 = vpop.f32.mrb[0].mxu0
        %v1618 = vadd.f32 0.0, %v1617
        %v1619 = vpop.f32.mrb[0].mxu0
        %1620 = vmatprep.mubr.bf16.mxu0 0
        %1621 = vmatmul.mubr.bf16.gmra.mrb[0].mxu0 %v1572
        %v1622 = vpop.f32.mrb[0].mxu0
        %v1623 = vadd.f32 0.0, %v1622
        %v1624 = vpop.f32.mrb[0].mxu0
        %v1625 = vpop.f32.mrb[0].mxu0
        %v1626 = vadd.f32 0.0, %v1625
        %v1627 = vpop.f32.mrb[0].mxu0
        %1628 = vdwg.mxu0
        %v1629 = vsel %vm1460, %v1615, -inf
        %1630 = vmax.xlane.f32.xlu0 %v1629
        %v1631 = vpop.xlane.xlu0 %1630
        %v1632 = vsel %vm1460, %v1618, -inf
        %1633 = vmax.xlane.f32.xlu0 %v1632
        %v1634 = vpop.xlane.xlu0 %1633
        %v1635 = vsel %vm1460, %v1623, -inf
        %1636 = vmax.xlane.f32.xlu0 %v1635
        %v1637 = vpop.xlane.xlu0 %1636
        %v1638 = vsel %vm1460, %v1626, -inf
        %1639 = vmax.xlane.f32.xlu0 %v1638
        %v1640 = vpop.xlane.xlu0 %1639
        %v1641 = vsub.f32 %v1615, %v1631
        %v1642 = vsub.f32 %v1618, %v1634
        %v1643 = vsub.f32 %v1623, %v1637
        %v1644 = vsub.f32 %v1626, %v1640
        %v1645 = vmul.f32 %v1641, 1.442695
        %v1646 = vpow.pop %v1645
        %v1647 = vmul.f32 %v1642, 1.442695
        %v1648 = vpow.pop %v1647
        %v1649 = vmul.f32 %v1643, 1.442695
        %v1650 = vpow.pop %v1649
        %v1651 = vmul.f32 %v1644, 1.442695
        %v1652 = vpow.pop %v1651
        %v1653 = vsel %vm1460, %v1646, 0.0
        %1654 = vadd.xlane.f32.xlu0 %v1653
        %v1655 = vpop.xlane.xlu0 %1654
        %v1656 = vsel %vm1460, %v1648, 0.0
        %1657 = vadd.xlane.f32.xlu0 %v1656
        %v1658 = vpop.xlane.xlu0 %1657
        %v1659 = vsel %vm1460, %v1650, 0.0
        %1660 = vadd.xlane.f32.xlu0 %v1659
        %v1661 = vpop.xlane.xlu0 %1660
        %v1662 = vsel %vm1460, %v1652, 0.0
        %1663 = vadd.xlane.f32.xlu0 %v1662
        %v1664 = vpop.xlane.xlu0 %1663
        %v1665 = vrcp.pop %v1655
        %v1666 = vrcp.pop %v1658
        %v1667 = vrcp.pop %v1661
        %v1668 = vrcp.pop %v1664
        %v1669 = vmul.f32 %v1646, %v1665
        %v1670 = vmul.f32 %v1648, %v1666
        %v1671 = vmul.f32 %v1650, %v1667
        %v1672 = vmul.f32 %v1652, %v1668
        %v1673 = vpack.c.bf16 %v1670, %v1669
        %v1674 = vpack.c.bf16 %v1672, %v1671
        %v1676 = vsel %vm1460, %v1673, 0
        %v1679 = vsel %vm1460, %v1674, 0
        %1681 = vmatprep.subr.bf16.mxu0 0
        %1682 = vmatpush1.bf16.msra.mxu0 %v1566
        %1683 = vmatprep.subr.bf16.mxu0 0
        %1684 = vmatpush1.bf16.msra.mxu0 %v1567
        %1685 = vmatprep.subr.bf16.mxu0 0
        %1686 = vmatpush1.bf16.msra.mxu0 0
        %1687 = vmatprep.subr.bf16.mxu0 0
        %1688 = vmatpush1.bf16.msra.mxu0 0
        %1689 = vmatprep.subr.bf16.mxu0 0
        %1690 = vmatpush1.bf16.msra.mxu0 0
        %1691 = vmatprep.subr.bf16.mxu0 0
        %1692 = vmatpush1.bf16.msra.mxu0 0
        %1693 = vmatprep.subr.bf16.mxu0 0
        %1694 = vmatpush1.bf16.msra.mxu0 0
        %1695 = vmatprep.subr.bf16.mxu0 0
        %1696 = vmatpush1.bf16.msra.mxu0 0
        %1697 = vmatprep.subr.bf16.mxu0 0
        %1698 = vmatpush1.bf16.msra.mxu0 0
        %1699 = vmatprep.subr.bf16.mxu0 0
        %1700 = vmatpush1.bf16.msra.mxu0 0
        %1701 = vmatprep.subr.bf16.mxu0 0
        %1702 = vmatpush1.bf16.msra.mxu0 0
        %1703 = vmatprep.subr.bf16.mxu0 0
        %1704 = vmatpush1.bf16.msra.mxu0 0
        %1705 = vmatprep.subr.bf16.mxu0 0
        %1706 = vmatpush1.bf16.msra.mxu0 0
        %1707 = vmatprep.subr.bf16.mxu0 0
        %1708 = vmatpush1.bf16.msra.mxu0 0
        %1709 = vmatprep.subr.bf16.mxu0 0
        %1710 = vmatpush1.bf16.msra.mxu0 0
        %1711 = vmatprep.subr.bf16.mxu0 0
        %1712 = vmatpush1.bf16.msra.mxu0 0
        %1713 = vmatprep.mubr.bf16.mxu0 0
        %1714 = vmatmul.mubr.bf16.gmra.mrb[0].mxu0 %v1676
        %v1715 = vpop.f32.mrb[0].mxu0
        %v1716 = vadd.f32 0.0, %v1715
        %v1717 = vpop.f32.mrb[0].mxu0
        %v1718 = vpop.f32.mrb[0].mxu0
        %v1719 = vadd.f32 0.0, %v1718
        %v1720 = vpop.f32.mrb[0].mxu0
        %1721 = vmatprep.mubr.bf16.mxu0 0
        %1722 = vmatmul.mubr.bf16.gmra.mrb[0].mxu0 %v1679
        %v1723 = vpop.f32.mrb[0].mxu0
        %v1724 = vadd.f32 0.0, %v1723
        %v1725 = vpop.f32.mrb[0].mxu0
        %v1726 = vpop.f32.mrb[0].mxu0
        %v1727 = vadd.f32 0.0, %v1726
        %v1728 = vpop.f32.mrb[0].mxu0
        %1729 = vdwg.mxu0
        %v1730 = vpack.c.bf16 %v1261, %v1257
        %v1731 = vpack.c.bf16 %v1271, %v1267
        %v1732 = vpack.c.bf16 %v1263, %v1259
        %v1733 = vpack.c.bf16 %v1273, %v1269
        %v1734 = vpack.c.bf16 %v1365, %v1362
        %v1735 = vpack.c.bf16 %v1373, %v1370
        %v1737 = vsel %vm1398, %v1730, 0
        %v1740 = vsel %vm1398, %v1731, 0
        %v1743 = vsel %vm1398, %v1732, 0
        %v1746 = vsel %vm1398, %v1733, 0
        %1748 = vmatprep.subr.bf16.mxu0 0
        %1749 = vmatpush1.bf16.xpose.msra.mxu0 %v1743
        %1750 = vmatprep.subr.bf16.mxu0 0
        %1751 = vmatpush1.bf16.xpose.msra.mxu0 %v1746
        %1752 = vmatprep.subr.bf16.mxu0 0
        %1753 = vmatpush1.bf16.xpose.msra.mxu0 0
        %1754 = vmatprep.subr.bf16.mxu0 0
        %1755 = vmatpush1.bf16.xpose.msra.mxu0 0
        %1756 = vmatprep.subr.bf16.mxu0 0
        %1757 = vmatpush1.bf16.xpose.msra.mxu0 0
        %1758 = vmatprep.subr.bf16.mxu0 0
        %1759 = vmatpush1.bf16.xpose.msra.mxu0 0
        %1760 = vmatprep.subr.bf16.mxu0 0
        %1761 = vmatpush1.bf16.xpose.msra.mxu0 0
        %1762 = vmatprep.subr.bf16.mxu0 0
        %1763 = vmatpush1.bf16.xpose.msra.mxu0 0
        %1764 = vmatprep.subr.bf16.mxu0 0
        %1765 = vmatpush1.bf16.xpose.msra.mxu0 0
        %1766 = vmatprep.subr.bf16.mxu0 0
        %1767 = vmatpush1.bf16.xpose.msra.mxu0 0
        %1768 = vmatprep.subr.bf16.mxu0 0
        %1769 = vmatpush1.bf16.xpose.msra.mxu0 0
        %1770 = vmatprep.subr.bf16.mxu0 0
        %1771 = vmatpush1.bf16.xpose.msra.mxu0 0
        %1772 = vmatprep.subr.bf16.mxu0 0
        %1773 = vmatpush1.bf16.xpose.msra.mxu0 0
        %1774 = vmatprep.subr.bf16.mxu0 0
        %1775 = vmatpush1.bf16.xpose.msra.mxu0 0
        %1776 = vmatprep.subr.bf16.mxu0 0
        %1777 = vmatpush1.bf16.xpose.msra.mxu0 0
        %1778 = vmatprep.subr.bf16.mxu0 0
        %1779 = vmatpush1.bf16.xpose.msra.mxu0 0
        %1780 = vmatprep.mubr.bf16.mxu0 0
        %1781 = vmatmul.mubr.bf16.gmra.mrb[0].mxu0 %v1737
        %v1782 = vpop.f32.mrb[0].mxu0
        %v1783 = vadd.f32 0.0, %v1782
        %v1784 = vpop.f32.mrb[0].mxu0
        %v1785 = vpop.f32.mrb[0].mxu0
        %v1786 = vadd.f32 0.0, %v1785
        %v1787 = vpop.f32.mrb[0].mxu0
        %1788 = vmatprep.mubr.bf16.mxu0 0
        %1789 = vmatmul.mubr.bf16.gmra.mrb[0].mxu0 %v1740
        %v1790 = vpop.f32.mrb[0].mxu0
        %v1791 = vadd.f32 0.0, %v1790
        %v1792 = vpop.f32.mrb[0].mxu0
        %v1793 = vpop.f32.mrb[0].mxu0
        %v1794 = vadd.f32 0.0, %v1793
        %v1795 = vpop.f32.mrb[0].mxu0
        %1796 = vdwg.mxu0
        %v1797 = vsel %vm1460, %v1783, -inf
        %1798 = vmax.xlane.f32.xlu0 %v1797
        %v1799 = vpop.xlane.xlu0 %1798
        %v1800 = vsel %vm1460, %v1786, -inf
        %1801 = vmax.xlane.f32.xlu0 %v1800
        %v1802 = vpop.xlane.xlu0 %1801
        %v1803 = vsel %vm1460, %v1791, -inf
        %1804 = vmax.xlane.f32.xlu0 %v1803
        %v1805 = vpop.xlane.xlu0 %1804
        %v1806 = vsel %vm1460, %v1794, -inf
        %1807 = vmax.xlane.f32.xlu0 %v1806
        %v1808 = vpop.xlane.xlu0 %1807
        %v1809 = vsub.f32 %v1783, %v1799
        %v1810 = vsub.f32 %v1786, %v1802
        %v1811 = vsub.f32 %v1791, %v1805
        %v1812 = vsub.f32 %v1794, %v1808
        %v1813 = vmul.f32 %v1809, 1.442695
        %v1814 = vpow.pop %v1813
        %v1815 = vmul.f32 %v1810, 1.442695
        %v1816 = vpow.pop %v1815
        %v1817 = vmul.f32 %v1811, 1.442695
        %v1818 = vpow.pop %v1817
        %v1819 = vmul.f32 %v1812, 1.442695
        %v1820 = vpow.pop %v1819
        %v1821 = vsel %vm1460, %v1814, 0.0
        %1822 = vadd.xlane.f32.xlu0 %v1821
        %v1823 = vpop.xlane.xlu0 %1822
        %v1824 = vsel %vm1460, %v1816, 0.0
        %1825 = vadd.xlane.f32.xlu0 %v1824
        %v1826 = vpop.xlane.xlu0 %1825
        %v1827 = vsel %vm1460, %v1818, 0.0
        %1828 = vadd.xlane.f32.xlu0 %v1827
        %v1829 = vpop.xlane.xlu0 %1828
        %v1830 = vsel %vm1460, %v1820, 0.0
        %1831 = vadd.xlane.f32.xlu0 %v1830
        %v1832 = vpop.xlane.xlu0 %1831
        %v1833 = vrcp.pop %v1823
        %v1834 = vrcp.pop %v1826
        %v1835 = vrcp.pop %v1829
        %v1836 = vrcp.pop %v1832
        %v1837 = vmul.f32 %v1814, %v1833
        %v1838 = vmul.f32 %v1816, %v1834
        %v1839 = vmul.f32 %v1818, %v1835
        %v1840 = vmul.f32 %v1820, %v1836
        %v1841 = vpack.c.bf16 %v1838, %v1837
        %v1842 = vpack.c.bf16 %v1840, %v1839
        %v1844 = vsel %vm1460, %v1841, 0
        %v1847 = vsel %vm1460, %v1842, 0
        %1849 = vmatprep.subr.bf16.mxu0 0
        %1850 = vmatpush1.bf16.msra.mxu0 %v1734
        %1851 = vmatprep.subr.bf16.mxu0 0
        %1852 = vmatpush1.bf16.msra.mxu0 %v1735
        %1853 = vmatprep.subr.bf16.mxu0 0
        %1854 = vmatpush1.bf16.msra.mxu0 0
        %1855 = vmatprep.subr.bf16.mxu0 0
        %1856 = vmatpush1.bf16.msra.mxu0 0
        %1857 = vmatprep.subr.bf16.mxu0 0
        %1858 = vmatpush1.bf16.msra.mxu0 0
        %1859 = vmatprep.subr.bf16.mxu0 0
        %1860 = vmatpush1.bf16.msra.mxu0 0
        %1861 = vmatprep.subr.bf16.mxu0 0
        %1862 = vmatpush1.bf16.msra.mxu0 0
        %1863 = vmatprep.subr.bf16.mxu0 0
        %1864 = vmatpush1.bf16.msra.mxu0 0
        %1865 = vmatprep.subr.bf16.mxu0 0
        %1866 = vmatpush1.bf16.msra.mxu0 0
        %1867 = vmatprep.subr.bf16.mxu0 0
        %1868 = vmatpush1.bf16.msra.mxu0 0
        %1869 = vmatprep.subr.bf16.mxu0 0
        %1870 = vmatpush1.bf16.msra.mxu0 0
        %1871 = vmatprep.subr.bf16.mxu0 0
        %1872 = vmatpush1.bf16.msra.mxu0 0
        %1873 = vmatprep.subr.bf16.mxu0 0
        %1874 = vmatpush1.bf16.msra.mxu0 0
        %1875 = vmatprep.subr.bf16.mxu0 0
        %1876 = vmatpush1.bf16.msra.mxu0 0
        %1877 = vmatprep.subr.bf16.mxu0 0
        %1878 = vmatpush1.bf16.msra.mxu0 0
        %1879 = vmatprep.subr.bf16.mxu0 0
        %1880 = vmatpush1.bf16.msra.mxu0 0
        %1881 = vmatprep.mubr.bf16.mxu0 0
        %1882 = vmatmul.mubr.bf16.gmra.mrb[0].mxu0 %v1844
        %v1883 = vpop.f32.mrb[0].mxu0
        %v1884 = vadd.f32 0.0, %v1883
        %v1885 = vpop.f32.mrb[0].mxu0
        %v1886 = vpop.f32.mrb[0].mxu0
        %v1887 = vadd.f32 0.0, %v1886
        %v1888 = vpop.f32.mrb[0].mxu0
        %1889 = vmatprep.mubr.bf16.mxu0 0
        %1890 = vmatmul.mubr.bf16.gmra.mrb[0].mxu0 %v1847
        %v1891 = vpop.f32.mrb[0].mxu0
        %v1892 = vadd.f32 0.0, %v1891
        %v1893 = vpop.f32.mrb[0].mxu0
        %v1894 = vpop.f32.mrb[0].mxu0
        %v1895 = vadd.f32 0.0, %v1894
        %v1896 = vpop.f32.mrb[0].mxu0
        %1897 = vdwg.mxu0
        %v1898 = vpack.c.bf16 %v1281, %v1277
        %v1899 = vpack.c.bf16 %v1291, %v1287
        %v1900 = vpack.c.bf16 %v1283, %v1279
        %v1901 = vpack.c.bf16 %v1293, %v1289
        %v1902 = vpack.c.bf16 %v1381, %v1378
        %v1903 = vpack.c.bf16 %v1389, %v1386
        %v1905 = vsel %vm1398, %v1898, 0
        %v1908 = vsel %vm1398, %v1899, 0
        %v1911 = vsel %vm1398, %v1900, 0
        %v1914 = vsel %vm1398, %v1901, 0
        %1916 = vmatprep.subr.bf16.mxu0 0
        %1917 = vmatpush1.bf16.xpose.msra.mxu0 %v1911
        %1918 = vmatprep.subr.bf16.mxu0 0
        %1919 = vmatpush1.bf16.xpose.msra.mxu0 %v1914
        %1920 = vmatprep.subr.bf16.mxu0 0
        %1921 = vmatpush1.bf16.xpose.msra.mxu0 0
        %1922 = vmatprep.subr.bf16.mxu0 0
        %1923 = vmatpush1.bf16.xpose.msra.mxu0 0
        %1924 = vmatprep.subr.bf16.mxu0 0
        %1925 = vmatpush1.bf16.xpose.msra.mxu0 0
        %1926 = vmatprep.subr.bf16.mxu0 0
        %1927 = vmatpush1.bf16.xpose.msra.mxu0 0
        %1928 = vmatprep.subr.bf16.mxu0 0
        %1929 = vmatpush1.bf16.xpose.msra.mxu0 0
        %1930 = vmatprep.subr.bf16.mxu0 0
        %1931 = vmatpush1.bf16.xpose.msra.mxu0 0
        %1932 = vmatprep.subr.bf16.mxu0 0
        %1933 = vmatpush1.bf16.xpose.msra.mxu0 0
        %1934 = vmatprep.subr.bf16.mxu0 0
        %1935 = vmatpush1.bf16.xpose.msra.mxu0 0
        %1936 = vmatprep.subr.bf16.mxu0 0
        %1937 = vmatpush1.bf16.xpose.msra.mxu0 0
        %1938 = vmatprep.subr.bf16.mxu0 0
        %1939 = vmatpush1.bf16.xpose.msra.mxu0 0
        %1940 = vmatprep.subr.bf16.mxu0 0
        %1941 = vmatpush1.bf16.xpose.msra.mxu0 0
        %1942 = vmatprep.subr.bf16.mxu0 0
        %1943 = vmatpush1.bf16.xpose.msra.mxu0 0
        %1944 = vmatprep.subr.bf16.mxu0 0
        %1945 = vmatpush1.bf16.xpose.msra.mxu0 0
        %1946 = vmatprep.subr.bf16.mxu0 0
        %1947 = vmatpush1.bf16.xpose.msra.mxu0 0
        %1948 = vmatprep.mubr.bf16.mxu0 0
        %1949 = vmatmul.mubr.bf16.gmra.mrb[0].mxu0 %v1905
        %v1950 = vpop.f32.mrb[0].mxu0
        %v1951 = vadd.f32 0.0, %v1950
        %v1952 = vpop.f32.mrb[0].mxu0
        %v1953 = vpop.f32.mrb[0].mxu0
        %v1954 = vadd.f32 0.0, %v1953
        %v1955 = vpop.f32.mrb[0].mxu0
        %1956 = vmatprep.mubr.bf16.mxu0 0
        %1957 = vmatmul.mubr.bf16.gmra.mrb[0].mxu0 %v1908
        %v1958 = vpop.f32.mrb[0].mxu0
        %v1959 = vadd.f32 0.0, %v1958
        %v1960 = vpop.f32.mrb[0].mxu0
        %v1961 = vpop.f32.mrb[0].mxu0
        %v1962 = vadd.f32 0.0, %v1961
        %v1963 = vpop.f32.mrb[0].mxu0
        %1964 = vdwg.mxu0
        %v1965 = vsel %vm1460, %v1951, -inf
        %1966 = vmax.xlane.f32.xlu0 %v1965
        %v1967 = vpop.xlane.xlu0 %1966
        %v1968 = vsel %vm1460, %v1954, -inf
        %1969 = vmax.xlane.f32.xlu0 %v1968
        %v1970 = vpop.xlane.xlu0 %1969
        %v1971 = vsel %vm1460, %v1959, -inf
        %1972 = vmax.xlane.f32.xlu0 %v1971
        %v1973 = vpop.xlane.xlu0 %1972
        %v1974 = vsel %vm1460, %v1962, -inf
        %1975 = vmax.xlane.f32.xlu0 %v1974
        %v1976 = vpop.xlane.xlu0 %1975
        %v1977 = vsub.f32 %v1951, %v1967
        %v1978 = vsub.f32 %v1954, %v1970
        %v1979 = vsub.f32 %v1959, %v1973
        %v1980 = vsub.f32 %v1962, %v1976
        %v1981 = vmul.f32 %v1977, 1.442695
        %v1982 = vpow.pop %v1981
        %v1983 = vmul.f32 %v1978, 1.442695
        %v1984 = vpow.pop %v1983
        %v1985 = vmul.f32 %v1979, 1.442695
        %v1986 = vpow.pop %v1985
        %v1987 = vmul.f32 %v1980, 1.442695
        %v1988 = vpow.pop %v1987
        %v1989 = vsel %vm1460, %v1982, 0.0
        %1990 = vadd.xlane.f32.xlu0 %v1989
        %v1991 = vpop.xlane.xlu0 %1990
        %v1992 = vsel %vm1460, %v1984, 0.0
        %1993 = vadd.xlane.f32.xlu0 %v1992
        %v1994 = vpop.xlane.xlu0 %1993
        %v1995 = vsel %vm1460, %v1986, 0.0
        %1996 = vadd.xlane.f32.xlu0 %v1995
        %v1997 = vpop.xlane.xlu0 %1996
        %v1998 = vsel %vm1460, %v1988, 0.0
        %1999 = vadd.xlane.f32.xlu0 %v1998
        %v2000 = vpop.xlane.xlu0 %1999
        %v2001 = vrcp.pop %v1991
        %v2002 = vrcp.pop %v1994
        %v2003 = vrcp.pop %v1997
        %v2004 = vrcp.pop %v2000
        %v2005 = vmul.f32 %v1982, %v2001
        %v2006 = vmul.f32 %v1984, %v2002
        %v2007 = vmul.f32 %v1986, %v2003
        %v2008 = vmul.f32 %v1988, %v2004
        %v2009 = vpack.c.bf16 %v2006, %v2005
        %v2010 = vpack.c.bf16 %v2008, %v2007
        %v2012 = vsel %vm1460, %v2009, 0
        %v2015 = vsel %vm1460, %v2010, 0
        %2017 = vmatprep.subr.bf16.mxu0 0
        %2018 = vmatpush1.bf16.msra.mxu0 %v1902
        %2019 = vmatprep.subr.bf16.mxu0 0
        %2020 = vmatpush1.bf16.msra.mxu0 %v1903
        %2021 = vmatprep.subr.bf16.mxu0 0
        %2022 = vmatpush1.bf16.msra.mxu0 0
        %2023 = vmatprep.subr.bf16.mxu0 0
        %2024 = vmatpush1.bf16.msra.mxu0 0
        %2025 = vmatprep.subr.bf16.mxu0 0
        %2026 = vmatpush1.bf16.msra.mxu0 0
        %2027 = vmatprep.subr.bf16.mxu0 0
        %2028 = vmatpush1.bf16.msra.mxu0 0
        %2029 = vmatprep.subr.bf16.mxu0 0
        %2030 = vmatpush1.bf16.msra.mxu0 0
        %2031 = vmatprep.subr.bf16.mxu0 0
        %2032 = vmatpush1.bf16.msra.mxu0 0
        %2033 = vmatprep.subr.bf16.mxu0 0
        %2034 = vmatpush1.bf16.msra.mxu0 0
        %2035 = vmatprep.subr.bf16.mxu0 0
        %2036 = vmatpush1.bf16.msra.mxu0 0
        %2037 = vmatprep.subr.bf16.mxu0 0
        %2038 = vmatpush1.bf16.msra.mxu0 0
        %2039 = vmatprep.subr.bf16.mxu0 0
        %2040 = vmatpush1.bf16.msra.mxu0 0
        %2041 = vmatprep.subr.bf16.mxu0 0
        %2042 = vmatpush1.bf16.msra.mxu0 0
        %2043 = vmatprep.subr.bf16.mxu0 0
        %2044 = vmatpush1.bf16.msra.mxu0 0
        %2045 = vmatprep.subr.bf16.mxu0 0
        %2046 = vmatpush1.bf16.msra.mxu0 0
        %2047 = vmatprep.subr.bf16.mxu0 0
        %2048 = vmatpush1.bf16.msra.mxu0 0
        %2049 = vmatprep.mubr.bf16.mxu0 0
        %2050 = vmatmul.mubr.bf16.gmra.mrb[0].mxu0 %v2012
        %v2051 = vpop.f32.mrb[0].mxu0
        %v2052 = vadd.f32 0.0, %v2051
        %v2053 = vpop.f32.mrb[0].mxu0
        %v2054 = vpop.f32.mrb[0].mxu0
        %v2055 = vadd.f32 0.0, %v2054
        %v2056 = vpop.f32.mrb[0].mxu0
        %2057 = vmatprep.mubr.bf16.mxu0 0
        %2058 = vmatmul.mubr.bf16.gmra.mrb[0].mxu0 %v2015
        %v2059 = vpop.f32.mrb[0].mxu0
        %v2060 = vadd.f32 0.0, %v2059
        %v2061 = vpop.f32.mrb[0].mxu0
        %v2062 = vpop.f32.mrb[0].mxu0
        %v2063 = vadd.f32 0.0, %v2062
        %v2064 = vpop.f32.mrb[0].mxu0
        %2065 = vdwg.mxu0
        %v2066 = vpack.c.bf16 %v1551, %v1548
        %v2067 = vpack.c.bf16 %v1559, %v1556
        %v2068 = vpack.c.bf16 %v1719, %v1716
        %v2069 = vpack.c.bf16 %v1727, %v1724
        %v2070 = vpack.c.bf16 %v1887, %v1884
        %v2071 = vpack.c.bf16 %v1895, %v1892
        %v2072 = vpack.c.bf16 %v2055, %v2052
        %v2073 = vpack.c.bf16 %v2063, %v2060
        %v2074 = vld [vmem:[%s609] sm:$0xf]
        %v2075 = vld [vmem:[%s609 + $0x4] sm:$0xf]
        %v2076 = vld [vmem:[%s609 + $0x8] sm:$0xf]
        %v2077 = vld [vmem:[%s609 + $0xc] sm:$0xf]
        %v2078 = vld [vmem:[%s609 + $0x10] sm:$0xf]
        %v2079 = vld [vmem:[%s609 + $0x14] sm:$0xf]
        %v2080 = vld [vmem:[%s609 + $0x18] sm:$0xf]
        %v2081 = vld [vmem:[%s609 + $0x1c] sm:$0xf]
        %2084 = vrot.lane.b32.xlu0 %v1392, 64
        %v2085 = vpop.permute.xlu0 %2084
        %2086 = vrot.lane.b32.xlu0 %v1393, 64
        %v2087 = vpop.permute.xlu0 %2086
        %2090 = vrot.lane.b32.xlu0 %v1394, 64
        %v2091 = vpop.permute.xlu0 %2090
        %2092 = vrot.lane.b32.xlu0 %v1395, 64
        %v2093 = vpop.permute.xlu0 %2092
        %v2095 = vsel %vm1398, %v2085, 0
        %v2098 = vsel %vm1398, %v2087, 0
        %v2101 = vsel %vm1398, %v2091, 0
        %v2104 = vsel %vm1398, %v2093, 0
        %2106 = vmatprep.subr.bf16.mxu0 0
        %2107 = vmatpush1.bf16.xpose.msra.mxu0 %v2101
        %2108 = vmatprep.subr.bf16.mxu0 0
        %2109 = vmatpush1.bf16.xpose.msra.mxu0 %v2104
        %2110 = vmatprep.subr.bf16.mxu0 0
        %2111 = vmatpush1.bf16.xpose.msra.mxu0 0
        %2112 = vmatprep.subr.bf16.mxu0 0
        %2113 = vmatpush1.bf16.xpose.msra.mxu0 0
        %2114 = vmatprep.subr.bf16.mxu0 0
        %2115 = vmatpush1.bf16.xpose.msra.mxu0 0
        %2116 = vmatprep.subr.bf16.mxu0 0
        %2117 = vmatpush1.bf16.xpose.msra.mxu0 0
        %2118 = vmatprep.subr.bf16.mxu0 0
        %2119 = vmatpush1.bf16.xpose.msra.mxu0 0
        %2120 = vmatprep.subr.bf16.mxu0 0
        %2121 = vmatpush1.bf16.xpose.msra.mxu0 0
        %2122 = vmatprep.subr.bf16.mxu0 0
        %2123 = vmatpush1.bf16.xpose.msra.mxu0 0
        %2124 = vmatprep.subr.bf16.mxu0 0
        %2125 = vmatpush1.bf16.xpose.msra.mxu0 0
        %2126 = vmatprep.subr.bf16.mxu0 0
        %2127 = vmatpush1.bf16.xpose.msra.mxu0 0
        %2128 = vmatprep.subr.bf16.mxu0 0
        %2129 = vmatpush1.bf16.xpose.msra.mxu0 0
        %2130 = vmatprep.subr.bf16.mxu0 0
        %2131 = vmatpush1.bf16.xpose.msra.mxu0 0
        %2132 = vmatprep.subr.bf16.mxu0 0
        %2133 = vmatpush1.bf16.xpose.msra.mxu0 0
        %2134 = vmatprep.subr.bf16.mxu0 0
        %2135 = vmatpush1.bf16.xpose.msra.mxu0 0
        %2136 = vmatprep.subr.bf16.mxu0 0
        %2137 = vmatpush1.bf16.xpose.msra.mxu0 0
        %2138 = vmatprep.mubr.bf16.mxu0 0
        %2139 = vmatmul.mubr.bf16.gmra.mrb[0].mxu0 %v2095
        %v2140 = vpop.f32.mrb[0].mxu0
        %v2141 = vadd.f32 0.0, %v2140
        %v2142 = vpop.f32.mrb[0].mxu0
        %v2143 = vpop.f32.mrb[0].mxu0
        %v2144 = vadd.f32 0.0, %v2143
        %v2145 = vpop.f32.mrb[0].mxu0
        %2146 = vmatprep.mubr.bf16.mxu0 0
        %2147 = vmatmul.mubr.bf16.gmra.mrb[0].mxu0 %v2098
        %v2148 = vpop.f32.mrb[0].mxu0
        %v2149 = vadd.f32 0.0, %v2148
        %v2150 = vpop.f32.mrb[0].mxu0
        %v2151 = vpop.f32.mrb[0].mxu0
        %v2152 = vadd.f32 0.0, %v2151
        %v2153 = vpop.f32.mrb[0].mxu0
        %2154 = vdwg.mxu0
        %v2155 = vsel %vm1460, %v2141, -inf
        %2156 = vmax.xlane.f32.xlu0 %v2155
        %v2157 = vpop.xlane.xlu0 %2156
        %v2158 = vsel %vm1460, %v2144, -inf
        %2159 = vmax.xlane.f32.xlu0 %v2158
        %v2160 = vpop.xlane.xlu0 %2159
        %v2161 = vsel %vm1460, %v2149, -inf
        %2162 = vmax.xlane.f32.xlu0 %v2161
        %v2163 = vpop.xlane.xlu0 %2162
        %v2164 = vsel %vm1460, %v2152, -inf
        %2165 = vmax.xlane.f32.xlu0 %v2164
        %v2166 = vpop.xlane.xlu0 %2165
        %v2167 = vsub.f32 %v2141, %v2157
        %v2168 = vsub.f32 %v2144, %v2160
        %v2169 = vsub.f32 %v2149, %v2163
        %v2170 = vsub.f32 %v2152, %v2166
        %v2171 = vmul.f32 %v2167, 1.442695
        %v2172 = vpow.pop %v2171
        %v2173 = vmul.f32 %v2168, 1.442695
        %v2174 = vpow.pop %v2173
        %v2175 = vmul.f32 %v2169, 1.442695
        %v2176 = vpow.pop %v2175
        %v2177 = vmul.f32 %v2170, 1.442695
        %v2178 = vpow.pop %v2177
        %v2179 = vsel %vm1460, %v2172, 0.0
        %2180 = vadd.xlane.f32.xlu0 %v2179
        %v2181 = vpop.xlane.xlu0 %2180
        %v2182 = vsel %vm1460, %v2174, 0.0
        %2183 = vadd.xlane.f32.xlu0 %v2182
        %v2184 = vpop.xlane.xlu0 %2183
        %v2185 = vsel %vm1460, %v2176, 0.0
        %2186 = vadd.xlane.f32.xlu0 %v2185
        %v2187 = vpop.xlane.xlu0 %2186
        %v2188 = vsel %vm1460, %v2178, 0.0
        %2189 = vadd.xlane.f32.xlu0 %v2188
        %v2190 = vpop.xlane.xlu0 %2189
        %v2191 = vrcp.pop %v2181
        %v2192 = vrcp.pop %v2184
        %v2193 = vrcp.pop %v2187
        %v2194 = vrcp.pop %v2190
        %v2195 = vmul.f32 %v2172, %v2191
        %v2196 = vmul.f32 %v2174, %v2192
        %v2197 = vmul.f32 %v2176, %v2193
        %v2198 = vmul.f32 %v2178, %v2194
        %v2199 = vpack.c.bf16 %v2196, %v2195
        %v2200 = vpack.c.bf16 %v2198, %v2197
        %2203 = vrot.lane.b32.xlu0 %v1396, 64
        %v2204 = vpop.permute.xlu0 %2203
        %2205 = vrot.lane.b32.xlu0 %v1397, 64
        %v2206 = vpop.permute.xlu0 %2205
        %v2210 = vsel %vm1460, %v2199, 0
        %v2213 = vsel %vm1460, %v2200, 0
        %2215 = vmatprep.subr.bf16.mxu0 0
        %2216 = vmatpush1.bf16.msra.mxu0 %v2204
        %2217 = vmatprep.subr.bf16.mxu0 0
        %2218 = vmatpush1.bf16.msra.mxu0 %v2206
        %2219 = vmatprep.subr.bf16.mxu0 0
        %2220 = vmatpush1.bf16.msra.mxu0 0
        %2221 = vmatprep.subr.bf16.mxu0 0
        %2222 = vmatpush1.bf16.msra.mxu0 0
        %2223 = vmatprep.subr.bf16.mxu0 0
        %2224 = vmatpush1.bf16.msra.mxu0 0
        %2225 = vmatprep.subr.bf16.mxu0 0
        %2226 = vmatpush1.bf16.msra.mxu0 0
        %2227 = vmatprep.subr.bf16.mxu0 0
        %2228 = vmatpush1.bf16.msra.mxu0 0
        %2229 = vmatprep.subr.bf16.mxu0 0
        %2230 = vmatpush1.bf16.msra.mxu0 0
        %2231 = vmatprep.subr.bf16.mxu0 0
        %2232 = vmatpush1.bf16.msra.mxu0 0
        %2233 = vmatprep.subr.bf16.mxu0 0
        %2234 = vmatpush1.bf16.msra.mxu0 0
        %2235 = vmatprep.subr.bf16.mxu0 0
        %2236 = vmatpush1.bf16.msra.mxu0 0
        %2237 = vmatprep.subr.bf16.mxu0 0
        %2238 = vmatpush1.bf16.msra.mxu0 0
        %2239 = vmatprep.subr.bf16.mxu0 0
        %2240 = vmatpush1.bf16.msra.mxu0 0
        %2241 = vmatprep.subr.bf16.mxu0 0
        %2242 = vmatpush1.bf16.msra.mxu0 0
        %2243 = vmatprep.subr.bf16.mxu0 0
        %2244 = vmatpush1.bf16.msra.mxu0 0
        %2245 = vmatprep.subr.bf16.mxu0 0
        %2246 = vmatpush1.bf16.msra.mxu0 0
        %2247 = vmatprep.mubr.bf16.mxu0 0
        %2248 = vmatmul.mubr.bf16.gmra.mrb[0].mxu0 %v2210
        %v2249 = vpop.f32.mrb[0].mxu0
        %v2250 = vadd.f32 0.0, %v2249
        %v2251 = vpop.f32.mrb[0].mxu0
        %v2252 = vpop.f32.mrb[0].mxu0
        %v2253 = vadd.f32 0.0, %v2252
        %v2254 = vpop.f32.mrb[0].mxu0
        %2255 = vmatprep.mubr.bf16.mxu0 0
        %2256 = vmatmul.mubr.bf16.gmra.mrb[0].mxu0 %v2213
        %v2257 = vpop.f32.mrb[0].mxu0
        %v2258 = vadd.f32 0.0, %v2257
        %v2259 = vpop.f32.mrb[0].mxu0
        %v2260 = vpop.f32.mrb[0].mxu0
        %v2261 = vadd.f32 0.0, %v2260
        %v2262 = vpop.f32.mrb[0].mxu0
        %2263 = vdwg.mxu0
        %2266 = vrot.lane.b32.xlu0 %v1562, 64
        %v2267 = vpop.permute.xlu0 %2266
        %2268 = vrot.lane.b32.xlu0 %v1563, 64
        %v2269 = vpop.permute.xlu0 %2268
        %2272 = vrot.lane.b32.xlu0 %v1564, 64
        %v2273 = vpop.permute.xlu0 %2272
        %2274 = vrot.lane.b32.xlu0 %v1565, 64
        %v2275 = vpop.permute.xlu0 %2274
        %v2277 = vsel %vm1398, %v2267, 0
        %v2280 = vsel %vm1398, %v2269, 0
        %v2283 = vsel %vm1398, %v2273, 0
        %v2286 = vsel %vm1398, %v2275, 0
        %2288 = vmatprep.subr.bf16.mxu0 0
        %2289 = vmatpush1.bf16.xpose.msra.mxu0 %v2283
        %2290 = vmatprep.subr.bf16.mxu0 0
        %2291 = vmatpush1.bf16.xpose.msra.mxu0 %v2286
        %2292 = vmatprep.subr.bf16.mxu0 0
        %2293 = vmatpush1.bf16.xpose.msra.mxu0 0
        %2294 = vmatprep.subr.bf16.mxu0 0
        %2295 = vmatpush1.bf16.xpose.msra.mxu0 0
        %2296 = vmatprep.subr.bf16.mxu0 0
        %2297 = vmatpush1.bf16.xpose.msra.mxu0 0
        %2298 = vmatprep.subr.bf16.mxu0 0
        %2299 = vmatpush1.bf16.xpose.msra.mxu0 0
        %2300 = vmatprep.subr.bf16.mxu0 0
        %2301 = vmatpush1.bf16.xpose.msra.mxu0 0
        %2302 = vmatprep.subr.bf16.mxu0 0
        %2303 = vmatpush1.bf16.xpose.msra.mxu0 0
        %2304 = vmatprep.subr.bf16.mxu0 0
        %2305 = vmatpush1.bf16.xpose.msra.mxu0 0
        %2306 = vmatprep.subr.bf16.mxu0 0
        %2307 = vmatpush1.bf16.xpose.msra.mxu0 0
        %2308 = vmatprep.subr.bf16.mxu0 0
        %2309 = vmatpush1.bf16.xpose.msra.mxu0 0
        %2310 = vmatprep.subr.bf16.mxu0 0
        %2311 = vmatpush1.bf16.xpose.msra.mxu0 0
        %2312 = vmatprep.subr.bf16.mxu0 0
        %2313 = vmatpush1.bf16.xpose.msra.mxu0 0
        %2314 = vmatprep.subr.bf16.mxu0 0
        %2315 = vmatpush1.bf16.xpose.msra.mxu0 0
        %2316 = vmatprep.subr.bf16.mxu0 0
        %2317 = vmatpush1.bf16.xpose.msra.mxu0 0
        %2318 = vmatprep.subr.bf16.mxu0 0
        %2319 = vmatpush1.bf16.xpose.msra.mxu0 0
        %2320 = vmatprep.mubr.bf16.mxu0 0
        %2321 = vmatmul.mubr.bf16.gmra.mrb[0].mxu0 %v2277
        %v2322 = vpop.f32.mrb[0].mxu0
        %v2323 = vadd.f32 0.0, %v2322
        %v2324 = vpop.f32.mrb[0].mxu0
        %v2325 = vpop.f32.mrb[0].mxu0
        %v2326 = vadd.f32 0.0, %v2325
        %v2327 = vpop.f32.mrb[0].mxu0
        %2328 = vmatprep.mubr.bf16.mxu0 0
        %2329 = vmatmul.mubr.bf16.gmra.mrb[0].mxu0 %v2280
        %v2330 = vpop.f32.mrb[0].mxu0
        %v2331 = vadd.f32 0.0, %v2330
        %v2332 = vpop.f32.mrb[0].mxu0
        %v2333 = vpop.f32.mrb[0].mxu0
        %v2334 = vadd.f32 0.0, %v2333
        %v2335 = vpop.f32.mrb[0].mxu0
        %2336 = vdwg.mxu0
        %v2337 = vsel %vm1460, %v2323, -inf
        %2338 = vmax.xlane.f32.xlu0 %v2337
        %v2339 = vpop.xlane.xlu0 %2338
        %v2340 = vsel %vm1460, %v2326, -inf
        %2341 = vmax.xlane.f32.xlu0 %v2340
        %v2342 = vpop.xlane.xlu0 %2341
        %v2343 = vsel %vm1460, %v2331, -inf
        %2344 = vmax.xlane.f32.xlu0 %v2343
        %v2345 = vpop.xlane.xlu0 %2344
        %v2346 = vsel %vm1460, %v2334, -inf
        %2347 = vmax.xlane.f32.xlu0 %v2346
        %v2348 = vpop.xlane.xlu0 %2347
        %v2349 = vsub.f32 %v2323, %v2339
        %v2350 = vsub.f32 %v2326, %v2342
        %v2351 = vsub.f32 %v2331, %v2345
        %v2352 = vsub.f32 %v2334, %v2348
        %v2353 = vmul.f32 %v2349, 1.442695
        %v2354 = vpow.pop %v2353
        %v2355 = vmul.f32 %v2350, 1.442695
        %v2356 = vpow.pop %v2355
        %v2357 = vmul.f32 %v2351, 1.442695
        %v2358 = vpow.pop %v2357
        %v2359 = vmul.f32 %v2352, 1.442695
        %v2360 = vpow.pop %v2359
        %v2361 = vsel %vm1460, %v2354, 0.0
        %2362 = vadd.xlane.f32.xlu0 %v2361
        %v2363 = vpop.xlane.xlu0 %2362
        %v2364 = vsel %vm1460, %v2356, 0.0
        %2365 = vadd.xlane.f32.xlu0 %v2364
        %v2366 = vpop.xlane.xlu0 %2365
        %v2367 = vsel %vm1460, %v2358, 0.0
        %2368 = vadd.xlane.f32.xlu0 %v2367
        %v2369 = vpop.xlane.xlu0 %2368
        %v2370 = vsel %vm1460, %v2360, 0.0
        %2371 = vadd.xlane.f32.xlu0 %v2370
        %v2372 = vpop.xlane.xlu0 %2371
        %v2373 = vrcp.pop %v2363
        %v2374 = vrcp.pop %v2366
        %v2375 = vrcp.pop %v2369
        %v2376 = vrcp.pop %v2372
        %v2377 = vmul.f32 %v2354, %v2373
        %v2378 = vmul.f32 %v2356, %v2374
        %v2379 = vmul.f32 %v2358, %v2375
        %v2380 = vmul.f32 %v2360, %v2376
        %v2381 = vpack.c.bf16 %v2378, %v2377
        %v2382 = vpack.c.bf16 %v2380, %v2379
        %2385 = vrot.lane.b32.xlu0 %v1566, 64
        %v2386 = vpop.permute.xlu0 %2385
        %2387 = vrot.lane.b32.xlu0 %v1567, 64
        %v2388 = vpop.permute.xlu0 %2387
        %v2392 = vsel %vm1460, %v2381, 0
        %v2395 = vsel %vm1460, %v2382, 0
        %2397 = vmatprep.subr.bf16.mxu0 0
        %2398 = vmatpush1.bf16.msra.mxu0 %v2386
        %2399 = vmatprep.subr.bf16.mxu0 0
        %2400 = vmatpush1.bf16.msra.mxu0 %v2388
        %2401 = vmatprep.subr.bf16.mxu0 0
        %2402 = vmatpush1.bf16.msra.mxu0 0
        %2403 = vmatprep.subr.bf16.mxu0 0
        %2404 = vmatpush1.bf16.msra.mxu0 0
        %2405 = vmatprep.subr.bf16.mxu0 0
        %2406 = vmatpush1.bf16.msra.mxu0 0
        %2407 = vmatprep.subr.bf16.mxu0 0
        %2408 = vmatpush1.bf16.msra.mxu0 0
        %2409 = vmatprep.subr.bf16.mxu0 0
        %2410 = vmatpush1.bf16.msra.mxu0 0
        %2411 = vmatprep.subr.bf16.mxu0 0
        %2412 = vmatpush1.bf16.msra.mxu0 0
        %2413 = vmatprep.subr.bf16.mxu0 0
        %2414 = vmatpush1.bf16.msra.mxu0 0
        %2415 = vmatprep.subr.bf16.mxu0 0
        %2416 = vmatpush1.bf16.msra.mxu0 0
        %2417 = vmatprep.subr.bf16.mxu0 0
        %2418 = vmatpush1.bf16.msra.mxu0 0
        %2419 = vmatprep.subr.bf16.mxu0 0
        %2420 = vmatpush1.bf16.msra.mxu0 0
        %2421 = vmatprep.subr.bf16.mxu0 0
        %2422 = vmatpush1.bf16.msra.mxu0 0
        %2423 = vmatprep.subr.bf16.mxu0 0
        %2424 = vmatpush1.bf16.msra.mxu0 0
        %2425 = vmatprep.subr.bf16.mxu0 0
        %2426 = vmatpush1.bf16.msra.mxu0 0
        %2427 = vmatprep.subr.bf16.mxu0 0
        %2428 = vmatpush1.bf16.msra.mxu0 0
        %2429 = vmatprep.mubr.bf16.mxu0 0
        %2430 = vmatmul.mubr.bf16.gmra.mrb[0].mxu0 %v2392
        %v2431 = vpop.f32.mrb[0].mxu0
        %v2432 = vadd.f32 0.0, %v2431
        %v2433 = vpop.f32.mrb[0].mxu0
        %v2434 = vpop.f32.mrb[0].mxu0
        %v2435 = vadd.f32 0.0, %v2434
        %v2436 = vpop.f32.mrb[0].mxu0
        %2437 = vmatprep.mubr.bf16.mxu0 0
        %2438 = vmatmul.mubr.bf16.gmra.mrb[0].mxu0 %v2395
        %v2439 = vpop.f32.mrb[0].mxu0
        %v2440 = vadd.f32 0.0, %v2439
        %v2441 = vpop.f32.mrb[0].mxu0
        %v2442 = vpop.f32.mrb[0].mxu0
        %v2443 = vadd.f32 0.0, %v2442
        %v2444 = vpop.f32.mrb[0].mxu0
        %2445 = vdwg.mxu0
        %2448 = vrot.lane.b32.xlu0 %v1730, 64
        %v2449 = vpop.permute.xlu0 %2448
        %2450 = vrot.lane.b32.xlu0 %v1731, 64
        %v2451 = vpop.permute.xlu0 %2450
        %2454 = vrot.lane.b32.xlu0 %v1732, 64
        %v2455 = vpop.permute.xlu0 %2454
        %2456 = vrot.lane.b32.xlu0 %v1733, 64
        %v2457 = vpop.permute.xlu0 %2456
        %v2459 = vsel %vm1398, %v2449, 0
        %v2462 = vsel %vm1398, %v2451, 0
        %v2465 = vsel %vm1398, %v2455, 0
        %v2468 = vsel %vm1398, %v2457, 0
        %2470 = vmatprep.subr.bf16.mxu0 0
        %2471 = vmatpush1.bf16.xpose.msra.mxu0 %v2465
        %2472 = vmatprep.subr.bf16.mxu0 0
        %2473 = vmatpush1.bf16.xpose.msra.mxu0 %v2468
        %2474 = vmatprep.subr.bf16.mxu0 0
        %2475 = vmatpush1.bf16.xpose.msra.mxu0 0
        %2476 = vmatprep.subr.bf16.mxu0 0
        %2477 = vmatpush1.bf16.xpose.msra.mxu0 0
        %2478 = vmatprep.subr.bf16.mxu0 0
        %2479 = vmatpush1.bf16.xpose.msra.mxu0 0
        %2480 = vmatprep.subr.bf16.mxu0 0
        %2481 = vmatpush1.bf16.xpose.msra.mxu0 0
        %2482 = vmatprep.subr.bf16.mxu0 0
        %2483 = vmatpush1.bf16.xpose.msra.mxu0 0
        %2484 = vmatprep.subr.bf16.mxu0 0
        %2485 = vmatpush1.bf16.xpose.msra.mxu0 0
        %2486 = vmatprep.subr.bf16.mxu0 0
        %2487 = vmatpush1.bf16.xpose.msra.mxu0 0
        %2488 = vmatprep.subr.bf16.mxu0 0
        %2489 = vmatpush1.bf16.xpose.msra.mxu0 0
        %2490 = vmatprep.subr.bf16.mxu0 0
        %2491 = vmatpush1.bf16.xpose.msra.mxu0 0
        %2492 = vmatprep.subr.bf16.mxu0 0
        %2493 = vmatpush1.bf16.xpose.msra.mxu0 0
        %2494 = vmatprep.subr.bf16.mxu0 0
        %2495 = vmatpush1.bf16.xpose.msra.mxu0 0
        %2496 = vmatprep.subr.bf16.mxu0 0
        %2497 = vmatpush1.bf16.xpose.msra.mxu0 0
        %2498 = vmatprep.subr.bf16.mxu0 0
        %2499 = vmatpush1.bf16.xpose.msra.mxu0 0
        %2500 = vmatprep.subr.bf16.mxu0 0
        %2501 = vmatpush1.bf16.xpose.msra.mxu0 0
        %2502 = vmatprep.mubr.bf16.mxu0 0
        %2503 = vmatmul.mubr.bf16.gmra.mrb[0].mxu0 %v2459
        %v2504 = vpop.f32.mrb[0].mxu0
        %v2505 = vadd.f32 0.0, %v2504
        %v2506 = vpop.f32.mrb[0].mxu0
        %v2507 = vpop.f32.mrb[0].mxu0
        %v2508 = vadd.f32 0.0, %v2507
        %v2509 = vpop.f32.mrb[0].mxu0
        %2510 = vmatprep.mubr.bf16.mxu0 0
        %2511 = vmatmul.mubr.bf16.gmra.mrb[0].mxu0 %v2462
        %v2512 = vpop.f32.mrb[0].mxu0
        %v2513 = vadd.f32 0.0, %v2512
        %v2514 = vpop.f32.mrb[0].mxu0
        %v2515 = vpop.f32.mrb[0].mxu0
        %v2516 = vadd.f32 0.0, %v2515
        %v2517 = vpop.f32.mrb[0].mxu0
        %2518 = vdwg.mxu0
        %v2519 = vsel %vm1460, %v2505, -inf
        %2520 = vmax.xlane.f32.xlu0 %v2519
        %v2521 = vpop.xlane.xlu0 %2520
        %v2522 = vsel %vm1460, %v2508, -inf
        %2523 = vmax.xlane.f32.xlu0 %v2522
        %v2524 = vpop.xlane.xlu0 %2523
        %v2525 = vsel %vm1460, %v2513, -inf
        %2526 = vmax.xlane.f32.xlu0 %v2525
        %v2527 = vpop.xlane.xlu0 %2526
        %v2528 = vsel %vm1460, %v2516, -inf
        %2529 = vmax.xlane.f32.xlu0 %v2528
        %v2530 = vpop.xlane.xlu0 %2529
        %v2531 = vsub.f32 %v2505, %v2521
        %v2532 = vsub.f32 %v2508, %v2524
        %v2533 = vsub.f32 %v2513, %v2527
        %v2534 = vsub.f32 %v2516, %v2530
        %v2535 = vmul.f32 %v2531, 1.442695
        %v2536 = vpow.pop %v2535
        %v2537 = vmul.f32 %v2532, 1.442695
        %v2538 = vpow.pop %v2537
        %v2539 = vmul.f32 %v2533, 1.442695
        %v2540 = vpow.pop %v2539
        %v2541 = vmul.f32 %v2534, 1.442695
        %v2542 = vpow.pop %v2541
        %v2543 = vsel %vm1460, %v2536, 0.0
        %2544 = vadd.xlane.f32.xlu0 %v2543
        %v2545 = vpop.xlane.xlu0 %2544
        %v2546 = vsel %vm1460, %v2538, 0.0
        %2547 = vadd.xlane.f32.xlu0 %v2546
        %v2548 = vpop.xlane.xlu0 %2547
        %v2549 = vsel %vm1460, %v2540, 0.0
        %2550 = vadd.xlane.f32.xlu0 %v2549
        %v2551 = vpop.xlane.xlu0 %2550
        %v2552 = vsel %vm1460, %v2542, 0.0
        %2553 = vadd.xlane.f32.xlu0 %v2552
        %v2554 = vpop.xlane.xlu0 %2553
        %v2555 = vrcp.pop %v2545
        %v2556 = vrcp.pop %v2548
        %v2557 = vrcp.pop %v2551
        %v2558 = vrcp.pop %v2554
        %v2559 = vmul.f32 %v2536, %v2555
        %v2560 = vmul.f32 %v2538, %v2556
        %v2561 = vmul.f32 %v2540, %v2557
        %v2562 = vmul.f32 %v2542, %v2558
        %v2563 = vpack.c.bf16 %v2560, %v2559
        %v2564 = vpack.c.bf16 %v2562, %v2561
        %2567 = vrot.lane.b32.xlu0 %v1734, 64
        %v2568 = vpop.permute.xlu0 %2567
        %2569 = vrot.lane.b32.xlu0 %v1735, 64
        %v2570 = vpop.permute.xlu0 %2569
        %v2574 = vsel %vm1460, %v2563, 0
        %v2577 = vsel %vm1460, %v2564, 0
        %2579 = vmatprep.subr.bf16.mxu0 0
        %2580 = vmatpush1.bf16.msra.mxu0 %v2568
        %2581 = vmatprep.subr.bf16.mxu0 0
        %2582 = vmatpush1.bf16.msra.mxu0 %v2570
        %2583 = vmatprep.subr.bf16.mxu0 0
        %2584 = vmatpush1.bf16.msra.mxu0 0
        %2585 = vmatprep.subr.bf16.mxu0 0
        %2586 = vmatpush1.bf16.msra.mxu0 0
        %2587 = vmatprep.subr.bf16.mxu0 0
        %2588 = vmatpush1.bf16.msra.mxu0 0
        %2589 = vmatprep.subr.bf16.mxu0 0
        %2590 = vmatpush1.bf16.msra.mxu0 0
        %2591 = vmatprep.subr.bf16.mxu0 0
        %2592 = vmatpush1.bf16.msra.mxu0 0
        %2593 = vmatprep.subr.bf16.mxu0 0
        %2594 = vmatpush1.bf16.msra.mxu0 0
        %2595 = vmatprep.subr.bf16.mxu0 0
        %2596 = vmatpush1.bf16.msra.mxu0 0
        %2597 = vmatprep.subr.bf16.mxu0 0
        %2598 = vmatpush1.bf16.msra.mxu0 0
        %2599 = vmatprep.subr.bf16.mxu0 0
        %2600 = vmatpush1.bf16.msra.mxu0 0
        %2601 = vmatprep.subr.bf16.mxu0 0
        %2602 = vmatpush1.bf16.msra.mxu0 0
        %2603 = vmatprep.subr.bf16.mxu0 0
        %2604 = vmatpush1.bf16.msra.mxu0 0
        %2605 = vmatprep.subr.bf16.mxu0 0
        %2606 = vmatpush1.bf16.msra.mxu0 0
        %2607 = vmatprep.subr.bf16.mxu0 0
        %2608 = vmatpush1.bf16.msra.mxu0 0
        %2609 = vmatprep.subr.bf16.mxu0 0
        %2610 = vmatpush1.bf16.msra.mxu0 0
        %2611 = vmatprep.mubr.bf16.mxu0 0
        %2612 = vmatmul.mubr.bf16.gmra.mrb[0].mxu0 %v2574
        %v2613 = vpop.f32.mrb[0].mxu0
        %v2614 = vadd.f32 0.0, %v2613
        %v2615 = vpop.f32.mrb[0].mxu0
        %v2616 = vpop.f32.mrb[0].mxu0
        %v2617 = vadd.f32 0.0, %v2616
        %v2618 = vpop.f32.mrb[0].mxu0
        %2619 = vmatprep.mubr.bf16.mxu0 0
        %2620 = vmatmul.mubr.bf16.gmra.mrb[0].mxu0 %v2577
        %v2621 = vpop.f32.mrb[0].mxu0
        %v2622 = vadd.f32 0.0, %v2621
        %v2623 = vpop.f32.mrb[0].mxu0
        %v2624 = vpop.f32.mrb[0].mxu0
        %v2625 = vadd.f32 0.0, %v2624
        %v2626 = vpop.f32.mrb[0].mxu0
        %2627 = vdwg.mxu0
        %2630 = vrot.lane.b32.xlu0 %v1898, 64
        %v2631 = vpop.permute.xlu0 %2630
        %2632 = vrot.lane.b32.xlu0 %v1899, 64
        %v2633 = vpop.permute.xlu0 %2632
        %2636 = vrot.lane.b32.xlu0 %v1900, 64
        %v2637 = vpop.permute.xlu0 %2636
        %2638 = vrot.lane.b32.xlu0 %v1901, 64
        %v2639 = vpop.permute.xlu0 %2638
        %v2641 = vsel %vm1398, %v2631, 0
        %v2644 = vsel %vm1398, %v2633, 0
        %v2647 = vsel %vm1398, %v2637, 0
        %v2650 = vsel %vm1398, %v2639, 0
        %2652 = vmatprep.subr.bf16.mxu0 0
        %2653 = vmatpush1.bf16.xpose.msra.mxu0 %v2647
        %2654 = vmatprep.subr.bf16.mxu0 0
        %2655 = vmatpush1.bf16.xpose.msra.mxu0 %v2650
        %2656 = vmatprep.subr.bf16.mxu0 0
        %2657 = vmatpush1.bf16.xpose.msra.mxu0 0
        %2658 = vmatprep.subr.bf16.mxu0 0
        %2659 = vmatpush1.bf16.xpose.msra.mxu0 0
        %2660 = vmatprep.subr.bf16.mxu0 0
        %2661 = vmatpush1.bf16.xpose.msra.mxu0 0
        %2662 = vmatprep.subr.bf16.mxu0 0
        %2663 = vmatpush1.bf16.xpose.msra.mxu0 0
        %2664 = vmatprep.subr.bf16.mxu0 0
        %2665 = vmatpush1.bf16.xpose.msra.mxu0 0
        %2666 = vmatprep.subr.bf16.mxu0 0
        %2667 = vmatpush1.bf16.xpose.msra.mxu0 0
        %2668 = vmatprep.subr.bf16.mxu0 0
        %2669 = vmatpush1.bf16.xpose.msra.mxu0 0
        %2670 = vmatprep.subr.bf16.mxu0 0
        %2671 = vmatpush1.bf16.xpose.msra.mxu0 0
        %2672 = vmatprep.subr.bf16.mxu0 0
        %2673 = vmatpush1.bf16.xpose.msra.mxu0 0
        %2674 = vmatprep.subr.bf16.mxu0 0
        %2675 = vmatpush1.bf16.xpose.msra.mxu0 0
        %2676 = vmatprep.subr.bf16.mxu0 0
        %2677 = vmatpush1.bf16.xpose.msra.mxu0 0
        %2678 = vmatprep.subr.bf16.mxu0 0
        %2679 = vmatpush1.bf16.xpose.msra.mxu0 0
        %2680 = vmatprep.subr.bf16.mxu0 0
        %2681 = vmatpush1.bf16.xpose.msra.mxu0 0
        %2682 = vmatprep.subr.bf16.mxu0 0
        %2683 = vmatpush1.bf16.xpose.msra.mxu0 0
        %2684 = vmatprep.mubr.bf16.mxu0 0
        %2685 = vmatmul.mubr.bf16.gmra.mrb[0].mxu0 %v2641
        %v2686 = vpop.f32.mrb[0].mxu0
        %v2687 = vadd.f32 0.0, %v2686
        %v2688 = vpop.f32.mrb[0].mxu0
        %v2689 = vpop.f32.mrb[0].mxu0
        %v2690 = vadd.f32 0.0, %v2689
        %v2691 = vpop.f32.mrb[0].mxu0
        %2692 = vmatprep.mubr.bf16.mxu0 0
        %2693 = vmatmul.mubr.bf16.gmra.mrb[0].mxu0 %v2644
        %v2694 = vpop.f32.mrb[0].mxu0
        %v2695 = vadd.f32 0.0, %v2694
        %v2696 = vpop.f32.mrb[0].mxu0
        %v2697 = vpop.f32.mrb[0].mxu0
        %v2698 = vadd.f32 0.0, %v2697
        %v2699 = vpop.f32.mrb[0].mxu0
        %2700 = vdwg.mxu0
        %v2701 = vsel %vm1460, %v2687, -inf
        %2702 = vmax.xlane.f32.xlu0 %v2701
        %v2703 = vpop.xlane.xlu0 %2702
        %v2704 = vsel %vm1460, %v2690, -inf
        %2705 = vmax.xlane.f32.xlu0 %v2704
        %v2706 = vpop.xlane.xlu0 %2705
        %v2707 = vsel %vm1460, %v2695, -inf
        %2708 = vmax.xlane.f32.xlu0 %v2707
        %v2709 = vpop.xlane.xlu0 %2708
        %v2710 = vsel %vm1460, %v2698, -inf
        %2711 = vmax.xlane.f32.xlu0 %v2710
        %v2712 = vpop.xlane.xlu0 %2711
        %v2713 = vsub.f32 %v2687, %v2703
        %v2714 = vsub.f32 %v2690, %v2706
        %v2715 = vsub.f32 %v2695, %v2709
        %v2716 = vsub.f32 %v2698, %v2712
        %v2717 = vmul.f32 %v2713, 1.442695
        %v2718 = vpow.pop %v2717
        %v2719 = vmul.f32 %v2714, 1.442695
        %v2720 = vpow.pop %v2719
        %v2721 = vmul.f32 %v2715, 1.442695
        %v2722 = vpow.pop %v2721
        %v2723 = vmul.f32 %v2716, 1.442695
        %v2724 = vpow.pop %v2723
        %v2725 = vsel %vm1460, %v2718, 0.0
        %2726 = vadd.xlane.f32.xlu0 %v2725
        %v2727 = vpop.xlane.xlu0 %2726
        %v2728 = vsel %vm1460, %v2720, 0.0
        %2729 = vadd.xlane.f32.xlu0 %v2728
        %v2730 = vpop.xlane.xlu0 %2729
        %v2731 = vsel %vm1460, %v2722, 0.0
        %2732 = vadd.xlane.f32.xlu0 %v2731
        %v2733 = vpop.xlane.xlu0 %2732
        %v2734 = vsel %vm1460, %v2724, 0.0
        %2735 = vadd.xlane.f32.xlu0 %v2734
        %v2736 = vpop.xlane.xlu0 %2735
        %v2737 = vrcp.pop %v2727
        %v2738 = vrcp.pop %v2730
        %v2739 = vrcp.pop %v2733
        %v2740 = vrcp.pop %v2736
        %v2741 = vmul.f32 %v2718, %v2737
        %v2742 = vmul.f32 %v2720, %v2738
        %v2743 = vmul.f32 %v2722, %v2739
        %v2744 = vmul.f32 %v2724, %v2740
        %v2745 = vpack.c.bf16 %v2742, %v2741
        %v2746 = vpack.c.bf16 %v2744, %v2743
        %2749 = vrot.lane.b32.xlu0 %v1902, 64
        %v2750 = vpop.permute.xlu0 %2749
        %2751 = vrot.lane.b32.xlu0 %v1903, 64
        %v2752 = vpop.permute.xlu0 %2751
        %v2756 = vsel %vm1460, %v2745, 0
        %v2759 = vsel %vm1460, %v2746, 0
        %2761 = vmatprep.subr.bf16.mxu0 0
        %2762 = vmatpush1.bf16.msra.mxu0 %v2750
        %2763 = vmatprep.subr.bf16.mxu0 0
        %2764 = vmatpush1.bf16.msra.mxu0 %v2752
        %2765 = vmatprep.subr.bf16.mxu0 0
        %2766 = vmatpush1.bf16.msra.mxu0 0
        %2767 = vmatprep.subr.bf16.mxu0 0
        %2768 = vmatpush1.bf16.msra.mxu0 0
        %2769 = vmatprep.subr.bf16.mxu0 0
        %2770 = vmatpush1.bf16.msra.mxu0 0
        %2771 = vmatprep.subr.bf16.mxu0 0
        %2772 = vmatpush1.bf16.msra.mxu0 0
        %2773 = vmatprep.subr.bf16.mxu0 0
        %2774 = vmatpush1.bf16.msra.mxu0 0
        %2775 = vmatprep.subr.bf16.mxu0 0
        %2776 = vmatpush1.bf16.msra.mxu0 0
        %2777 = vmatprep.subr.bf16.mxu0 0
        %2778 = vmatpush1.bf16.msra.mxu0 0
        %2779 = vmatprep.subr.bf16.mxu0 0
        %2780 = vmatpush1.bf16.msra.mxu0 0
        %2781 = vmatprep.subr.bf16.mxu0 0
        %2782 = vmatpush1.bf16.msra.mxu0 0
        %2783 = vmatprep.subr.bf16.mxu0 0
        %2784 = vmatpush1.bf16.msra.mxu0 0
        %2785 = vmatprep.subr.bf16.mxu0 0
        %2786 = vmatpush1.bf16.msra.mxu0 0
        %2787 = vmatprep.subr.bf16.mxu0 0
        %2788 = vmatpush1.bf16.msra.mxu0 0
        %2789 = vmatprep.subr.bf16.mxu0 0
        %2790 = vmatpush1.bf16.msra.mxu0 0
        %2791 = vmatprep.subr.bf16.mxu0 0
        %2792 = vmatpush1.bf16.msra.mxu0 0
        %2793 = vmatprep.mubr.bf16.mxu0 0
        %2794 = vmatmul.mubr.bf16.gmra.mrb[0].mxu0 %v2756
        %v2795 = vpop.f32.mrb[0].mxu0
        %v2796 = vadd.f32 0.0, %v2795
        %v2797 = vpop.f32.mrb[0].mxu0
        %v2798 = vpop.f32.mrb[0].mxu0
        %v2799 = vadd.f32 0.0, %v2798
        %v2800 = vpop.f32.mrb[0].mxu0
        %2801 = vmatprep.mubr.bf16.mxu0 0
        %2802 = vmatmul.mubr.bf16.gmra.mrb[0].mxu0 %v2759
        %v2803 = vpop.f32.mrb[0].mxu0
        %v2804 = vadd.f32 0.0, %v2803
        %v2805 = vpop.f32.mrb[0].mxu0
        %v2806 = vpop.f32.mrb[0].mxu0
        %v2807 = vadd.f32 0.0, %v2806
        %v2808 = vpop.f32.mrb[0].mxu0
        %2809 = vdwg.mxu0
        %v2810 = vpack.c.bf16 %v2253, %v2250
        %v2811 = vpack.c.bf16 %v2261, %v2258
        %v2812 = vpack.c.bf16 %v2435, %v2432
        %v2813 = vpack.c.bf16 %v2443, %v2440
        %v2814 = vpack.c.bf16 %v2617, %v2614
        %v2815 = vpack.c.bf16 %v2625, %v2622
        %v2816 = vpack.c.bf16 %v2799, %v2796
        %v2817 = vpack.c.bf16 %v2807, %v2804
        %v2818 = vld [vmem:[%s609 + $0x20] sm:$0xf]
        %v2819 = vld [vmem:[%s609 + $0x24] sm:$0xf]
        %v2820 = vld [vmem:[%s609 + $0x28] sm:$0xf]
        %v2821 = vld [vmem:[%s609 + $0x2c] sm:$0xf]
        %v2822 = vld [vmem:[%s609 + $0x30] sm:$0xf]
        %v2823 = vld [vmem:[%s609 + $0x34] sm:$0xf]
        %v2824 = vld [vmem:[%s609 + $0x38] sm:$0xf]
        %v2825 = vld [vmem:[%s609 + $0x3c] sm:$0xf]
        %v2834 = vunpack.c.l.b16 %v2818
        %v2835 = vunpack.c.l.b16 %v2819
        %v2836 = vunpack.c.l.b16 %v2820
        %v2837 = vunpack.c.l.b16 %v2821
        %v2838 = vunpack.c.l.b16 %v2822
        %v2839 = vunpack.c.l.b16 %v2823
        %v2840 = vunpack.c.l.b16 %v2824
        %v2841 = vunpack.c.l.b16 %v2825
        %v2842 = vpack.c.b16 %v2835, %v2834
        %v2843 = vpack.c.b16 %v2837, %v2836
        %v2844 = vpack.c.b16 %v2839, %v2838
        %v2845 = vpack.c.b16 %v2841, %v2840
        %v2851 = vsel %vm1398, %v2810, 0
        %v2854 = vsel %vm1398, %v2811, 0
        %v2857 = vsel %vm1398, %v2812, 0
        %v2860 = vsel %vm1398, %v2813, 0
        %v2863 = vsel %vm1398, %v2814, 0
        %v2866 = vsel %vm1398, %v2815, 0
        %v2869 = vsel %vm1398, %v2816, 0
        %v2872 = vsel %vm1398, %v2817, 0
        %2874 = vmatprep.subr.bf16.mxu0 0
        %2875 = vmatpush1.bf16.msra.mxu0 %v2842
        %2876 = vmatprep.subr.bf16.mxu0 0
        %2877 = vmatpush1.bf16.msra.mxu0 %v2843
        %2878 = vmatprep.subr.bf16.mxu0 0
        %2879 = vmatpush1.bf16.msra.mxu0 %v2844
        %2880 = vmatprep.subr.bf16.mxu0 0
        %2881 = vmatpush1.bf16.msra.mxu0 %v2845
        %2882 = vmatprep.subr.bf16.mxu0 0
        %2883 = vmatpush1.bf16.msra.mxu0 0
        %2884 = vmatprep.subr.bf16.mxu0 0
        %2885 = vmatpush1.bf16.msra.mxu0 0
        %2886 = vmatprep.subr.bf16.mxu0 0
        %2887 = vmatpush1.bf16.msra.mxu0 0
        %2888 = vmatprep.subr.bf16.mxu0 0
        %2889 = vmatpush1.bf16.msra.mxu0 0
        %2890 = vmatprep.subr.bf16.mxu0 0
        %2891 = vmatpush1.bf16.msra.mxu0 0
        %2892 = vmatprep.subr.bf16.mxu0 0
        %2893 = vmatpush1.bf16.msra.mxu0 0
        %2894 = vmatprep.subr.bf16.mxu0 0
        %2895 = vmatpush1.bf16.msra.mxu0 0
        %2896 = vmatprep.subr.bf16.mxu0 0
        %2897 = vmatpush1.bf16.msra.mxu0 0
        %2898 = vmatprep.subr.bf16.mxu0 0
        %2899 = vmatpush1.bf16.msra.mxu0 0
        %2900 = vmatprep.subr.bf16.mxu0 0
        %2901 = vmatpush1.bf16.msra.mxu0 0
        %2902 = vmatprep.subr.bf16.mxu0 0
        %2903 = vmatpush1.bf16.msra.mxu0 0
        %2904 = vmatprep.subr.bf16.mxu0 0
        %2905 = vmatpush1.bf16.msra.mxu0 0
        %2906 = vmatprep.mubr.bf16.mxu0 0
        %2907 = vmatmul.mubr.bf16.gmra.mrb[0].mxu0 %v2851
        %v2908 = vpop.f32.mrb[0].mxu0
        %v2909 = vadd.f32 0.0, %v2908
        %v2910 = vpop.f32.mrb[0].mxu0
        %v2911 = vpop.f32.mrb[0].mxu0
        %v2912 = vadd.f32 0.0, %v2911
        %v2913 = vpop.f32.mrb[0].mxu0
        %2914 = vmatprep.mubr.bf16.mxu0 0
        %2915 = vmatmul.mubr.bf16.gmra.mrb[0].mxu0 %v2854
        %v2916 = vpop.f32.mrb[0].mxu0
        %v2917 = vadd.f32 0.0, %v2916
        %v2918 = vpop.f32.mrb[0].mxu0
        %v2919 = vpop.f32.mrb[0].mxu0
        %v2920 = vadd.f32 0.0, %v2919
        %v2921 = vpop.f32.mrb[0].mxu0
        %2922 = vmatprep.mubr.bf16.mxu0 0
        %2923 = vmatmul.mubr.bf16.gmra.mrb[0].mxu0 %v2857
        %v2924 = vpop.f32.mrb[0].mxu0
        %v2925 = vadd.f32 0.0, %v2924
        %v2926 = vpop.f32.mrb[0].mxu0
        %v2927 = vpop.f32.mrb[0].mxu0
        %v2928 = vadd.f32 0.0, %v2927
        %v2929 = vpop.f32.mrb[0].mxu0
        %2930 = vmatprep.mubr.bf16.mxu0 0
        %2931 = vmatmul.mubr.bf16.gmra.mrb[0].mxu0 %v2860
        %v2932 = vpop.f32.mrb[0].mxu0
        %v2933 = vadd.f32 0.0, %v2932
        %v2934 = vpop.f32.mrb[0].mxu0
        %v2935 = vpop.f32.mrb[0].mxu0
        %v2936 = vadd.f32 0.0, %v2935
        %v2937 = vpop.f32.mrb[0].mxu0
        %2938 = vmatprep.mubr.bf16.mxu0 0
        %2939 = vmatmul.mubr.bf16.gmra.mrb[0].mxu0 %v2863
        %v2940 = vpop.f32.mrb[0].mxu0
        %v2941 = vadd.f32 0.0, %v2940
        %v2942 = vpop.f32.mrb[0].mxu0
        %v2943 = vpop.f32.mrb[0].mxu0
        %v2944 = vadd.f32 0.0, %v2943
        %v2945 = vpop.f32.mrb[0].mxu0
        %2946 = vmatprep.mubr.bf16.mxu0 0
        %2947 = vmatmul.mubr.bf16.gmra.mrb[0].mxu0 %v2866
        %v2948 = vpop.f32.mrb[0].mxu0
        %v2949 = vadd.f32 0.0, %v2948
        %v2950 = vpop.f32.mrb[0].mxu0
        %v2951 = vpop.f32.mrb[0].mxu0
        %v2952 = vadd.f32 0.0, %v2951
        %v2953 = vpop.f32.mrb[0].mxu0
        %2954 = vmatprep.mubr.bf16.mxu0 0
        %2955 = vmatmul.mubr.bf16.gmra.mrb[0].mxu0 %v2869
        %v2956 = vpop.f32.mrb[0].mxu0
        %v2957 = vadd.f32 0.0, %v2956
        %v2958 = vpop.f32.mrb[0].mxu0
        %v2959 = vpop.f32.mrb[0].mxu0
        %v2960 = vadd.f32 0.0, %v2959
        %v2961 = vpop.f32.mrb[0].mxu0
        %2962 = vmatprep.mubr.bf16.mxu0 0
        %2963 = vmatmul.mubr.bf16.gmra.mrb[0].mxu0 %v2872
        %v2964 = vpop.f32.mrb[0].mxu0
        %v2965 = vadd.f32 0.0, %v2964
        %v2966 = vpop.f32.mrb[0].mxu0
        %v2967 = vpop.f32.mrb[0].mxu0
        %v2968 = vadd.f32 0.0, %v2967
        %v2969 = vpop.f32.mrb[0].mxu0
        %2970 = vdwg.mxu0
        %v2979 = vunpack.c.l.b16 %v2074
        %v2980 = vunpack.c.l.b16 %v2075
        %v2981 = vunpack.c.l.b16 %v2076
        %v2982 = vunpack.c.l.b16 %v2077
        %v2983 = vunpack.c.l.b16 %v2078
        %v2984 = vunpack.c.l.b16 %v2079
        %v2985 = vunpack.c.l.b16 %v2080
        %v2986 = vunpack.c.l.b16 %v2081
        %v2987 = vpack.c.b16 %v2980, %v2979
        %v2988 = vpack.c.b16 %v2982, %v2981
        %v2989 = vpack.c.b16 %v2984, %v2983
        %v2990 = vpack.c.b16 %v2986, %v2985
        %v2996 = vsel %vm1398, %v2066, 0
        %v2999 = vsel %vm1398, %v2067, 0
        %v3002 = vsel %vm1398, %v2068, 0
        %v3005 = vsel %vm1398, %v2069, 0
        %v3008 = vsel %vm1398, %v2070, 0
        %v3011 = vsel %vm1398, %v2071, 0
        %v3014 = vsel %vm1398, %v2072, 0
        %v3017 = vsel %vm1398, %v2073, 0
        %3019 = vmatprep.subr.bf16.mxu0 0
        %3020 = vmatpush1.bf16.msra.mxu0 %v2987
        %3021 = vmatprep.subr.bf16.mxu0 0
        %3022 = vmatpush1.bf16.msra.mxu0 %v2988
        %3023 = vmatprep.subr.bf16.mxu0 0
        %3024 = vmatpush1.bf16.msra.mxu0 %v2989
        %3025 = vmatprep.subr.bf16.mxu0 0
        %3026 = vmatpush1.bf16.msra.mxu0 %v2990
        %3027 = vmatprep.subr.bf16.mxu0 0
        %3028 = vmatpush1.bf16.msra.mxu0 0
        %3029 = vmatprep.subr.bf16.mxu0 0
        %3030 = vmatpush1.bf16.msra.mxu0 0
        %3031 = vmatprep.subr.bf16.mxu0 0
        %3032 = vmatpush1.bf16.msra.mxu0 0
        %3033 = vmatprep.subr.bf16.mxu0 0
        %3034 = vmatpush1.bf16.msra.mxu0 0
        %3035 = vmatprep.subr.bf16.mxu0 0
        %3036 = vmatpush1.bf16.msra.mxu0 0
        %3037 = vmatprep.subr.bf16.mxu0 0
        %3038 = vmatpush1.bf16.msra.mxu0 0
        %3039 = vmatprep.subr.bf16.mxu0 0
        %3040 = vmatpush1.bf16.msra.mxu0 0
        %3041 = vmatprep.subr.bf16.mxu0 0
        %3042 = vmatpush1.bf16.msra.mxu0 0
        %3043 = vmatprep.subr.bf16.mxu0 0
        %3044 = vmatpush1.bf16.msra.mxu0 0
        %3045 = vmatprep.subr.bf16.mxu0 0
        %3046 = vmatpush1.bf16.msra.mxu0 0
        %3047 = vmatprep.subr.bf16.mxu0 0
        %3048 = vmatpush1.bf16.msra.mxu0 0
        %3049 = vmatprep.subr.bf16.mxu0 0
        %3050 = vmatpush1.bf16.msra.mxu0 0
        %3051 = vmatprep.mubr.bf16.mxu0 0
        %3052 = vmatmul.mubr.bf16.gmra.mrb[0].mxu0 %v2996
        %v3053 = vpop.f32.mrb[0].mxu0
        %v3054 = vadd.f32 %v2909, %v3053
        %v3055 = vpop.f32.mrb[0].mxu0
        %v3056 = vpop.f32.mrb[0].mxu0
        %v3057 = vadd.f32 %v2912, %v3056
        %v3058 = vpop.f32.mrb[0].mxu0
        %3059 = vmatprep.mubr.bf16.mxu0 0
        %3060 = vmatmul.mubr.bf16.gmra.mrb[0].mxu0 %v2999
        %v3061 = vpop.f32.mrb[0].mxu0
        %v3062 = vadd.f32 %v2917, %v3061
        %v3063 = vpop.f32.mrb[0].mxu0
        %v3064 = vpop.f32.mrb[0].mxu0
        %v3065 = vadd.f32 %v2920, %v3064
        %v3066 = vpop.f32.mrb[0].mxu0
        %3067 = vmatprep.mubr.bf16.mxu0 0
        %3068 = vmatmul.mubr.bf16.gmra.mrb[0].mxu0 %v3002
        %v3069 = vpop.f32.mrb[0].mxu0
        %v3070 = vadd.f32 %v2925, %v3069
        %v3071 = vpop.f32.mrb[0].mxu0
        %v3072 = vpop.f32.mrb[0].mxu0
        %v3073 = vadd.f32 %v2928, %v3072
        %v3074 = vpop.f32.mrb[0].mxu0
        %3075 = vmatprep.mubr.bf16.mxu0 0
        %3076 = vmatmul.mubr.bf16.gmra.mrb[0].mxu0 %v3005
        %v3077 = vpop.f32.mrb[0].mxu0
        %v3078 = vadd.f32 %v2933, %v3077
        %v3079 = vpop.f32.mrb[0].mxu0
        %v3080 = vpop.f32.mrb[0].mxu0
        %v3081 = vadd.f32 %v2936, %v3080
        %v3082 = vpop.f32.mrb[0].mxu0
        %3083 = vmatprep.mubr.bf16.mxu0 0
        %3084 = vmatmul.mubr.bf16.gmra.mrb[0].mxu0 %v3008
        %v3085 = vpop.f32.mrb[0].mxu0
        %v3086 = vadd.f32 %v2941, %v3085
        %v3087 = vpop.f32.mrb[0].mxu0
        %v3088 = vpop.f32.mrb[0].mxu0
        %v3089 = vadd.f32 %v2944, %v3088
        %v3090 = vpop.f32.mrb[0].mxu0
        %3091 = vmatprep.mubr.bf16.mxu0 0
        %3092 = vmatmul.mubr.bf16.gmra.mrb[0].mxu0 %v3011
        %v3093 = vpop.f32.mrb[0].mxu0
        %v3094 = vadd.f32 %v2949, %v3093
        %v3095 = vpop.f32.mrb[0].mxu0
        %v3096 = vpop.f32.mrb[0].mxu0
        %v3097 = vadd.f32 %v2952, %v3096
        %v3098 = vpop.f32.mrb[0].mxu0
        %3099 = vmatprep.mubr.bf16.mxu0 0
        %3100 = vmatmul.mubr.bf16.gmra.mrb[0].mxu0 %v3014
        %v3101 = vpop.f32.mrb[0].mxu0
        %v3102 = vadd.f32 %v2957, %v3101
        %v3103 = vpop.f32.mrb[0].mxu0
        %v3104 = vpop.f32.mrb[0].mxu0
        %v3105 = vadd.f32 %v2960, %v3104
        %v3106 = vpop.f32.mrb[0].mxu0
        %3107 = vmatprep.mubr.bf16.mxu0 0
        %3108 = vmatmul.mubr.bf16.gmra.mrb[0].mxu0 %v3017
        %v3109 = vpop.f32.mrb[0].mxu0
        %v3110 = vadd.f32 %v2965, %v3109
        %v3111 = vpop.f32.mrb[0].mxu0
        %v3112 = vpop.f32.mrb[0].mxu0
        %v3113 = vadd.f32 %v2968, %v3112
        %v3114 = vpop.f32.mrb[0].mxu0
        %3115 = vdwg.mxu0
        %v3116 = vadd.f32 %v775, %v3054
        %v3117 = vadd.f32 %v776, %v3057
        %v3118 = vadd.f32 %v777, %v3062
        %v3119 = vadd.f32 %v778, %v3065
        %v3120 = vadd.f32 %v779, %v3070
        %v3121 = vadd.f32 %v780, %v3073
        %v3122 = vadd.f32 %v781, %v3078
        %v3123 = vadd.f32 %v782, %v3081
        %v3124 = vadd.f32 %v783, %v3086
        %v3125 = vadd.f32 %v784, %v3089
        %v3126 = vadd.f32 %v785, %v3094
        %v3127 = vadd.f32 %v786, %v3097
        %v3128 = vadd.f32 %v787, %v3102
        %v3129 = vadd.f32 %v788, %v3105
        %v3130 = vadd.f32 %v789, %v3110
        %v3131 = vadd.f32 %v790, %v3113
        %v3132 = vld [vmem:[%s726] sm:$0x1]
        %v3134 = vlaneseq
        %v3135 = vshrl.u32 %v3134, 7
        %v3136 = vsub.s32 0, %v3135
        %v3137 = vrot.slane %v3132, %v3136
        %v3139 = vadd.f32 %v3116, %v3137
        %v3140 = vadd.f32 %v3117, %v3137
        %v3141 = vadd.f32 %v3118, %v3137
        %v3142 = vadd.f32 %v3119, %v3137
        %v3143 = vadd.f32 %v3120, %v3137
        %v3144 = vadd.f32 %v3121, %v3137
        %v3145 = vadd.f32 %v3122, %v3137
        %v3146 = vadd.f32 %v3123, %v3137
        %v3147 = vadd.f32 %v3124, %v3137
        %v3148 = vadd.f32 %v3125, %v3137
        %v3149 = vadd.f32 %v3126, %v3137
        %v3150 = vadd.f32 %v3127, %v3137
        %v3151 = vadd.f32 %v3128, %v3137
        %v3152 = vadd.f32 %v3129, %v3137
        %v3153 = vadd.f32 %v3130, %v3137
        %v3154 = vadd.f32 %v3131, %v3137
        %v3155 = vld [vmem:[%s729] sm:$0x1]
        %v3156 = vld [vmem:[%s617] sm:$0x1]
        %3157 = vadd.xlane.f32.xlu0 %v3139
        %v3158 = vpop.xlane.xlu0 %3157
        %3159 = vadd.xlane.f32.xlu0 %v3140
        %v3160 = vpop.xlane.xlu0 %3159
        %3161 = vadd.xlane.f32.xlu0 %v3141
        %v3162 = vpop.xlane.xlu0 %3161
        %3163 = vadd.xlane.f32.xlu0 %v3142
        %v3164 = vpop.xlane.xlu0 %3163
        %3165 = vadd.xlane.f32.xlu0 %v3143
        %v3166 = vpop.xlane.xlu0 %3165
        %3167 = vadd.xlane.f32.xlu0 %v3144
        %v3168 = vpop.xlane.xlu0 %3167
        %3169 = vadd.xlane.f32.xlu0 %v3145
        %v3170 = vpop.xlane.xlu0 %3169
        %3171 = vadd.xlane.f32.xlu0 %v3146
        %v3172 = vpop.xlane.xlu0 %3171
        %3173 = vadd.xlane.f32.xlu0 %v3147
        %v3174 = vpop.xlane.xlu0 %3173
        %3175 = vadd.xlane.f32.xlu0 %v3148
        %v3176 = vpop.xlane.xlu0 %3175
        %3177 = vadd.xlane.f32.xlu0 %v3149
        %v3178 = vpop.xlane.xlu0 %3177
        %3179 = vadd.xlane.f32.xlu0 %v3150
        %v3180 = vpop.xlane.xlu0 %3179
        %3181 = vadd.xlane.f32.xlu0 %v3151
        %v3182 = vpop.xlane.xlu0 %3181
        %3183 = vadd.xlane.f32.xlu0 %v3152
        %v3184 = vpop.xlane.xlu0 %3183
        %3185 = vadd.xlane.f32.xlu0 %v3153
        %v3186 = vpop.xlane.xlu0 %3185
        %3187 = vadd.xlane.f32.xlu0 %v3154
        %v3188 = vpop.xlane.xlu0 %3187
        %v3189 = vmul.f32 %v3158, %v825
        %v3190 = vmul.f32 %v3160, %v825
        %v3191 = vmul.f32 %v3162, %v825
        %v3192 = vmul.f32 %v3164, %v825
        %v3193 = vmul.f32 %v3166, %v825
        %v3194 = vmul.f32 %v3168, %v825
        %v3195 = vmul.f32 %v3170, %v825
        %v3196 = vmul.f32 %v3172, %v825
        %v3197 = vmul.f32 %v3174, %v825
        %v3198 = vmul.f32 %v3176, %v825
        %v3199 = vmul.f32 %v3178, %v825
        %v3200 = vmul.f32 %v3180, %v825
        %v3201 = vmul.f32 %v3182, %v825
        %v3202 = vmul.f32 %v3184, %v825
        %v3203 = vmul.f32 %v3186, %v825
        %v3204 = vmul.f32 %v3188, %v825
        %v3205 = vsub.f32 %v3139, %v3189
        %v3206 = vsub.f32 %v3140, %v3190
        %v3207 = vsub.f32 %v3141, %v3191
        %v3208 = vsub.f32 %v3142, %v3192
        %v3209 = vsub.f32 %v3143, %v3193
        %v3210 = vsub.f32 %v3144, %v3194
        %v3211 = vsub.f32 %v3145, %v3195
        %v3212 = vsub.f32 %v3146, %v3196
        %v3213 = vsub.f32 %v3147, %v3197
        %v3214 = vsub.f32 %v3148, %v3198
        %v3215 = vsub.f32 %v3149, %v3199
        %v3216 = vsub.f32 %v3150, %v3200
        %v3217 = vsub.f32 %v3151, %v3201
        %v3218 = vsub.f32 %v3152, %v3202
        %v3219 = vsub.f32 %v3153, %v3203
        %v3220 = vsub.f32 %v3154, %v3204
        %v3221 = vmul.f32 %v3205, %v3205
        %v3222 = vmul.f32 %v3206, %v3206
        %v3223 = vmul.f32 %v3207, %v3207
        %v3224 = vmul.f32 %v3208, %v3208
        %v3225 = vmul.f32 %v3209, %v3209
        %v3226 = vmul.f32 %v3210, %v3210
        %v3227 = vmul.f32 %v3211, %v3211
        %v3228 = vmul.f32 %v3212, %v3212
        %v3229 = vmul.f32 %v3213, %v3213
        %v3230 = vmul.f32 %v3214, %v3214
        %v3231 = vmul.f32 %v3215, %v3215
        %v3232 = vmul.f32 %v3216, %v3216
        %v3233 = vmul.f32 %v3217, %v3217
        %v3234 = vmul.f32 %v3218, %v3218
        %v3235 = vmul.f32 %v3219, %v3219
        %v3236 = vmul.f32 %v3220, %v3220
        %3237 = vadd.xlane.f32.xlu0 %v3221
        %v3238 = vpop.xlane.xlu0 %3237
        %3239 = vadd.xlane.f32.xlu0 %v3222
        %v3240 = vpop.xlane.xlu0 %3239
        %3241 = vadd.xlane.f32.xlu0 %v3223
        %v3242 = vpop.xlane.xlu0 %3241
        %3243 = vadd.xlane.f32.xlu0 %v3224
        %v3244 = vpop.xlane.xlu0 %3243
        %3245 = vadd.xlane.f32.xlu0 %v3225
        %v3246 = vpop.xlane.xlu0 %3245
        %3247 = vadd.xlane.f32.xlu0 %v3226
        %v3248 = vpop.xlane.xlu0 %3247
        %3249 = vadd.xlane.f32.xlu0 %v3227
        %v3250 = vpop.xlane.xlu0 %3249
        %3251 = vadd.xlane.f32.xlu0 %v3228
        %v3252 = vpop.xlane.xlu0 %3251
        %3253 = vadd.xlane.f32.xlu0 %v3229
        %v3254 = vpop.xlane.xlu0 %3253
        %3255 = vadd.xlane.f32.xlu0 %v3230
        %v3256 = vpop.xlane.xlu0 %3255
        %3257 = vadd.xlane.f32.xlu0 %v3231
        %v3258 = vpop.xlane.xlu0 %3257
        %3259 = vadd.xlane.f32.xlu0 %v3232
        %v3260 = vpop.xlane.xlu0 %3259
        %3261 = vadd.xlane.f32.xlu0 %v3233
        %v3262 = vpop.xlane.xlu0 %3261
        %3263 = vadd.xlane.f32.xlu0 %v3234
        %v3264 = vpop.xlane.xlu0 %3263
        %3265 = vadd.xlane.f32.xlu0 %v3235
        %v3266 = vpop.xlane.xlu0 %3265
        %3267 = vadd.xlane.f32.xlu0 %v3236
        %v3268 = vpop.xlane.xlu0 %3267
        %v3269 = vmul.f32 %v3238, %v825
        %v3270 = vmul.f32 %v3240, %v825
        %v3271 = vmul.f32 %v3242, %v825
        %v3272 = vmul.f32 %v3244, %v825
        %v3273 = vmul.f32 %v3246, %v825
        %v3274 = vmul.f32 %v3248, %v825
        %v3275 = vmul.f32 %v3250, %v825
        %v3276 = vmul.f32 %v3252, %v825
        %v3277 = vmul.f32 %v3254, %v825
        %v3278 = vmul.f32 %v3256, %v825
        %v3279 = vmul.f32 %v3258, %v825
        %v3280 = vmul.f32 %v3260, %v825
        %v3281 = vmul.f32 %v3262, %v825
        %v3282 = vmul.f32 %v3264, %v825
        %v3283 = vmul.f32 %v3266, %v825
        %v3284 = vmul.f32 %v3268, %v825
        %v3285 = vadd.f32 %v3269, 1e-05
        %v3286 = vadd.f32 %v3270, 1e-05
        %v3287 = vadd.f32 %v3271, 1e-05
        %v3288 = vadd.f32 %v3272, 1e-05
        %v3289 = vadd.f32 %v3273, 1e-05
        %v3290 = vadd.f32 %v3274, 1e-05
        %v3291 = vadd.f32 %v3275, 1e-05
        %v3292 = vadd.f32 %v3276, 1e-05
        %v3293 = vadd.f32 %v3277, 1e-05
        %v3294 = vadd.f32 %v3278, 1e-05
        %v3295 = vadd.f32 %v3279, 1e-05
        %v3296 = vadd.f32 %v3280, 1e-05
        %v3297 = vadd.f32 %v3281, 1e-05
        %v3298 = vadd.f32 %v3282, 1e-05
        %v3299 = vadd.f32 %v3283, 1e-05
        %v3300 = vadd.f32 %v3284, 1e-05
        %v3301 = vrsqrt.pop %v3285
        %v3302 = vrsqrt.pop %v3286
        %v3303 = vrsqrt.pop %v3287
        %v3304 = vrsqrt.pop %v3288
        %v3305 = vrsqrt.pop %v3289
        %v3306 = vrsqrt.pop %v3290
        %v3307 = vrsqrt.pop %v3291
        %v3308 = vrsqrt.pop %v3292
        %v3309 = vrsqrt.pop %v3293
        %v3310 = vrsqrt.pop %v3294
        %v3311 = vrsqrt.pop %v3295
        %v3312 = vrsqrt.pop %v3296
        %v3313 = vrsqrt.pop %v3297
        %v3314 = vrsqrt.pop %v3298
        %v3315 = vrsqrt.pop %v3299
        %v3316 = vrsqrt.pop %v3300
        %v3317 = vmul.f32 %v3205, %v3301
        %v3318 = vmul.f32 %v3206, %v3302
        %v3319 = vmul.f32 %v3207, %v3303
        %v3320 = vmul.f32 %v3208, %v3304
        %v3321 = vmul.f32 %v3209, %v3305
        %v3322 = vmul.f32 %v3210, %v3306
        %v3323 = vmul.f32 %v3211, %v3307
        %v3324 = vmul.f32 %v3212, %v3308
        %v3325 = vmul.f32 %v3213, %v3309
        %v3326 = vmul.f32 %v3214, %v3310
        %v3327 = vmul.f32 %v3215, %v3311
        %v3328 = vmul.f32 %v3216, %v3312
        %v3329 = vmul.f32 %v3217, %v3313
        %v3330 = vmul.f32 %v3218, %v3314
        %v3331 = vmul.f32 %v3219, %v3315
        %v3332 = vmul.f32 %v3220, %v3316
        %v3334 = vlaneseq
        %v3335 = vshrl.u32 %v3334, 7
        %v3336 = vsub.s32 0, %v3335
        %v3337 = vrot.slane %v3155, %v3336
        %v3339 = vmul.f32 %v3317, %v3337
        %v3340 = vmul.f32 %v3318, %v3337
        %v3341 = vmul.f32 %v3319, %v3337
        %v3342 = vmul.f32 %v3320, %v3337
        %v3343 = vmul.f32 %v3321, %v3337
        %v3344 = vmul.f32 %v3322, %v3337
        %v3345 = vmul.f32 %v3323, %v3337
        %v3346 = vmul.f32 %v3324, %v3337
        %v3347 = vmul.f32 %v3325, %v3337
        %v3348 = vmul.f32 %v3326, %v3337
        %v3349 = vmul.f32 %v3327, %v3337
        %v3350 = vmul.f32 %v3328, %v3337
        %v3351 = vmul.f32 %v3329, %v3337
        %v3352 = vmul.f32 %v3330, %v3337
        %v3353 = vmul.f32 %v3331, %v3337
        %v3354 = vmul.f32 %v3332, %v3337
        %v3356 = vlaneseq
        %v3357 = vshrl.u32 %v3356, 7
        %v3358 = vsub.s32 0, %v3357
        %v3359 = vrot.slane %v3156, %v3358
        %v3361 = vadd.f32 %v3339, %v3359
        %v3362 = vadd.f32 %v3340, %v3359
        %v3363 = vadd.f32 %v3341, %v3359
        %v3364 = vadd.f32 %v3342, %v3359
        %v3365 = vadd.f32 %v3343, %v3359
        %v3366 = vadd.f32 %v3344, %v3359
        %v3367 = vadd.f32 %v3345, %v3359
        %v3368 = vadd.f32 %v3346, %v3359
        %v3369 = vadd.f32 %v3347, %v3359
        %v3370 = vadd.f32 %v3348, %v3359
        %v3371 = vadd.f32 %v3349, %v3359
        %v3372 = vadd.f32 %v3350, %v3359
        %v3373 = vadd.f32 %v3351, %v3359
        %v3374 = vadd.f32 %v3352, %v3359
        %v3375 = vadd.f32 %v3353, %v3359
        %v3376 = vadd.f32 %v3354, %v3359
        %v3377 = vpack.c.bf16 %v3362, %v3361
        %v3378 = vpack.c.bf16 %v3364, %v3363
        %v3379 = vpack.c.bf16 %v3366, %v3365
        %v3380 = vpack.c.bf16 %v3368, %v3367
        %v3381 = vpack.c.bf16 %v3370, %v3369
        %v3382 = vpack.c.bf16 %v3372, %v3371
        %v3383 = vpack.c.bf16 %v3374, %v3373
        %v3384 = vpack.c.bf16 %v3376, %v3375
        %v3385 = vld [vmem:[%s626] sm:$0xff]
        %v3386 = vld [vmem:[%s626 + $0x8] sm:$0xff]
        %v3387 = vld [vmem:[%s626 + $0x10] sm:$0xff]
        %v3388 = vld [vmem:[%s626 + $0x18] sm:$0xff]
        %v3389 = vld [vmem:[%s626 + $0x20] sm:$0xff]
        %v3390 = vld [vmem:[%s626 + $0x28] sm:$0xff]
        %v3391 = vld [vmem:[%s626 + $0x30] sm:$0xff]
        %v3392 = vld [vmem:[%s626 + $0x38] sm:$0xff]
        %v3393 = vld [vmem:[%s626 + $0x40] sm:$0xff]
        %v3394 = vld [vmem:[%s626 + $0x48] sm:$0xff]
        %v3395 = vld [vmem:[%s626 + $0x50] sm:$0xff]
        %v3396 = vld [vmem:[%s626 + $0x58] sm:$0xff]
        %v3397 = vld [vmem:[%s626 + $0x60] sm:$0xff]
        %v3398 = vld [vmem:[%s626 + $0x68] sm:$0xff]
        %v3399 = vld [vmem:[%s626 + $0x70] sm:$0xff]
        %v3400 = vld [vmem:[%s626 + $0x78] sm:$0xff]
        %v3401 = vld [vmem:[%s733] sm:$0x3]
        %v3403 = vlaneseq
        %v3404 = vshrl.u32 %v3403, 7
        %v3405 = vsub.s32 0, %v3404
        %v3406 = vrot.slane %v3401, %v3405
        %v3407 = vlaneseq
        %v3408 = vshrl.u32 %v3407, 7
        %v3409 = vsub.s32 1, %v3408
        %v3410 = vrot.slane %v3401, %v3409
        %v3429 = vunpack.c.l.b16 %v3385
        %v3430 = vunpack.c.h.b16 %v3385
        %v3431 = vunpack.c.l.b16 %v3386
        %v3432 = vunpack.c.h.b16 %v3386
        %v3433 = vunpack.c.l.b16 %v3387
        %v3434 = vunpack.c.h.b16 %v3387
        %v3435 = vunpack.c.l.b16 %v3388
        %v3436 = vunpack.c.h.b16 %v3388
        %v3437 = vunpack.c.l.b16 %v3389
        %v3438 = vunpack.c.h.b16 %v3389
        %v3439 = vunpack.c.l.b16 %v3390
        %v3440 = vunpack.c.h.b16 %v3390
        %v3441 = vunpack.c.l.b16 %v3391
        %v3442 = vunpack.c.h.b16 %v3391
        %v3443 = vunpack.c.l.b16 %v3392
        %v3444 = vunpack.c.h.b16 %v3392
        %v3445 = vunpack.c.l.b16 %v3393
        %v3446 = vunpack.c.h.b16 %v3393
        %v3447 = vunpack.c.l.b16 %v3394
        %v3448 = vunpack.c.h.b16 %v3394
        %v3449 = vunpack.c.l.b16 %v3395
        %v3450 = vunpack.c.h.b16 %v3395
        %v3451 = vunpack.c.l.b16 %v3396
        %v3452 = vunpack.c.h.b16 %v3396
        %v3453 = vunpack.c.l.b16 %v3397
        %v3454 = vunpack.c.h.b16 %v3397
        %v3455 = vunpack.c.l.b16 %v3398
        %v3456 = vunpack.c.h.b16 %v3398
        %v3457 = vunpack.c.l.b16 %v3399
        %v3458 = vunpack.c.h.b16 %v3399
        %v3459 = vunpack.c.l.b16 %v3400
        %v3460 = vunpack.c.h.b16 %v3400
        %v3461 = vpack.c.b16 %v3431, %v3429
        %v3462 = vpack.c.b16 %v3432, %v3430
        %v3463 = vpack.c.b16 %v3435, %v3433
        %v3464 = vpack.c.b16 %v3436, %v3434
        %v3465 = vpack.c.b16 %v3439, %v3437
        %v3466 = vpack.c.b16 %v3440, %v3438
        %v3467 = vpack.c.b16 %v3443, %v3441
        %v3468 = vpack.c.b16 %v3444, %v3442
        %v3469 = vpack.c.b16 %v3447, %v3445
        %v3470 = vpack.c.b16 %v3448, %v3446
        %v3471 = vpack.c.b16 %v3451, %v3449
        %v3472 = vpack.c.b16 %v3452, %v3450
        %v3473 = vpack.c.b16 %v3455, %v3453
        %v3474 = vpack.c.b16 %v3456, %v3454
        %v3475 = vpack.c.b16 %v3459, %v3457
        %v3476 = vpack.c.b16 %v3460, %v3458
        %3493 = vmatprep.subr.bf16.mxu0 %v3462
        %3494 = vmatpush1.bf16.msra.mxu0 %v3461
        %3495 = vmatprep.subr.bf16.mxu0 %v3464
        %3496 = vmatpush1.bf16.msra.mxu0 %v3463
        %3497 = vmatprep.subr.bf16.mxu0 %v3466
        %3498 = vmatpush1.bf16.msra.mxu0 %v3465
        %3499 = vmatprep.subr.bf16.mxu0 %v3468
        %3500 = vmatpush1.bf16.msra.mxu0 %v3467
        %3501 = vmatprep.subr.bf16.mxu0 %v3470
        %3502 = vmatpush1.bf16.msra.mxu0 %v3469
        %3503 = vmatprep.subr.bf16.mxu0 %v3472
        %3504 = vmatpush1.bf16.msra.mxu0 %v3471
        %3505 = vmatprep.subr.bf16.mxu0 %v3474
        %3506 = vmatpush1.bf16.msra.mxu0 %v3473
        %3507 = vmatprep.subr.bf16.mxu0 %v3476
        %3508 = vmatpush1.bf16.msra.mxu0 %v3475
        %3509 = vmatprep.subr.bf16.mxu0 0
        %3510 = vmatpush1.bf16.msra.mxu0 0
        %3511 = vmatprep.subr.bf16.mxu0 0
        %3512 = vmatpush1.bf16.msra.mxu0 0
        %3513 = vmatprep.subr.bf16.mxu0 0
        %3514 = vmatpush1.bf16.msra.mxu0 0
        %3515 = vmatprep.subr.bf16.mxu0 0
        %3516 = vmatpush1.bf16.msra.mxu0 0
        %3517 = vmatprep.subr.bf16.mxu0 0
        %3518 = vmatpush1.bf16.msra.mxu0 0
        %3519 = vmatprep.subr.bf16.mxu0 0
        %3520 = vmatpush1.bf16.msra.mxu0 0
        %3521 = vmatprep.subr.bf16.mxu0 0
        %3522 = vmatpush1.bf16.msra.mxu0 0
        %3523 = vmatprep.subr.bf16.mxu0 0
        %3524 = vmatpush1.bf16.msra.mxu0 0
        %3525 = vmatprep.mubr.bf16.mxu0 0
        %3526 = vmatmul.mubr.bf16.gmra.mrb[0].mxu0 %v3377
        %v3527 = vpop.f32.mrb[0].mxu0
        %v3528 = vadd.f32 %v3406, %v3527
        %v3529 = vpop.f32.mrb[0].mxu0
        %v3530 = vadd.f32 %v3410, %v3529
        %v3531 = vpop.f32.mrb[0].mxu0
        %v3532 = vadd.f32 %v3406, %v3531
        %v3533 = vpop.f32.mrb[0].mxu0
        %v3534 = vadd.f32 %v3410, %v3533
        %3535 = vmatprep.mubr.bf16.mxu0 0
        %3536 = vmatmul.mubr.bf16.gmra.mrb[0].mxu0 %v3378
        %v3537 = vpop.f32.mrb[0].mxu0
        %v3538 = vadd.f32 %v3406, %v3537
        %v3539 = vpop.f32.mrb[0].mxu0
        %v3540 = vadd.f32 %v3410, %v3539
        %v3541 = vpop.f32.mrb[0].mxu0
        %v3542 = vadd.f32 %v3406, %v3541
        %v3543 = vpop.f32.mrb[0].mxu0
        %v3544 = vadd.f32 %v3410, %v3543
        %3545 = vmatprep.mubr.bf16.mxu0 0
        %3546 = vmatmul.mubr.bf16.gmra.mrb[0].mxu0 %v3379
        %v3547 = vpop.f32.mrb[0].mxu0
        %v3548 = vadd.f32 %v3406, %v3547
        %v3549 = vpop.f32.mrb[0].mxu0
        %v3550 = vadd.f32 %v3410, %v3549
        %v3551 = vpop.f32.mrb[0].mxu0
        %v3552 = vadd.f32 %v3406, %v3551
        %v3553 = vpop.f32.mrb[0].mxu0
        %v3554 = vadd.f32 %v3410, %v3553
        %3555 = vmatprep.mubr.bf16.mxu0 0
        %3556 = vmatmul.mubr.bf16.gmra.mrb[0].mxu0 %v3380
        %v3557 = vpop.f32.mrb[0].mxu0
        %v3558 = vadd.f32 %v3406, %v3557
        %v3559 = vpop.f32.mrb[0].mxu0
        %v3560 = vadd.f32 %v3410, %v3559
        %v3561 = vpop.f32.mrb[0].mxu0
        %v3562 = vadd.f32 %v3406, %v3561
        %v3563 = vpop.f32.mrb[0].mxu0
        %v3564 = vadd.f32 %v3410, %v3563
        %3565 = vmatprep.mubr.bf16.mxu0 0
        %3566 = vmatmul.mubr.bf16.gmra.mrb[0].mxu0 %v3381
        %v3567 = vpop.f32.mrb[0].mxu0
        %v3568 = vadd.f32 %v3406, %v3567
        %v3569 = vpop.f32.mrb[0].mxu0
        %v3570 = vadd.f32 %v3410, %v3569
        %v3571 = vpop.f32.mrb[0].mxu0
        %v3572 = vadd.f32 %v3406, %v3571
        %v3573 = vpop.f32.mrb[0].mxu0
        %v3574 = vadd.f32 %v3410, %v3573
        %3575 = vmatprep.mubr.bf16.mxu0 0
        %3576 = vmatmul.mubr.bf16.gmra.mrb[0].mxu0 %v3382
        %v3577 = vpop.f32.mrb[0].mxu0
        %v3578 = vadd.f32 %v3406, %v3577
        %v3579 = vpop.f32.mrb[0].mxu0
        %v3580 = vadd.f32 %v3410, %v3579
        %v3581 = vpop.f32.mrb[0].mxu0
        %v3582 = vadd.f32 %v3406, %v3581
        %v3583 = vpop.f32.mrb[0].mxu0
        %v3584 = vadd.f32 %v3410, %v3583
        %3585 = vmatprep.mubr.bf16.mxu0 0
        %3586 = vmatmul.mubr.bf16.gmra.mrb[0].mxu0 %v3383
        %v3587 = vpop.f32.mrb[0].mxu0
        %v3588 = vadd.f32 %v3406, %v3587
        %v3589 = vpop.f32.mrb[0].mxu0
        %v3590 = vadd.f32 %v3410, %v3589
        %v3591 = vpop.f32.mrb[0].mxu0
        %v3592 = vadd.f32 %v3406, %v3591
        %v3593 = vpop.f32.mrb[0].mxu0
        %v3594 = vadd.f32 %v3410, %v3593
        %3595 = vmatprep.mubr.bf16.mxu0 0
        %3596 = vmatmul.mubr.bf16.gmra.mrb[0].mxu0 %v3384
        %v3597 = vpop.f32.mrb[0].mxu0
        %v3598 = vadd.f32 %v3406, %v3597
        %v3599 = vpop.f32.mrb[0].mxu0
        %v3600 = vadd.f32 %v3410, %v3599
        %v3601 = vpop.f32.mrb[0].mxu0
        %v3602 = vadd.f32 %v3406, %v3601
        %v3603 = vpop.f32.mrb[0].mxu0
        %v3604 = vadd.f32 %v3410, %v3603
        %3605 = vdwg.mxu0
        %v3606 = vmul.f32 %v3528, %v3528
        %v3607 = vmul.f32 %v3530, %v3530
        %v3608 = vmul.f32 %v3532, %v3532
        %v3609 = vmul.f32 %v3534, %v3534
        %v3610 = vmul.f32 %v3538, %v3538
        %v3611 = vmul.f32 %v3540, %v3540
        %v3612 = vmul.f32 %v3542, %v3542
        %v3613 = vmul.f32 %v3544, %v3544
        %v3614 = vmul.f32 %v3548, %v3548
        %v3615 = vmul.f32 %v3550, %v3550
        %v3616 = vmul.f32 %v3552, %v3552
        %v3617 = vmul.f32 %v3554, %v3554
        %v3618 = vmul.f32 %v3558, %v3558
        %v3619 = vmul.f32 %v3560, %v3560
        %v3620 = vmul.f32 %v3562, %v3562
        %v3621 = vmul.f32 %v3564, %v3564
        %v3622 = vmul.f32 %v3568, %v3568
        %v3623 = vmul.f32 %v3570, %v3570
        %v3624 = vmul.f32 %v3572, %v3572
        %v3625 = vmul.f32 %v3574, %v3574
        %v3626 = vmul.f32 %v3578, %v3578
        %v3627 = vmul.f32 %v3580, %v3580
        %v3628 = vmul.f32 %v3582, %v3582
        %v3629 = vmul.f32 %v3584, %v3584
        %v3630 = vmul.f32 %v3588, %v3588
        %v3631 = vmul.f32 %v3590, %v3590
        %v3632 = vmul.f32 %v3592, %v3592
        %v3633 = vmul.f32 %v3594, %v3594
        %v3634 = vmul.f32 %v3598, %v3598
        %v3635 = vmul.f32 %v3600, %v3600
        %v3636 = vmul.f32 %v3602, %v3602
        %v3637 = vmul.f32 %v3604, %v3604
        %v3638 = vmul.f32 %v3528, %v3606
        %v3639 = vmul.f32 %v3530, %v3607
        %v3640 = vmul.f32 %v3532, %v3608
        %v3641 = vmul.f32 %v3534, %v3609
        %v3642 = vmul.f32 %v3538, %v3610
        %v3643 = vmul.f32 %v3540, %v3611
        %v3644 = vmul.f32 %v3542, %v3612
        %v3645 = vmul.f32 %v3544, %v3613
        %v3646 = vmul.f32 %v3548, %v3614
        %v3647 = vmul.f32 %v3550, %v3615
        %v3648 = vmul.f32 %v3552, %v3616
        %v3649 = vmul.f32 %v3554, %v3617
        %v3650 = vmul.f32 %v3558, %v3618
        %v3651 = vmul.f32 %v3560, %v3619
        %v3652 = vmul.f32 %v3562, %v3620
        %v3653 = vmul.f32 %v3564, %v3621
        %v3654 = vmul.f32 %v3568, %v3622
        %v3655 = vmul.f32 %v3570, %v3623
        %v3656 = vmul.f32 %v3572, %v3624
        %v3657 = vmul.f32 %v3574, %v3625
        %v3658 = vmul.f32 %v3578, %v3626
        %v3659 = vmul.f32 %v3580, %v3627
        %v3660 = vmul.f32 %v3582, %v3628
        %v3661 = vmul.f32 %v3584, %v3629
        %v3662 = vmul.f32 %v3588, %v3630
        %v3663 = vmul.f32 %v3590, %v3631
        %v3664 = vmul.f32 %v3592, %v3632
        %v3665 = vmul.f32 %v3594, %v3633
        %v3666 = vmul.f32 %v3598, %v3634
        %v3667 = vmul.f32 %v3600, %v3635
        %v3668 = vmul.f32 %v3602, %v3636
        %v3669 = vmul.f32 %v3604, %v3637
        %v3670 = vmul.f32 %v3638, 0.044715
        %v3671 = vmul.f32 %v3639, 0.044715
        %v3672 = vmul.f32 %v3640, 0.044715
        %v3673 = vmul.f32 %v3641, 0.044715
        %v3674 = vmul.f32 %v3642, 0.044715
        %v3675 = vmul.f32 %v3643, 0.044715
        %v3676 = vmul.f32 %v3644, 0.044715
        %v3677 = vmul.f32 %v3645, 0.044715
        %v3678 = vmul.f32 %v3646, 0.044715
        %v3679 = vmul.f32 %v3647, 0.044715
        %v3680 = vmul.f32 %v3648, 0.044715
        %v3681 = vmul.f32 %v3649, 0.044715
        %v3682 = vmul.f32 %v3650, 0.044715
        %v3683 = vmul.f32 %v3651, 0.044715
        %v3684 = vmul.f32 %v3652, 0.044715
        %v3685 = vmul.f32 %v3653, 0.044715
        %v3686 = vmul.f32 %v3654, 0.044715
        %v3687 = vmul.f32 %v3655, 0.044715
        %v3688 = vmul.f32 %v3656, 0.044715
        %v3689 = vmul.f32 %v3657, 0.044715
        %v3690 = vmul.f32 %v3658, 0.044715
        %v3691 = vmul.f32 %v3659, 0.044715
        %v3692 = vmul.f32 %v3660, 0.044715
        %v3693 = vmul.f32 %v3661, 0.044715
        %v3694 = vmul.f32 %v3662, 0.044715
        %v3695 = vmul.f32 %v3663, 0.044715
        %v3696 = vmul.f32 %v3664, 0.044715
        %v3697 = vmul.f32 %v3665, 0.044715
        %v3698 = vmul.f32 %v3666, 0.044715
        %v3699 = vmul.f32 %v3667, 0.044715
        %v3700 = vmul.f32 %v3668, 0.044715
        %v3701 = vmul.f32 %v3669, 0.044715
        %v3702 = vadd.f32 %v3528, %v3670
        %v3703 = vadd.f32 %v3530, %v3671
        %v3704 = vadd.f32 %v3532, %v3672
        %v3705 = vadd.f32 %v3534, %v3673
        %v3706 = vadd.f32 %v3538, %v3674
        %v3707 = vadd.f32 %v3540, %v3675
        %v3708 = vadd.f32 %v3542, %v3676
        %v3709 = vadd.f32 %v3544, %v3677
        %v3710 = vadd.f32 %v3548, %v3678
        %v3711 = vadd.f32 %v3550, %v3679
        %v3712 = vadd.f32 %v3552, %v3680
        %v3713 = vadd.f32 %v3554, %v3681
        %v3714 = vadd.f32 %v3558, %v3682
        %v3715 = vadd.f32 %v3560, %v3683
        %v3716 = vadd.f32 %v3562, %v3684
        %v3717 = vadd.f32 %v3564, %v3685
        %v3718 = vadd.f32 %v3568, %v3686
        %v3719 = vadd.f32 %v3570, %v3687
        %v3720 = vadd.f32 %v3572, %v3688
        %v3721 = vadd.f32 %v3574, %v3689
        %v3722 = vadd.f32 %v3578, %v3690
        %v3723 = vadd.f32 %v3580, %v3691
        %v3724 = vadd.f32 %v3582, %v3692
        %v3725 = vadd.f32 %v3584, %v3693
        %v3726 = vadd.f32 %v3588, %v3694
        %v3727 = vadd.f32 %v3590, %v3695
        %v3728 = vadd.f32 %v3592, %v3696
        %v3729 = vadd.f32 %v3594, %v3697
        %v3730 = vadd.f32 %v3598, %v3698
        %v3731 = vadd.f32 %v3600, %v3699
        %v3732 = vadd.f32 %v3602, %v3700
        %v3733 = vadd.f32 %v3604, %v3701
        %v3734 = vmul.f32 %v3702, 0.7978846
        %v3735 = vmul.f32 %v3703, 0.7978846
        %v3736 = vmul.f32 %v3704, 0.7978846
        %v3737 = vmul.f32 %v3705, 0.7978846
        %v3738 = vmul.f32 %v3706, 0.7978846
        %v3739 = vmul.f32 %v3707, 0.7978846
        %v3740 = vmul.f32 %v3708, 0.7978846
        %v3741 = vmul.f32 %v3709, 0.7978846
        %v3742 = vmul.f32 %v3710, 0.7978846
        %v3743 = vmul.f32 %v3711, 0.7978846
        %v3744 = vmul.f32 %v3712, 0.7978846
        %v3745 = vmul.f32 %v3713, 0.7978846
        %v3746 = vmul.f32 %v3714, 0.7978846
        %v3747 = vmul.f32 %v3715, 0.7978846
        %v3748 = vmul.f32 %v3716, 0.7978846
        %v3749 = vmul.f32 %v3717, 0.7978846
        %v3750 = vmul.f32 %v3718, 0.7978846
        %v3751 = vmul.f32 %v3719, 0.7978846
        %v3752 = vmul.f32 %v3720, 0.7978846
        %v3753 = vmul.f32 %v3721, 0.7978846
        %v3754 = vmul.f32 %v3722, 0.7978846
        %v3755 = vmul.f32 %v3723, 0.7978846
        %v3756 = vmul.f32 %v3724, 0.7978846
        %v3757 = vmul.f32 %v3725, 0.7978846
        %v3758 = vmul.f32 %v3726, 0.7978846
        %v3759 = vmul.f32 %v3727, 0.7978846
        %v3760 = vmul.f32 %v3728, 0.7978846
        %v3761 = vmul.f32 %v3729, 0.7978846
        %v3762 = vmul.f32 %v3730, 0.7978846
        %v3763 = vmul.f32 %v3731, 0.7978846
        %v3764 = vmul.f32 %v3732, 0.7978846
        %v3765 = vmul.f32 %v3733, 0.7978846
        %v3766 = vtanh.pop %v3734
        %v3767 = vtanh.pop %v3735
        %v3768 = vtanh.pop %v3736
        %v3769 = vtanh.pop %v3737
        %v3770 = vtanh.pop %v3738
        %v3771 = vtanh.pop %v3739
        %v3772 = vtanh.pop %v3740
        %v3773 = vtanh.pop %v3741
        %v3774 = vtanh.pop %v3742
        %v3775 = vtanh.pop %v3743
        %v3776 = vtanh.pop %v3744
        %v3777 = vtanh.pop %v3745
        %v3778 = vtanh.pop %v3746
        %v3779 = vtanh.pop %v3747
        %v3780 = vtanh.pop %v3748
        %v3781 = vtanh.pop %v3749
        %v3782 = vtanh.pop %v3750
        %v3783 = vtanh.pop %v3751
        %v3784 = vtanh.pop %v3752
        %v3785 = vtanh.pop %v3753
        %v3786 = vtanh.pop %v3754
        %v3787 = vtanh.pop %v3755
        %v3788 = vtanh.pop %v3756
        %v3789 = vtanh.pop %v3757
        %v3790 = vtanh.pop %v3758
        %v3791 = vtanh.pop %v3759
        %v3792 = vtanh.pop %v3760
        %v3793 = vtanh.pop %v3761
        %v3794 = vtanh.pop %v3762
        %v3795 = vtanh.pop %v3763
        %v3796 = vtanh.pop %v3764
        %v3797 = vtanh.pop %v3765
        %v3798 = vadd.f32 %v3766, 1.0
        %v3799 = vadd.f32 %v3767, 1.0
        %v3800 = vadd.f32 %v3768, 1.0
        %v3801 = vadd.f32 %v3769, 1.0
        %v3802 = vadd.f32 %v3770, 1.0
        %v3803 = vadd.f32 %v3771, 1.0
        %v3804 = vadd.f32 %v3772, 1.0
        %v3805 = vadd.f32 %v3773, 1.0
        %v3806 = vadd.f32 %v3774, 1.0
        %v3807 = vadd.f32 %v3775, 1.0
        %v3808 = vadd.f32 %v3776, 1.0
        %v3809 = vadd.f32 %v3777, 1.0
        %v3810 = vadd.f32 %v3778, 1.0
        %v3811 = vadd.f32 %v3779, 1.0
        %v3812 = vadd.f32 %v3780, 1.0
        %v3813 = vadd.f32 %v3781, 1.0
        %v3814 = vadd.f32 %v3782, 1.0
        %v3815 = vadd.f32 %v3783, 1.0
        %v3816 = vadd.f32 %v3784, 1.0
        %v3817 = vadd.f32 %v3785, 1.0
        %v3818 = vadd.f32 %v3786, 1.0
        %v3819 = vadd.f32 %v3787, 1.0
        %v3820 = vadd.f32 %v3788, 1.0
        %v3821 = vadd.f32 %v3789, 1.0
        %v3822 = vadd.f32 %v3790, 1.0
        %v3823 = vadd.f32 %v3791, 1.0
        %v3824 = vadd.f32 %v3792, 1.0
        %v3825 = vadd.f32 %v3793, 1.0
        %v3826 = vadd.f32 %v3794, 1.0
        %v3827 = vadd.f32 %v3795, 1.0
        %v3828 = vadd.f32 %v3796, 1.0
        %v3829 = vadd.f32 %v3797, 1.0
        %v3830 = vmul.f32 %v3798, 0.5
        %v3831 = vmul.f32 %v3799, 0.5
        %v3832 = vmul.f32 %v3800, 0.5
        %v3833 = vmul.f32 %v3801, 0.5
        %v3834 = vmul.f32 %v3802, 0.5
        %v3835 = vmul.f32 %v3803, 0.5
        %v3836 = vmul.f32 %v3804, 0.5
        %v3837 = vmul.f32 %v3805, 0.5
        %v3838 = vmul.f32 %v3806, 0.5
        %v3839 = vmul.f32 %v3807, 0.5
        %v3840 = vmul.f32 %v3808, 0.5
        %v3841 = vmul.f32 %v3809, 0.5
        %v3842 = vmul.f32 %v3810, 0.5
        %v3843 = vmul.f32 %v3811, 0.5
        %v3844 = vmul.f32 %v3812, 0.5
        %v3845 = vmul.f32 %v3813, 0.5
        %v3846 = vmul.f32 %v3814, 0.5
        %v3847 = vmul.f32 %v3815, 0.5
        %v3848 = vmul.f32 %v3816, 0.5
        %v3849 = vmul.f32 %v3817, 0.5
        %v3850 = vmul.f32 %v3818, 0.5
        %v3851 = vmul.f32 %v3819, 0.5
        %v3852 = vmul.f32 %v3820, 0.5
        %v3853 = vmul.f32 %v3821, 0.5
        %v3854 = vmul.f32 %v3822, 0.5
        %v3855 = vmul.f32 %v3823, 0.5
        %v3856 = vmul.f32 %v3824, 0.5
        %v3857 = vmul.f32 %v3825, 0.5
        %v3858 = vmul.f32 %v3826, 0.5
        %v3859 = vmul.f32 %v3827, 0.5
        %v3860 = vmul.f32 %v3828, 0.5
        %v3861 = vmul.f32 %v3829, 0.5
        %v3862 = vmul.f32 %v3528, %v3830
        %v3863 = vmul.f32 %v3530, %v3831
        %v3864 = vmul.f32 %v3532, %v3832
        %v3865 = vmul.f32 %v3534, %v3833
        %v3866 = vmul.f32 %v3538, %v3834
        %v3867 = vmul.f32 %v3540, %v3835
        %v3868 = vmul.f32 %v3542, %v3836
        %v3869 = vmul.f32 %v3544, %v3837
        %v3870 = vmul.f32 %v3548, %v3838
        %v3871 = vmul.f32 %v3550, %v3839
        %v3872 = vmul.f32 %v3552, %v3840
        %v3873 = vmul.f32 %v3554, %v3841
        %v3874 = vmul.f32 %v3558, %v3842
        %v3875 = vmul.f32 %v3560, %v3843
        %v3876 = vmul.f32 %v3562, %v3844
        %v3877 = vmul.f32 %v3564, %v3845
        %v3878 = vmul.f32 %v3568, %v3846
        %v3879 = vmul.f32 %v3570, %v3847
        %v3880 = vmul.f32 %v3572, %v3848
        %v3881 = vmul.f32 %v3574, %v3849
        %v3882 = vmul.f32 %v3578, %v3850
        %v3883 = vmul.f32 %v3580, %v3851
        %v3884 = vmul.f32 %v3582, %v3852
        %v3885 = vmul.f32 %v3584, %v3853
        %v3886 = vmul.f32 %v3588, %v3854
        %v3887 = vmul.f32 %v3590, %v3855
        %v3888 = vmul.f32 %v3592, %v3856
        %v3889 = vmul.f32 %v3594, %v3857
        %v3890 = vmul.f32 %v3598, %v3858
        %v3891 = vmul.f32 %v3600, %v3859
        %v3892 = vmul.f32 %v3602, %v3860
        %v3893 = vmul.f32 %v3604, %v3861
        %v3894 = vpack.c.bf16 %v3864, %v3862
        %v3895 = vpack.c.bf16 %v3865, %v3863
        %v3896 = vpack.c.bf16 %v3868, %v3866
        %v3897 = vpack.c.bf16 %v3869, %v3867
        %v3898 = vpack.c.bf16 %v3872, %v3870
        %v3899 = vpack.c.bf16 %v3873, %v3871
        %v3900 = vpack.c.bf16 %v3876, %v3874
        %v3901 = vpack.c.bf16 %v3877, %v3875
        %v3902 = vpack.c.bf16 %v3880, %v3878
        %v3903 = vpack.c.bf16 %v3881, %v3879
        %v3904 = vpack.c.bf16 %v3884, %v3882
        %v3905 = vpack.c.bf16 %v3885, %v3883
        %v3906 = vpack.c.bf16 %v3888, %v3886
        %v3907 = vpack.c.bf16 %v3889, %v3887
        %v3908 = vpack.c.bf16 %v3892, %v3890
        %v3909 = vpack.c.bf16 %v3893, %v3891
        %v3910 = vld [vmem:[%s635] sm:$0xf]
        %v3911 = vld [vmem:[%s635 + $0x4] sm:$0xf]
        %v3912 = vld [vmem:[%s635 + $0x8] sm:$0xf]
        %v3913 = vld [vmem:[%s635 + $0xc] sm:$0xf]
        %v3914 = vld [vmem:[%s635 + $0x10] sm:$0xf]
        %v3915 = vld [vmem:[%s635 + $0x14] sm:$0xf]
        %v3916 = vld [vmem:[%s635 + $0x18] sm:$0xf]
        %v3917 = vld [vmem:[%s635 + $0x1c] sm:$0xf]
        %v3918 = vld [vmem:[%s635 + $0x20] sm:$0xf]
        %v3919 = vld [vmem:[%s635 + $0x24] sm:$0xf]
        %v3920 = vld [vmem:[%s635 + $0x28] sm:$0xf]
        %v3921 = vld [vmem:[%s635 + $0x2c] sm:$0xf]
        %v3922 = vld [vmem:[%s635 + $0x30] sm:$0xf]
        %v3923 = vld [vmem:[%s635 + $0x34] sm:$0xf]
        %v3924 = vld [vmem:[%s635 + $0x38] sm:$0xf]
        %v3925 = vld [vmem:[%s635 + $0x3c] sm:$0xf]
        %v3926 = vld [vmem:[%s635 + $0x40] sm:$0xf]
        %v3927 = vld [vmem:[%s635 + $0x44] sm:$0xf]
        %v3928 = vld [vmem:[%s635 + $0x48] sm:$0xf]
        %v3929 = vld [vmem:[%s635 + $0x4c] sm:$0xf]
        %v3930 = vld [vmem:[%s635 + $0x50] sm:$0xf]
        %v3931 = vld [vmem:[%s635 + $0x54] sm:$0xf]
        %v3932 = vld [vmem:[%s635 + $0x58] sm:$0xf]
        %v3933 = vld [vmem:[%s635 + $0x5c] sm:$0xf]
        %v3934 = vld [vmem:[%s635 + $0x60] sm:$0xf]
        %v3935 = vld [vmem:[%s635 + $0x64] sm:$0xf]
        %v3936 = vld [vmem:[%s635 + $0x68] sm:$0xf]
        %v3937 = vld [vmem:[%s635 + $0x6c] sm:$0xf]
        %v3938 = vld [vmem:[%s635 + $0x70] sm:$0xf]
        %v3939 = vld [vmem:[%s635 + $0x74] sm:$0xf]
        %v3940 = vld [vmem:[%s635 + $0x78] sm:$0xf]
        %v3941 = vld [vmem:[%s635 + $0x7c] sm:$0xf]
        %v3942 = vld [vmem:[%s736] sm:$0x1]
        %v3944 = vlaneseq
        %v3945 = vshrl.u32 %v3944, 7
        %v3946 = vsub.s32 0, %v3945
        %v3947 = vrot.slane %v3942, %v3946
        %v3981 = vunpack.c.l.b16 %v3910
        %v3982 = vunpack.c.l.b16 %v3911
        %v3983 = vunpack.c.l.b16 %v3912
        %v3984 = vunpack.c.l.b16 %v3913
        %v3985 = vunpack.c.l.b16 %v3914
        %v3986 = vunpack.c.l.b16 %v3915
        %v3987 = vunpack.c.l.b16 %v3916
        %v3988 = vunpack.c.l.b16 %v3917
        %v3989 = vunpack.c.l.b16 %v3918
        %v3990 = vunpack.c.l.b16 %v3919
        %v3991 = vunpack.c.l.b16 %v3920
        %v3992 = vunpack.c.l.b16 %v3921
        %v3993 = vunpack.c.l.b16 %v3922
        %v3994 = vunpack.c.l.b16 %v3923
        %v3995 = vunpack.c.l.b16 %v3924
        %v3996 = vunpack.c.l.b16 %v3925
        %v3997 = vunpack.c.l.b16 %v3926
        %v3998 = vunpack.c.l.b16 %v3927
        %v3999 = vunpack.c.l.b16 %v3928
        %v4000 = vunpack.c.l.b16 %v3929
        %v4001 = vunpack.c.l.b16 %v3930
        %v4002 = vunpack.c.l.b16 %v3931
        %v4003 = vunpack.c.l.b16 %v3932
        %v4004 = vunpack.c.l.b16 %v3933
        %v4005 = vunpack.c.l.b16 %v3934
        %v4006 = vunpack.c.l.b16 %v3935
        %v4007 = vunpack.c.l.b16 %v3936
        %v4008 = vunpack.c.l.b16 %v3937
        %v4009 = vunpack.c.l.b16 %v3938
        %v4010 = vunpack.c.l.b16 %v3939
        %v4011 = vunpack.c.l.b16 %v3940
        %v4012 = vunpack.c.l.b16 %v3941
        %v4013 = vpack.c.b16 %v3982, %v3981
        %v4014 = vpack.c.b16 %v3984, %v3983
        %v4015 = vpack.c.b16 %v3986, %v3985
        %v4016 = vpack.c.b16 %v3988, %v3987
        %v4017 = vpack.c.b16 %v3990, %v3989
        %v4018 = vpack.c.b16 %v3992, %v3991
        %v4019 = vpack.c.b16 %v3994, %v3993
        %v4020 = vpack.c.b16 %v3996, %v3995
        %v4021 = vpack.c.b16 %v3998, %v3997
        %v4022 = vpack.c.b16 %v4000, %v3999
        %v4023 = vpack.c.b16 %v4002, %v4001
        %v4024 = vpack.c.b16 %v4004, %v4003
        %v4025 = vpack.c.b16 %v4006, %v4005
        %v4026 = vpack.c.b16 %v4008, %v4007
        %v4027 = vpack.c.b16 %v4010, %v4009
        %v4028 = vpack.c.b16 %v4012, %v4011
        %4045 = vmatprep.subr.bf16.mxu0 0
        %4046 = vmatpush1.bf16.msra.mxu0 %v4013
        %4047 = vmatprep.subr.bf16.mxu0 0
        %4048 = vmatpush1.bf16.msra.mxu0 %v4014
        %4049 = vmatprep.subr.bf16.mxu0 0
        %4050 = vmatpush1.bf16.msra.mxu0 %v4015
        %4051 = vmatprep.subr.bf16.mxu0 0
        %4052 = vmatpush1.bf16.msra.mxu0 %v4016
        %4053 = vmatprep.subr.bf16.mxu0 0
        %4054 = vmatpush1.bf16.msra.mxu0 %v4017
        %4055 = vmatprep.subr.bf16.mxu0 0
        %4056 = vmatpush1.bf16.msra.mxu0 %v4018
        %4057 = vmatprep.subr.bf16.mxu0 0
        %4058 = vmatpush1.bf16.msra.mxu0 %v4019
        %4059 = vmatprep.subr.bf16.mxu0 0
        %4060 = vmatpush1.bf16.msra.mxu0 %v4020
        %4061 = vmatprep.subr.bf16.mxu0 0
        %4062 = vmatpush1.bf16.msra.mxu0 %v4021
        %4063 = vmatprep.subr.bf16.mxu0 0
        %4064 = vmatpush1.bf16.msra.mxu0 %v4022
        %4065 = vmatprep.subr.bf16.mxu0 0
        %4066 = vmatpush1.bf16.msra.mxu0 %v4023
        %4067 = vmatprep.subr.bf16.mxu0 0
        %4068 = vmatpush1.bf16.msra.mxu0 %v4024
        %4069 = vmatprep.subr.bf16.mxu0 0
        %4070 = vmatpush1.bf16.msra.mxu0 %v4025
        %4071 = vmatprep.subr.bf16.mxu0 0
        %4072 = vmatpush1.bf16.msra.mxu0 %v4026
        %4073 = vmatprep.subr.bf16.mxu0 0
        %4074 = vmatpush1.bf16.msra.mxu0 %v4027
        %4075 = vmatprep.subr.bf16.mxu0 0
        %4076 = vmatpush1.bf16.msra.mxu0 %v4028
        %4077 = vmatprep.mubr.bf16.mxu0 %v3895
        %4078 = vmatmul.mubr.bf16.gmra.mrb[0].mxu0 %v3894
        %v4079 = vpop.f32.mrb[0].mxu0
        %v4080 = vadd.f32 %v3947, %v4079
        %v4081 = vpop.f32.mrb[0].mxu0
        %v4082 = vpop.f32.mrb[0].mxu0
        %v4083 = vadd.f32 %v3947, %v4082
        %v4084 = vpop.f32.mrb[0].mxu0
        %4085 = vmatprep.mubr.bf16.mxu0 %v3897
        %4086 = vmatmul.mubr.bf16.gmra.mrb[0].mxu0 %v3896
        %v4087 = vpop.f32.mrb[0].mxu0
        %v4088 = vadd.f32 %v3947, %v4087
        %v4089 = vpop.f32.mrb[0].mxu0
        %v4090 = vpop.f32.mrb[0].mxu0
        %v4091 = vadd.f32 %v3947, %v4090
        %v4092 = vpop.f32.mrb[0].mxu0
        %4093 = vmatprep.mubr.bf16.mxu0 %v3899
        %4094 = vmatmul.mubr.bf16.gmra.mrb[0].mxu0 %v3898
        %v4095 = vpop.f32.mrb[0].mxu0
        %v4096 = vadd.f32 %v3947, %v4095
        %v4097 = vpop.f32.mrb[0].mxu0
        %v4098 = vpop.f32.mrb[0].mxu0
        %v4099 = vadd.f32 %v3947, %v4098
        %v4100 = vpop.f32.mrb[0].mxu0
        %4101 = vmatprep.mubr.bf16.mxu0 %v3901
        %4102 = vmatmul.mubr.bf16.gmra.mrb[0].mxu0 %v3900
        %v4103 = vpop.f32.mrb[0].mxu0
        %v4104 = vadd.f32 %v3947, %v4103
        %v4105 = vpop.f32.mrb[0].mxu0
        %v4106 = vpop.f32.mrb[0].mxu0
        %v4107 = vadd.f32 %v3947, %v4106
        %v4108 = vpop.f32.mrb[0].mxu0
        %4109 = vmatprep.mubr.bf16.mxu0 %v3903
        %4110 = vmatmul.mubr.bf16.gmra.mrb[0].mxu0 %v3902
        %v4111 = vpop.f32.mrb[0].mxu0
        %v4112 = vadd.f32 %v3947, %v4111
        %v4113 = vpop.f32.mrb[0].mxu0
        %v4114 = vpop.f32.mrb[0].mxu0
        %v4115 = vadd.f32 %v3947, %v4114
        %v4116 = vpop.f32.mrb[0].mxu0
        %4117 = vmatprep.mubr.bf16.mxu0 %v3905
        %4118 = vmatmul.mubr.bf16.gmra.mrb[0].mxu0 %v3904
        %v4119 = vpop.f32.mrb[0].mxu0
        %v4120 = vadd.f32 %v3947, %v4119
        %v4121 = vpop.f32.mrb[0].mxu0
        %v4122 = vpop.f32.mrb[0].mxu0
        %v4123 = vadd.f32 %v3947, %v4122
        %v4124 = vpop.f32.mrb[0].mxu0
        %4125 = vmatprep.mubr.bf16.mxu0 %v3907
        %4126 = vmatmul.mubr.bf16.gmra.mrb[0].mxu0 %v3906
        %v4127 = vpop.f32.mrb[0].mxu0
        %v4128 = vadd.f32 %v3947, %v4127
        %v4129 = vpop.f32.mrb[0].mxu0
        %v4130 = vpop.f32.mrb[0].mxu0
        %v4131 = vadd.f32 %v3947, %v4130
        %v4132 = vpop.f32.mrb[0].mxu0
        %4133 = vmatprep.mubr.bf16.mxu0 %v3909
        %4134 = vmatmul.mubr.bf16.gmra.mrb[0].mxu0 %v3908
        %v4135 = vpop.f32.mrb[0].mxu0
        %v4136 = vadd.f32 %v3947, %v4135
        %v4137 = vpop.f32.mrb[0].mxu0
        %v4138 = vpop.f32.mrb[0].mxu0
        %v4139 = vadd.f32 %v3947, %v4138
        %v4140 = vpop.f32.mrb[0].mxu0
        %4141 = vdwg.mxu0
        %v4142 = vadd.f32 %v3139, %v4080
        %v4143 = vadd.f32 %v3140, %v4083
        %v4144 = vadd.f32 %v3141, %v4088
        %v4145 = vadd.f32 %v3142, %v4091
        %v4146 = vadd.f32 %v3143, %v4096
        %v4147 = vadd.f32 %v3144, %v4099
        %v4148 = vadd.f32 %v3145, %v4104
        %v4149 = vadd.f32 %v3146, %v4107
        %v4150 = vadd.f32 %v3147, %v4112
        %v4151 = vadd.f32 %v3148, %v4115
        %v4152 = vadd.f32 %v3149, %v4120
        %v4153 = vadd.f32 %v3150, %v4123
        %v4154 = vadd.f32 %v3151, %v4128
        %v4155 = vadd.f32 %v3152, %v4131
        %v4156 = vadd.f32 %v3153, %v4136
        %v4157 = vadd.f32 %v3154, %v4139
        %4158 = vst [vmem:[#allocation2] sm:$0xff] %v4142
        %4159 = vst [vmem:[#allocation2 + $0x8] sm:$0xff] %v4143
        %4160 = vst [vmem:[#allocation2 + $0x10] sm:$0xff] %v4144
        %4161 = vst [vmem:[#allocation2 + $0x18] sm:$0xff] %v4145
        %4162 = vst [vmem:[#allocation2 + $0x20] sm:$0xff] %v4146
        %4163 = vst [vmem:[#allocation2 + $0x28] sm:$0xff] %v4147
        %4164 = vst [vmem:[#allocation2 + $0x30] sm:$0xff] %v4148
        %4165 = vst [vmem:[#allocation2 + $0x38] sm:$0xff] %v4149
        %4166 = vst [vmem:[#allocation2 + $0x40] sm:$0xff] %v4150
        %4167 = vst [vmem:[#allocation2 + $0x48] sm:$0xff] %v4151
        %4168 = vst [vmem:[#allocation2 + $0x50] sm:$0xff] %v4152
        %4169 = vst [vmem:[#allocation2 + $0x58] sm:$0xff] %v4153
        %4170 = vst [vmem:[#allocation2 + $0x60] sm:$0xff] %v4154
        %4171 = vst [vmem:[#allocation2 + $0x68] sm:$0xff] %v4155
        %4172 = vst [vmem:[#allocation2 + $0x70] sm:$0xff] %v4156
        %4173 = vst [vmem:[#allocation2 + $0x78] sm:$0xff] %v4157
        %p4174 = scmp.eq.s32.totalorder %s43, 1
        // Predicated region
        $region101: #{transformer_forward.1} parent=67 // pred_check
          %p4175 = pneg %p4174
        $region102: #{transformer_forward.1} parent=67 // pred_check_branch
          %4177 = sbr.rel (%p4175) target = $region104
        $region103: #{transformer_forward.1} parent=67 // pred_region
          %4178 = vst [vmem:[%s719] sm:$0xff] %v4142
          %4179 = vst [vmem:[%s719 + $0x8] sm:$0xff] %v4143
          %4180 = vst [vmem:[%s719 + $0x10] sm:$0xff] %v4144
          %4181 = vst [vmem:[%s719 + $0x18] sm:$0xff] %v4145
          %4182 = vst [vmem:[%s719 + $0x20] sm:$0xff] %v4146
          %4183 = vst [vmem:[%s719 + $0x28] sm:$0xff] %v4147
          %4184 = vst [vmem:[%s719 + $0x30] sm:$0xff] %v4148
          %4185 = vst [vmem:[%s719 + $0x38] sm:$0xff] %v4149
          %4186 = vst [vmem:[%s719 + $0x40] sm:$0xff] %v4150
          %4187 = vst [vmem:[%s719 + $0x48] sm:$0xff] %v4151
          %4188 = vst [vmem:[%s719 + $0x50] sm:$0xff] %v4152
          %4189 = vst [vmem:[%s719 + $0x58] sm:$0xff] %v4153
          %4190 = vst [vmem:[%s719 + $0x60] sm:$0xff] %v4154
          %4191 = vst [vmem:[%s719 + $0x68] sm:$0xff] %v4155
          %4192 = vst [vmem:[%s719 + $0x70] sm:$0xff] %v4156
          %4193 = vst [vmem:[%s719 + $0x78] sm:$0xff] %v4157
        $region104: #{transformer_forward.1} parent=67 // pred_fallthru
          _
        %s4194 = sand.u32 %s370, 1
        %s4195 = scalar_lea.sflag [#allocation5], %s4194
        %s4196 = sand.u32 %s370, 1
        %s4197 = smul.addr %s4196, 128
        %s4198 = scalar_lea.vmem [#allocation15], %s4197
        // Predicated region
        $region105: #{transformer_forward.1} parent=67 // pred_check
          %p4199 = pneg %p380
        $region106: #{transformer_forward.1} parent=67 // pred_check_branch
          %4201 = sbr.rel (%p4199) target = $region108
        $region107: #{transformer_forward.1} parent=67 // pred_region
          %s4202 = smul.u32 16, %s42
          %s4204 = ssub.s32 2048, 2048
          %4205 = vsyncadd %s4195, %s4204
          %s4206 = smul.addr %s4202, 128
          %s4207 = scalar_lea.hbm %s12, %s4206
          %s4208 = sshll.u32 %s4198, 4
          %s4209 = int_to_ptr.vmem [resolvable:$true] %s4208
          %4214 = dma.vmem_to_hbm [thread:$0]  %s4209, 2048, %s4207, %s4195, 128, 128, 8
        $region108: #{transformer_forward.1} parent=67 // pred_fallthru
          _
      $region68: #{transformer_forward.1} parent=5 // pred_fallthru
        _
      %p4215 = scmp.le.s32.totalorder 2, %s33
      // Predicated region
      $region109: #{transformer_forward.1} parent=5 // pred_check
        %p4216 = pneg %p4215
      $region110: #{transformer_forward.1} parent=5 // pred_check_branch
        %4218 = sbr.rel (%p4216) target = $region112
      $region111: #{transformer_forward.1} parent=5 // pred_region
        %s4219 = ssub.s32 %s33, 2
        // Predicated region
        $region113: #{transformer_forward.1} parent=111 // pred_check
          %p4220 = pneg %p386
        $region114: #{transformer_forward.1} parent=111 // pred_check_branch
          %4222 = sbr.rel (%p4220) target = $region116
        $region115: #{transformer_forward.1} parent=111 // pred_region
          %s4223 = sand.u32 %s371, 1
          %s4224 = scalar_lea.sflag [#allocation5], %s4223
          %s4225 = sand.u32 %s371, 1
          %s4226 = smul.addr %s4225, 128
          %s4227 = scalar_lea.vmem [#allocation15], %s4226
          %4228 = dma.done %s4224, 2048
        $region116: #{transformer_forward.1} parent=111 // pred_fallthru
          _
      $region112: #{transformer_forward.1} parent=5 // pred_fallthru
        _
    $region6: #{transformer_forward.1} parent=1 // loop_footer
      %s37 = sadd.s32 1, %s33
    $region7: #{transformer_forward.1} parent=1 // loop_footer_branch
      %32 = sbr.rel target = $region3
    $region8: #{transformer_forward.1} parent=1 // loop_exit
      _
    %4229 = vsyncpa [#allocation4], 1
    %s4230 = scalar_lea.sflag [#allocation4], 1
    %4231 = vsyncpa %s4230, 1
    %4232 = vsyncpa [#allocation7], 1
    %s4233 = scalar_lea.sflag [#allocation7], 1
    %4234 = vsyncpa %s4233, 1
    %4235 = vsyncpa [#allocation10], 1
    %s4236 = scalar_lea.sflag [#allocation10], 1
    %4237 = vsyncpa %s4236, 1
    %4238 = vsyncpa [#allocation13], 1
    %s4239 = scalar_lea.sflag [#allocation13], 1
    %4240 = vsyncpa %s4239, 1
    %4241 = vsyncpa [#allocation5], 1
    %s4242 = scalar_lea.sflag [#allocation5], 1
    %4243 = vsyncpa %s4242, 1

</llo_original>
